<compile_context>
chip_gen: v7x
topology: tpu7x:2x2x1
jax: 0.10.0
libtpu: 0.0.40
codegen_flags: <defaults>
</compile_context>

<pallas_src>
import jax
import jax.numpy as jnp
from jax import lax
from jax.experimental import pallas as pl
from jax.experimental.pallas import tpu as pltpu

# ------------------------- tiny Qwen2 config -------------------------
HIDDEN = 64
NUM_HEADS = 4
NUM_KV_HEADS = 2
HEAD_DIM = HIDDEN // NUM_HEADS          # 16
HALF = HEAD_DIM // 2                    # 8
INTERMEDIATE = 128
VOCAB = 128
NUM_LAYERS = 2
SEQ = 8
EPS = 1e-6
ROPE_THETA = 10000.0
MAX_POS = 64

Q_SIZE = NUM_HEADS * HEAD_DIM           # 64
KV_SIZE = NUM_KV_HEADS * HEAD_DIM       # 32
QKV_OUT = Q_SIZE + 2 * KV_SIZE          # 128
GROUP = NUM_HEADS // NUM_KV_HEADS       # 2
SCALE = 1.0 / (HEAD_DIM ** 0.5)
NEG_INF = -1e30


# ------------------------- fused forward kernel (single invocation) -------------------------
def _qwen2_fused_kernel(
    # layer-invariant inputs
    x_ref, cos_ref, sin_ref, rot_ref, mask_ref,
    # per-layer stacked weights (whole (NUM_LAYERS, ...) arrays, resident in VMEM)
    ln1_ref, wqkv_ref, bqkv_ref, wo_ref, ln2_ref, wgu_ref, wd_ref,
    # final norm weight
    fln_ref,
    # output
    o_ref,
):
    def rms(x, w):
        var = jnp.mean(x * x, axis=-1, keepdims=True)
        return x * lax.rsqrt(var + EPS) * w

    cosf = cos_ref[...]        # (T, QKV_OUT), ones over V columns
    sinf = sin_ref[...]        # (T, QKV_OUT), zeros over V columns
    rotf = rot_ref[...]        # (QKV_OUT, QKV_OUT) block-diag rotate_half, zero block over V
    mask = mask_ref[...]       # (NUM_HEADS*T, T) additive causal mask

    h = x_ref[...]             # hidden_states (embeddings)
    residual = None

    for l in range(NUM_LAYERS):                      # statically unrolled layer loop
        # ---- input layernorm (layer 0: residual = x; else fused add + rmsnorm) ----
        if residual is None:
            residual = h
            hn = rms(h, ln1_ref[l])
        else:
            residual = h + residual
            hn = rms(residual, ln1_ref[l])

        # ---- self attention ----
        # QKV proj (bias); SCALE pre-folded into the Q columns of wqkv/bqkv.
        qkv = jnp.dot(hn, wqkv_ref[l], preferred_element_type=jnp.float32) + bqkv_ref[l]
        # fused neox RoPE over the whole qkv slab (v untouched: cos=1, sin=0, rot block = 0)
        qkv = qkv * cosf + jnp.dot(qkv, rotf, preferred_element_type=jnp.float32) * sinf

        # per-head QK^T, stacked along sublanes so softmax runs once over all heads
        scores = []
        for hd in range(NUM_HEADS):
            kvidx = hd // GROUP
            qh = qkv[:, hd * HEAD_DIM:(hd + 1) * HEAD_DIM]                             # (T, D)
            kh = qkv[:, Q_SIZE + kvidx * HEAD_DIM:Q_SIZE + (kvidx + 1) * HEAD_DIM]     # (T, D)
            scores.append(jnp.einsum('qd,kd->qk', qh, kh,
                                     preferred_element_type=jnp.float32))              # (T, T)
        s = jnp.concatenate(scores, axis=0) + mask                                     # (H*T, T)
        m = jnp.max(s, axis=-1, keepdims=True)
        p = jnp.exp(s - m)
        denom = jnp.sum(p, axis=-1, keepdims=True)
        p = p * pl.reciprocal(denom, approx=True)

        # per-head (p @ v) accumulated straight through o_proj (no concat of head outputs)
        wo_l = wo_ref[l]                                                               # (Q, H)
        attn_out = jnp.zeros((SEQ, HIDDEN), jnp.float32)
        for hd in range(NUM_HEADS):
            kvidx = hd // GROUP
            ph = p[hd * SEQ:(hd + 1) * SEQ, :]                                         # (T, T)
            vh = qkv[:, Q_SIZE + KV_SIZE + kvidx * HEAD_DIM:
                     Q_SIZE + KV_SIZE + (kvidx + 1) * HEAD_DIM]                        # (T, D)
            oh = jnp.dot(ph, vh, preferred_element_type=jnp.float32)                   # (T, D)
            attn_out = attn_out + jnp.dot(
                oh, wo_l[hd * HEAD_DIM:(hd + 1) * HEAD_DIM, :],
                preferred_element_type=jnp.float32)                                    # (T, H)

        # ---- post-attention fused add + rmsnorm ----
        residual = attn_out + residual
        h2 = rms(residual, ln2_ref[l])

        # ---- MLP: down( silu(gate) * up ), gate_up packed ----
        gu = jnp.dot(h2, wgu_ref[l], preferred_element_type=jnp.float32)               # (T, 2I)
        gate = gu[:, :INTERMEDIATE]
        up = gu[:, INTERMEDIATE:]
        act = gate * jax.nn.sigmoid(gate) * up
        h = jnp.dot(act, wd_ref[l], preferred_element_type=jnp.float32)                # (T, H)

    # ---- final norm: out = rmsnorm(hidden + residual) ----
    o_ref[...] = rms(h + residual, fln_ref[...])


# ------------------------- pallas_call wrapper -------------------------
_NUM_INPUTS = 13
_vmem_spec = pl.BlockSpec(memory_space=pltpu.MemorySpace.VMEM)

_fused_call = pl.pallas_call(
    _qwen2_fused_kernel,
    out_shape=jax.ShapeDtypeStruct((SEQ, HIDDEN), jnp.float32),
    in_specs=[_vmem_spec] * _NUM_INPUTS,     # whole arrays resident in VMEM, single invocation
    out_specs=_vmem_spec,
)


# ------------------------- params / forward -------------------------
def init_params(key):
    key, k_emb = jax.random.split(key)
    params = {
        "embed_tokens": 0.02 * jax.random.normal(k_emb, (VOCAB, HIDDEN), jnp.float32),
        "final_norm_w": jnp.ones((1, HIDDEN), jnp.float32),
    }

    # RoPE cos/sin cache (neox, rotary_dim == head_dim), precomputed ONCE at init.
    inv_freq = 1.0 / (
        ROPE_THETA ** (jnp.arange(0, HEAD_DIM, 2, dtype=jnp.float32) / HEAD_DIM)
    )
    t = jnp.arange(MAX_POS, dtype=jnp.float32)
    freqs = t[:, None] * inv_freq[None, :]                         # (MAX_POS, D/2)
    params["cos_cache"] = jnp.concatenate([jnp.cos(freqs)] * 2, axis=-1)   # (MAX_POS, D)
    params["sin_cache"] = jnp.concatenate([jnp.sin(freqs)] * 2, axis=-1)

    # rotate_half (x -> concat([-x2, x1])) as x @ R, one (QKV_OUT x QKV_OUT) block-diagonal
    # matrix covering q and k heads, zero block over the v columns.
    blk = jnp.zeros((HEAD_DIM, HEAD_DIM), jnp.float32)
    blk = blk.at[HALF + jnp.arange(HALF), jnp.arange(HALF)].set(-1.0)
    blk = blk.at[jnp.arange(HALF), HALF + jnp.arange(HALF)].set(1.0)
    rot_q = jnp.kron(jnp.eye(NUM_HEADS, dtype=jnp.float32), blk)           # (Q_SIZE, Q_SIZE)
    rot_k = jnp.kron(jnp.eye(NUM_KV_HEADS, dtype=jnp.float32), blk)        # (KV_SIZE, KV_SIZE)
    rot_full = jnp.zeros((QKV_OUT, QKV_OUT), jnp.float32)
    rot_full = rot_full.at[:Q_SIZE, :Q_SIZE].set(rot_q)
    rot_full = rot_full.at[Q_SIZE:Q_SIZE + KV_SIZE, Q_SIZE:Q_SIZE + KV_SIZE].set(rot_k)
    params["rot_full"] = rot_full

    # Additive causal mask, pre-tiled over heads (sublane-stacked softmax slab).
    row = jnp.arange(SEQ, dtype=jnp.int32)[:, None]
    col = jnp.arange(SEQ, dtype=jnp.int32)[None, :]
    base = jnp.where(col <= row, 0.0, NEG_INF).astype(jnp.float32)
    params["causal_mask"] = jnp.tile(base, (NUM_HEADS, 1))                 # (H*T, T)

    # Per-layer weights stacked along a leading layer axis (whole arrays fit VMEM at this size).
    ks = jax.random.split(key, 5)

    def w(k, shape):
        return 0.02 * jax.random.normal(k, shape, jnp.float32)

    params["input_ln_w"] = jnp.ones((NUM_LAYERS, 1, HIDDEN), jnp.float32)
    params["post_ln_w"] = jnp.ones((NUM_LAYERS, 1, HIDDEN), jnp.float32)

    w_qkv = w(ks[0], (NUM_LAYERS, HIDDEN, QKV_OUT))        # stored (In, Out)
    b_qkv = w(ks[1], (NUM_LAYERS, 1, QKV_OUT))
    # Fold the attention scale 1/sqrt(head_dim) into the Q columns (RoPE is linear, so folding
    # before rotation is exact).
    col_scale = jnp.concatenate(
        [jnp.full((Q_SIZE,), SCALE, jnp.float32), jnp.ones((2 * KV_SIZE,), jnp.float32)])
    params["w_qkv"] = w_qkv * col_scale
    params["b_qkv"] = b_qkv * col_scale

    params["w_o"] = w(ks[2], (NUM_LAYERS, Q_SIZE, HIDDEN))
    params["w_gate_up"] = w(ks[3], (NUM_LAYERS, HIDDEN, 2 * INTERMEDIATE))
    params["w_down"] = w(ks[4], (NUM_LAYERS, INTERMEDIATE, HIDDEN))
    return params


@jax.jit
def qwen2_forward(params, input_ids, positions):
    # Embedding lookup + per-position cos/sin gather are tiny XLA glue ops.
    x = params["embed_tokens"][input_ids]            # (T, H)
    cos = params["cos_cache"][positions]             # (T, D)
    sin = params["sin_cache"][positions]
    T = x.shape[0]
    # cos/sin tiled across q and kv heads; identity (cos=1, sin=0) over the v columns so the
    # fused RoPE matmul leaves v untouched.
    cos_full = jnp.concatenate(
        [jnp.tile(cos, (1, NUM_HEADS)), jnp.tile(cos, (1, NUM_KV_HEADS)),
         jnp.ones((T, KV_SIZE), jnp.float32)], axis=-1)              # (T, QKV_OUT)
    sin_full = jnp.concatenate(
        [jnp.tile(sin, (1, NUM_HEADS)), jnp.tile(sin, (1, NUM_KV_HEADS)),
         jnp.zeros((T, KV_SIZE), jnp.float32)], axis=-1)             # (T, QKV_OUT)

    return _fused_call(
        x, cos_full, sin_full, params["rot_full"], params["causal_mask"],
        params["input_ln_w"], params["w_qkv"], params["b_qkv"], params["w_o"],
        params["post_ln_w"], params["w_gate_up"], params["w_down"],
        params["final_norm_w"],
    )


# TODO(synk): tensor-parallel collectives (all_gather / reduce_scatter / all_reduce) and the
# flashcomm_v1 padding path are identities at tp_size == 1 and are not emulated across devices.
# TODO(synk): lm_head / logits_processor are not part of CustomQwen2ForCausalLM.forward (it
# returns hidden states), so they are intentionally not implemented here.

if __name__ == "__main__":
    key = jax.random.PRNGKey(0)
    key, k_ids = jax.random.split(key)
    params = init_params(key)
    input_ids = jax.random.randint(k_ids, (SEQ,), 0, VOCAB, dtype=jnp.int32)
    positions = jnp.arange(SEQ, dtype=jnp.int32)

    out = qwen2_forward(params, input_ids, positions)
    out = jax.block_until_ready(out)

    assert out.shape == (SEQ, HIDDEN), out.shape
    assert bool(jnp.all(jnp.isfinite(out)))
    print("KERNEL_OK")
</pallas_src>

<mosaic_0001>
module attributes {stable_mosaic.version = 11 : i64} {
  func.func @_qwen2_fused_kernel(%arg0: memref<8x64xf32, #tpu.memory_space<vmem>>, %arg1: memref<8x128xf32, #tpu.memory_space<vmem>>, %arg2: memref<8x128xf32, #tpu.memory_space<vmem>>, %arg3: memref<128x128xf32, #tpu.memory_space<vmem>>, %arg4: memref<32x8xf32, #tpu.memory_space<vmem>>, %arg5: memref<2x1x64xf32, #tpu.memory_space<vmem>>, %arg6: memref<2x64x128xf32, #tpu.memory_space<vmem>>, %arg7: memref<2x1x128xf32, #tpu.memory_space<vmem>>, %arg8: memref<2x64x64xf32, #tpu.memory_space<vmem>>, %arg9: memref<2x1x64xf32, #tpu.memory_space<vmem>>, %arg10: memref<2x64x256xf32, #tpu.memory_space<vmem>>, %arg11: memref<2x128x64xf32, #tpu.memory_space<vmem>>, %arg12: memref<1x64xf32, #tpu.memory_space<vmem>>, %arg13: memref<8x64xf32, #tpu.memory_space<vmem>>) attributes {dimension_semantics = [], scalar_prefetch = 0 : i64, scratch_operands = 0 : i64, tpu.core_type = #tpu.core_type<tc>} {
    %c0 = arith.constant 0 : index
    %c0_0 = arith.constant 0 : index
    %0 = vector.load %arg1[%c0, %c0_0] : memref<8x128xf32, #tpu.memory_space<vmem>>, vector<8x128xf32>
    %c0_1 = arith.constant 0 : index
    %c0_2 = arith.constant 0 : index
    %1 = vector.load %arg2[%c0_1, %c0_2] : memref<8x128xf32, #tpu.memory_space<vmem>>, vector<8x128xf32>
    %c0_3 = arith.constant 0 : index
    %c0_4 = arith.constant 0 : index
    %2 = vector.load %arg3[%c0_3, %c0_4] : memref<128x128xf32, #tpu.memory_space<vmem>>, vector<128x128xf32>
    %c0_5 = arith.constant 0 : index
    %c0_6 = arith.constant 0 : index
    %3 = vector.load %arg4[%c0_5, %c0_6] : memref<32x8xf32, #tpu.memory_space<vmem>>, vector<32x8xf32>
    %c0_7 = arith.constant 0 : index
    %c0_8 = arith.constant 0 : index
    %4 = vector.load %arg0[%c0_7, %c0_8] : memref<8x64xf32, #tpu.memory_space<vmem>>, vector<8x64xf32>
    %c0_9 = arith.constant 0 : index
    %c0_10 = arith.constant 0 : index
    %c0_11 = arith.constant 0 : index
    %5 = vector.load %arg5[%c0_9, %c0_10, %c0_11] : memref<2x1x64xf32, #tpu.memory_space<vmem>>, vector<1x1x64xf32>
    %6 = vector.shape_cast %5 : vector<1x1x64xf32> to vector<1x64xf32>
    %7 = arith.mulf %4, %4 : vector<8x64xf32>
    %cst = arith.constant dense<0.000000e+00> : vector<8xf32>
    %8 = vector.multi_reduction <add>, %7, %cst [1] : vector<8x64xf32> to vector<8xf32>
    %9 = vector.shape_cast %8 : vector<8xf32> to vector<8x1xf32>
    %cst_12 = arith.constant 6.400000e+01 : f32
    %10 = vector.broadcast %cst_12 : f32 to vector<8x1xf32>
    %11 = arith.divf %9, %10 : vector<8x1xf32>
    %cst_13 = arith.constant 9.99999997E-7 : f32
    %12 = vector.broadcast %cst_13 : f32 to vector<8x1xf32>
    %13 = arith.addf %11, %12 : vector<8x1xf32>
    %14 = math.rsqrt %13 : vector<8x1xf32>
    %15 = vector.broadcast %14 : vector<8x1xf32> to vector<8x64xf32>
    %16 = arith.mulf %4, %15 : vector<8x64xf32>
    %17 = vector.broadcast %6 : vector<1x64xf32> to vector<8x64xf32>
    %18 = arith.mulf %16, %17 : vector<8x64xf32>
    %c0_14 = arith.constant 0 : index
    %c0_15 = arith.constant 0 : index
    %c0_16 = arith.constant 0 : index
    %19 = vector.load %arg6[%c0_14, %c0_15, %c0_16] : memref<2x64x128xf32, #tpu.memory_space<vmem>>, vector<1x64x128xf32>
    %20 = vector.shape_cast %19 : vector<1x64x128xf32> to vector<64x128xf32>
    %cst_17 = arith.constant dense<0.000000e+00> : vector<8x128xf32>
    %21 = tpu.matmul %18, %20, %cst_17 {dimension_numbers = #tpu.dot_dimension_numbers<[1], [0], [0], [1], [0, 0, 1, 1], [], []>} : vector<8x64xf32>, vector<64x128xf32>, vector<8x128xf32> -> vector<8x128xf32>
    %c0_18 = arith.constant 0 : index
    %c0_19 = arith.constant 0 : index
    %c0_20 = arith.constant 0 : index
    %22 = vector.load %arg7[%c0_18, %c0_19, %c0_20] : memref<2x1x128xf32, #tpu.memory_space<vmem>>, vector<1x1x128xf32>
    %23 = vector.shape_cast %22 : vector<1x1x128xf32> to vector<1x128xf32>
    %24 = vector.broadcast %23 : vector<1x128xf32> to vector<8x128xf32>
    %25 = arith.addf %21, %24 : vector<8x128xf32>
    %26 = arith.mulf %25, %0 : vector<8x128xf32>
    %cst_21 = arith.constant dense<0.000000e+00> : vector<8x128xf32>
    %27 = tpu.matmul %25, %2, %cst_21 {dimension_numbers = #tpu.dot_dimension_numbers<[1], [0], [0], [1], [0, 0, 1, 1], [], []>} : vector<8x128xf32>, vector<128x128xf32>, vector<8x128xf32> -> vector<8x128xf32>
    %28 = arith.mulf %27, %1 : vector<8x128xf32>
    %29 = arith.addf %26, %28 : vector<8x128xf32>
    %30 = vector.extract_strided_slice %29 {offsets = [0, 0], sizes = [8, 16], strides = [1, 1]} : vector<8x128xf32> to vector<8x16xf32>
    %31 = vector.extract_strided_slice %29 {offsets = [0, 64], sizes = [8, 16], strides = [1, 1]} : vector<8x128xf32> to vector<8x16xf32>
    "tpu.trace_start"() <{level = 10 : i32, message = "qd,kd->qk"}> : () -> ()
    %cst_22 = arith.constant dense<0.000000e+00> : vector<8x8xf32>
    %32 = tpu.matmul %30, %31, %cst_22 {dimension_numbers = #tpu.dot_dimension_numbers<[1], [1], [0], [0], [0, 0, 1, 0], [], []>} : vector<8x16xf32>, vector<8x16xf32>, vector<8x8xf32> -> vector<8x8xf32>
    "tpu.trace_stop"() : () -> ()
    %33 = vector.extract_strided_slice %29 {offsets = [0, 16], sizes = [8, 16], strides = [1, 1]} : vector<8x128xf32> to vector<8x16xf32>
    %34 = vector.extract_strided_slice %29 {offsets = [0, 64], sizes = [8, 16], strides = [1, 1]} : vector<8x128xf32> to vector<8x16xf32>
    "tpu.trace_start"() <{level = 10 : i32, message = "qd,kd->qk"}> : () -> ()
    %cst_23 = arith.constant dense<0.000000e+00> : vector<8x8xf32>
    %35 = tpu.matmul %33, %34, %cst_23 {dimension_numbers = #tpu.dot_dimension_numbers<[1], [1], [0], [0], [0, 0, 1, 0], [], []>} : vector<8x16xf32>, vector<8x16xf32>, vector<8x8xf32> -> vector<8x8xf32>
    "tpu.trace_stop"() : () -> ()
    %36 = vector.extract_strided_slice %29 {offsets = [0, 32], sizes = [8, 16], strides = [1, 1]} : vector<8x128xf32> to vector<8x16xf32>
    %37 = vector.extract_strided_slice %29 {offsets = [0, 80], sizes = [8, 16], strides = [1, 1]} : vector<8x128xf32> to vector<8x16xf32>
    "tpu.trace_start"() <{level = 10 : i32, message = "qd,kd->qk"}> : () -> ()
    %cst_24 = arith.constant dense<0.000000e+00> : vector<8x8xf32>
    %38 = tpu.matmul %36, %37, %cst_24 {dimension_numbers = #tpu.dot_dimension_numbers<[1], [1], [0], [0], [0, 0, 1, 0], [], []>} : vector<8x16xf32>, vector<8x16xf32>, vector<8x8xf32> -> vector<8x8xf32>
    "tpu.trace_stop"() : () -> ()
    %39 = vector.extract_strided_slice %29 {offsets = [0, 48], sizes = [8, 16], strides = [1, 1]} : vector<8x128xf32> to vector<8x16xf32>
    %40 = vector.extract_strided_slice %29 {offsets = [0, 80], sizes = [8, 16], strides = [1, 1]} : vector<8x128xf32> to vector<8x16xf32>
    "tpu.trace_start"() <{level = 10 : i32, message = "qd,kd->qk"}> : () -> ()
    %cst_25 = arith.constant dense<0.000000e+00> : vector<8x8xf32>
    %41 = tpu.matmul %39, %40, %cst_25 {dimension_numbers = #tpu.dot_dimension_numbers<[1], [1], [0], [0], [0, 0, 1, 0], [], []>} : vector<8x16xf32>, vector<8x16xf32>, vector<8x8xf32> -> vector<8x8xf32>
    "tpu.trace_stop"() : () -> ()
    %42 = tpu.concatenate %32, %35, %38, %41 in 0 : vector<8x8xf32>, vector<8x8xf32>, vector<8x8xf32>, vector<8x8xf32> -> vector<32x8xf32>
    %43 = arith.addf %42, %3 : vector<32x8xf32>
    %cst_26 = arith.constant dense<0xFF800000> : vector<32xf32>
    %44 = vector.multi_reduction <maximumf>, %43, %cst_26 [1] : vector<32x8xf32> to vector<32xf32>
    %45 = vector.shape_cast %44 : vector<32xf32> to vector<32x1xf32>
    %46 = vector.broadcast %45 : vector<32x1xf32> to vector<32x8xf32>
    %47 = arith.subf %43, %46 : vector<32x8xf32>
    %48 = math.exp %47 : vector<32x8xf32>
    %cst_27 = arith.constant dense<0.000000e+00> : vector<32xf32>
    %49 = vector.multi_reduction <add>, %48, %cst_27 [1] : vector<32x8xf32> to vector<32xf32>
    %50 = vector.shape_cast %49 : vector<32xf32> to vector<32x1xf32>
    %51 = tpu.reciprocal %50 {approx = true} : vector<32x1xf32> -> vector<32x1xf32>
    %52 = vector.broadcast %51 : vector<32x1xf32> to vector<32x8xf32>
    %53 = arith.mulf %48, %52 : vector<32x8xf32>
    %c0_28 = arith.constant 0 : index
    %c0_29 = arith.constant 0 : index
    %c0_30 = arith.constant 0 : index
    %54 = vector.load %arg8[%c0_28, %c0_29, %c0_30] : memref<2x64x64xf32, #tpu.memory_space<vmem>>, vector<1x64x64xf32>
    %55 = vector.shape_cast %54 : vector<1x64x64xf32> to vector<64x64xf32>
    %cst_31 = arith.constant 0.000000e+00 : f32
    %56 = vector.broadcast %cst_31 : f32 to vector<8x64xf32>
    %57 = vector.extract_strided_slice %53 {offsets = [0, 0], sizes = [8, 8], strides = [1, 1]} : vector<32x8xf32> to vector<8x8xf32>
    %58 = vector.extract_strided_slice %29 {offsets = [0, 96], sizes = [8, 16], strides = [1, 1]} : vector<8x128xf32> to vector<8x16xf32>
    %cst_32 = arith.constant dense<0.000000e+00> : vector<8x16xf32>
    %59 = tpu.matmul %57, %58, %cst_32 {dimension_numbers = #tpu.dot_dimension_numbers<[1], [0], [0], [1], [0, 0, 1, 1], [], []>} : vector<8x8xf32>, vector<8x16xf32>, vector<8x16xf32> -> vector<8x16xf32>
    %60 = vector.extract_strided_slice %55 {offsets = [0, 0], sizes = [16, 64], strides = [1, 1]} : vector<64x64xf32> to vector<16x64xf32>
    %cst_33 = arith.constant dense<0.000000e+00> : vector<8x64xf32>
    %61 = tpu.matmul %59, %60, %cst_33 {dimension_numbers = #tpu.dot_dimension_numbers<[1], [0], [0], [1], [0, 0, 1, 1], [], []>} : vector<8x16xf32>, vector<16x64xf32>, vector<8x64xf32> -> vector<8x64xf32>
    %62 = arith.addf %56, %61 : vector<8x64xf32>
    %63 = vector.extract_strided_slice %53 {offsets = [8, 0], sizes = [8, 8], strides = [1, 1]} : vector<32x8xf32> to vector<8x8xf32>
    %64 = vector.extract_strided_slice %29 {offsets = [0, 96], sizes = [8, 16], strides = [1, 1]} : vector<8x128xf32> to vector<8x16xf32>
    %cst_34 = arith.constant dense<0.000000e+00> : vector<8x16xf32>
    %65 = tpu.matmul %63, %64, %cst_34 {dimension_numbers = #tpu.dot_dimension_numbers<[1], [0], [0], [1], [0, 0, 1, 1], [], []>} : vector<8x8xf32>, vector<8x16xf32>, vector<8x16xf32> -> vector<8x16xf32>
    %66 = vector.extract_strided_slice %55 {offsets = [16, 0], sizes = [16, 64], strides = [1, 1]} : vector<64x64xf32> to vector<16x64xf32>
    %cst_35 = arith.constant dense<0.000000e+00> : vector<8x64xf32>
    %67 = tpu.matmul %65, %66, %cst_35 {dimension_numbers = #tpu.dot_dimension_numbers<[1], [0], [0], [1], [0, 0, 1, 1], [], []>} : vector<8x16xf32>, vector<16x64xf32>, vector<8x64xf32> -> vector<8x64xf32>
    %68 = arith.addf %62, %67 : vector<8x64xf32>
    %69 = vector.extract_strided_slice %53 {offsets = [16, 0], sizes = [8, 8], strides = [1, 1]} : vector<32x8xf32> to vector<8x8xf32>
    %70 = vector.extract_strided_slice %29 {offsets = [0, 112], sizes = [8, 16], strides = [1, 1]} : vector<8x128xf32> to vector<8x16xf32>
    %cst_36 = arith.constant dense<0.000000e+00> : vector<8x16xf32>
    %71 = tpu.matmul %69, %70, %cst_36 {dimension_numbers = #tpu.dot_dimension_numbers<[1], [0], [0], [1], [0, 0, 1, 1], [], []>} : vector<8x8xf32>, vector<8x16xf32>, vector<8x16xf32> -> vector<8x16xf32>
    %72 = vector.extract_strided_slice %55 {offsets = [32, 0], sizes = [16, 64], strides = [1, 1]} : vector<64x64xf32> to vector<16x64xf32>
    %cst_37 = arith.constant dense<0.000000e+00> : vector<8x64xf32>
    %73 = tpu.matmul %71, %72, %cst_37 {dimension_numbers = #tpu.dot_dimension_numbers<[1], [0], [0], [1], [0, 0, 1, 1], [], []>} : vector<8x16xf32>, vector<16x64xf32>, vector<8x64xf32> -> vector<8x64xf32>
    %74 = arith.addf %68, %73 : vector<8x64xf32>
    %75 = vector.extract_strided_slice %53 {offsets = [24, 0], sizes = [8, 8], strides = [1, 1]} : vector<32x8xf32> to vector<8x8xf32>
    %76 = vector.extract_strided_slice %29 {offsets = [0, 112], sizes = [8, 16], strides = [1, 1]} : vector<8x128xf32> to vector<8x16xf32>
    %cst_38 = arith.constant dense<0.000000e+00> : vector<8x16xf32>
    %77 = tpu.matmul %75, %76, %cst_38 {dimension_numbers = #tpu.dot_dimension_numbers<[1], [0], [0], [1], [0, 0, 1, 1], [], []>} : vector<8x8xf32>, vector<8x16xf32>, vector<8x16xf32> -> vector<8x16xf32>
    %78 = vector.extract_strided_slice %55 {offsets = [48, 0], sizes = [16, 64], strides = [1, 1]} : vector<64x64xf32> to vector<16x64xf32>
    %cst_39 = arith.constant dense<0.000000e+00> : vector<8x64xf32>
    %79 = tpu.matmul %77, %78, %cst_39 {dimension_numbers = #tpu.dot_dimension_numbers<[1], [0], [0], [1], [0, 0, 1, 1], [], []>} : vector<8x16xf32>, vector<16x64xf32>, vector<8x64xf32> -> vector<8x64xf32>
    %80 = arith.addf %74, %79 : vector<8x64xf32>
    %81 = arith.addf %80, %4 : vector<8x64xf32>
    %c0_40 = arith.constant 0 : index
    %c0_41 = arith.constant 0 : index
    %c0_42 = arith.constant 0 : index
    %82 = vector.load %arg9[%c0_40, %c0_41, %c0_42] : memref<2x1x64xf32, #tpu.memory_space<vmem>>, vector<1x1x64xf32>
    %83 = vector.shape_cast %82 : vector<1x1x64xf32> to vector<1x64xf32>
    %84 = arith.mulf %81, %81 : vector<8x64xf32>
    %cst_43 = arith.constant dense<0.000000e+00> : vector<8xf32>
    %85 = vector.multi_reduction <add>, %84, %cst_43 [1] : vector<8x64xf32> to vector<8xf32>
    %86 = vector.shape_cast %85 : vector<8xf32> to vector<8x1xf32>
    %cst_44 = arith.constant 6.400000e+01 : f32
    %87 = vector.broadcast %cst_44 : f32 to vector<8x1xf32>
    %88 = arith.divf %86, %87 : vector<8x1xf32>
    %cst_45 = arith.constant 9.99999997E-7 : f32
    %89 = vector.broadcast %cst_45 : f32 to vector<8x1xf32>
    %90 = arith.addf %88, %89 : vector<8x1xf32>
    %91 = math.rsqrt %90 : vector<8x1xf32>
    %92 = vector.broadcast %91 : vector<8x1xf32> to vector<8x64xf32>
    %93 = arith.mulf %81, %92 : vector<8x64xf32>
    %94 = vector.broadcast %83 : vector<1x64xf32> to vector<8x64xf32>
    %95 = arith.mulf %93, %94 : vector<8x64xf32>
    %c0_46 = arith.constant 0 : index
    %c0_47 = arith.constant 0 : index
    %c0_48 = arith.constant 0 : index
    %96 = vector.load %arg10[%c0_46, %c0_47, %c0_48] : memref<2x64x256xf32, #tpu.memory_space<vmem>>, vector<1x64x256xf32>
    %97 = vector.shape_cast %96 : vector<1x64x256xf32> to vector<64x256xf32>
    %cst_49 = arith.constant dense<0.000000e+00> : vector<8x256xf32>
    %98 = tpu.matmul %95, %97, %cst_49 {dimension_numbers = #tpu.dot_dimension_numbers<[1], [0], [0], [1], [0, 0, 1, 1], [], []>} : vector<8x64xf32>, vector<64x256xf32>, vector<8x256xf32> -> vector<8x256xf32>
    %99 = vector.extract_strided_slice %98 {offsets = [0, 0], sizes = [8, 128], strides = [1, 1]} : vector<8x256xf32> to vector<8x128xf32>
    %100 = vector.extract_strided_slice %98 {offsets = [0, 128], sizes = [8, 128], strides = [1, 1]} : vector<8x256xf32> to vector<8x128xf32>
    %101 = arith.negf %99 : vector<8x128xf32>
    %102 = math.exp %101 : vector<8x128xf32>
    %cst_50 = arith.constant 1.000000e+00 : f32
    %103 = vector.broadcast %cst_50 : f32 to vector<8x128xf32>
    %104 = arith.addf %103, %102 : vector<8x128xf32>
    %105 = arith.divf %103, %104 : vector<8x128xf32>
    %106 = arith.mulf %99, %105 : vector<8x128xf32>
    %107 = arith.mulf %106, %100 : vector<8x128xf32>
    %c0_51 = arith.constant 0 : index
    %c0_52 = arith.constant 0 : index
    %c0_53 = arith.constant 0 : index
    %108 = vector.load %arg11[%c0_51, %c0_52, %c0_53] : memref<2x128x64xf32, #tpu.memory_space<vmem>>, vector<1x128x64xf32>
    %109 = vector.shape_cast %108 : vector<1x128x64xf32> to vector<128x64xf32>
    %cst_54 = arith.constant dense<0.000000e+00> : vector<8x64xf32>
    %110 = tpu.matmul %107, %109, %cst_54 {dimension_numbers = #tpu.dot_dimension_numbers<[1], [0], [0], [1], [0, 0, 1, 1], [], []>} : vector<8x128xf32>, vector<128x64xf32>, vector<8x64xf32> -> vector<8x64xf32>
    %111 = arith.addf %110, %81 : vector<8x64xf32>
    %c1 = arith.constant 1 : index
    %c0_55 = arith.constant 0 : index
    %c0_56 = arith.constant 0 : index
    %112 = vector.load %arg5[%c1, %c0_55, %c0_56] : memref<2x1x64xf32, #tpu.memory_space<vmem>>, vector<1x1x64xf32>
    %113 = vector.shape_cast %112 : vector<1x1x64xf32> to vector<1x64xf32>
    %114 = arith.mulf %111, %111 : vector<8x64xf32>
    %cst_57 = arith.constant dense<0.000000e+00> : vector<8xf32>
    %115 = vector.multi_reduction <add>, %114, %cst_57 [1] : vector<8x64xf32> to vector<8xf32>
    %116 = vector.shape_cast %115 : vector<8xf32> to vector<8x1xf32>
    %cst_58 = arith.constant 6.400000e+01 : f32
    %117 = vector.broadcast %cst_58 : f32 to vector<8x1xf32>
    %118 = arith.divf %116, %117 : vector<8x1xf32>
    %cst_59 = arith.constant 9.99999997E-7 : f32
    %119 = vector.broadcast %cst_59 : f32 to vector<8x1xf32>
    %120 = arith.addf %118, %119 : vector<8x1xf32>
    %121 = math.rsqrt %120 : vector<8x1xf32>
    %122 = vector.broadcast %121 : vector<8x1xf32> to vector<8x64xf32>
    %123 = arith.mulf %111, %122 : vector<8x64xf32>
    %124 = vector.broadcast %113 : vector<1x64xf32> to vector<8x64xf32>
    %125 = arith.mulf %123, %124 : vector<8x64xf32>
    %c1_60 = arith.constant 1 : index
    %c0_61 = arith.constant 0 : index
    %c0_62 = arith.constant 0 : index
    %126 = vector.load %arg6[%c1_60, %c0_61, %c0_62] : memref<2x64x128xf32, #tpu.memory_space<vmem>>, vector<1x64x128xf32>
    %127 = vector.shape_cast %126 : vector<1x64x128xf32> to vector<64x128xf32>
    %cst_63 = arith.constant dense<0.000000e+00> : vector<8x128xf32>
    %128 = tpu.matmul %125, %127, %cst_63 {dimension_numbers = #tpu.dot_dimension_numbers<[1], [0], [0], [1], [0, 0, 1, 1], [], []>} : vector<8x64xf32>, vector<64x128xf32>, vector<8x128xf32> -> vector<8x128xf32>
    %c1_64 = arith.constant 1 : index
    %c0_65 = arith.constant 0 : index
    %c0_66 = arith.constant 0 : index
    %129 = vector.load %arg7[%c1_64, %c0_65, %c0_66] : memref<2x1x128xf32, #tpu.memory_space<vmem>>, vector<1x1x128xf32>
    %130 = vector.shape_cast %129 : vector<1x1x128xf32> to vector<1x128xf32>
    %131 = vector.broadcast %130 : vector<1x128xf32> to vector<8x128xf32>
    %132 = arith.addf %128, %131 : vector<8x128xf32>
    %133 = arith.mulf %132, %0 : vector<8x128xf32>
    %cst_67 = arith.constant dense<0.000000e+00> : vector<8x128xf32>
    %134 = tpu.matmul %132, %2, %cst_67 {dimension_numbers = #tpu.dot_dimension_numbers<[1], [0], [0], [1], [0, 0, 1, 1], [], []>} : vector<8x128xf32>, vector<128x128xf32>, vector<8x128xf32> -> vector<8x128xf32>
    %135 = arith.mulf %134, %1 : vector<8x128xf32>
    %136 = arith.addf %133, %135 : vector<8x128xf32>
    %137 = vector.extract_strided_slice %136 {offsets = [0, 0], sizes = [8, 16], strides = [1, 1]} : vector<8x128xf32> to vector<8x16xf32>
    %138 = vector.extract_strided_slice %136 {offsets = [0, 64], sizes = [8, 16], strides = [1, 1]} : vector<8x128xf32> to vector<8x16xf32>
    "tpu.trace_start"() <{level = 10 : i32, message = "qd,kd->qk"}> : () -> ()
    %cst_68 = arith.constant dense<0.000000e+00> : vector<8x8xf32>
    %139 = tpu.matmul %137, %138, %cst_68 {dimension_numbers = #tpu.dot_dimension_numbers<[1], [1], [0], [0], [0, 0, 1, 0], [], []>} : vector<8x16xf32>, vector<8x16xf32>, vector<8x8xf32> -> vector<8x8xf32>
    "tpu.trace_stop"() : () -> ()
    %140 = vector.extract_strided_slice %136 {offsets = [0, 16], sizes = [8, 16], strides = [1, 1]} : vector<8x128xf32> to vector<8x16xf32>
    %141 = vector.extract_strided_slice %136 {offsets = [0, 64], sizes = [8, 16], strides = [1, 1]} : vector<8x128xf32> to vector<8x16xf32>
    "tpu.trace_start"() <{level = 10 : i32, message = "qd,kd->qk"}> : () -> ()
    %cst_69 = arith.constant dense<0.000000e+00> : vector<8x8xf32>
    %142 = tpu.matmul %140, %141, %cst_69 {dimension_numbers = #tpu.dot_dimension_numbers<[1], [1], [0], [0], [0, 0, 1, 0], [], []>} : vector<8x16xf32>, vector<8x16xf32>, vector<8x8xf32> -> vector<8x8xf32>
    "tpu.trace_stop"() : () -> ()
    %143 = vector.extract_strided_slice %136 {offsets = [0, 32], sizes = [8, 16], strides = [1, 1]} : vector<8x128xf32> to vector<8x16xf32>
    %144 = vector.extract_strided_slice %136 {offsets = [0, 80], sizes = [8, 16], strides = [1, 1]} : vector<8x128xf32> to vector<8x16xf32>
    "tpu.trace_start"() <{level = 10 : i32, message = "qd,kd->qk"}> : () -> ()
    %cst_70 = arith.constant dense<0.000000e+00> : vector<8x8xf32>
    %145 = tpu.matmul %143, %144, %cst_70 {dimension_numbers = #tpu.dot_dimension_numbers<[1], [1], [0], [0], [0, 0, 1, 0], [], []>} : vector<8x16xf32>, vector<8x16xf32>, vector<8x8xf32> -> vector<8x8xf32>
    "tpu.trace_stop"() : () -> ()
    %146 = vector.extract_strided_slice %136 {offsets = [0, 48], sizes = [8, 16], strides = [1, 1]} : vector<8x128xf32> to vector<8x16xf32>
    %147 = vector.extract_strided_slice %136 {offsets = [0, 80], sizes = [8, 16], strides = [1, 1]} : vector<8x128xf32> to vector<8x16xf32>
    "tpu.trace_start"() <{level = 10 : i32, message = "qd,kd->qk"}> : () -> ()
    %cst_71 = arith.constant dense<0.000000e+00> : vector<8x8xf32>
    %148 = tpu.matmul %146, %147, %cst_71 {dimension_numbers = #tpu.dot_dimension_numbers<[1], [1], [0], [0], [0, 0, 1, 0], [], []>} : vector<8x16xf32>, vector<8x16xf32>, vector<8x8xf32> -> vector<8x8xf32>
    "tpu.trace_stop"() : () -> ()
    %149 = tpu.concatenate %139, %142, %145, %148 in 0 : vector<8x8xf32>, vector<8x8xf32>, vector<8x8xf32>, vector<8x8xf32> -> vector<32x8xf32>
    %150 = arith.addf %149, %3 : vector<32x8xf32>
    %cst_72 = arith.constant dense<0xFF800000> : vector<32xf32>
    %151 = vector.multi_reduction <maximumf>, %150, %cst_72 [1] : vector<32x8xf32> to vector<32xf32>
    %152 = vector.shape_cast %151 : vector<32xf32> to vector<32x1xf32>
    %153 = vector.broadcast %152 : vector<32x1xf32> to vector<32x8xf32>
    %154 = arith.subf %150, %153 : vector<32x8xf32>
    %155 = math.exp %154 : vector<32x8xf32>
    %cst_73 = arith.constant dense<0.000000e+00> : vector<32xf32>
    %156 = vector.multi_reduction <add>, %155, %cst_73 [1] : vector<32x8xf32> to vector<32xf32>
    %157 = vector.shape_cast %156 : vector<32xf32> to vector<32x1xf32>
    %158 = tpu.reciprocal %157 {approx = true} : vector<32x1xf32> -> vector<32x1xf32>
    %159 = vector.broadcast %158 : vector<32x1xf32> to vector<32x8xf32>
    %160 = arith.mulf %155, %159 : vector<32x8xf32>
    %c1_74 = arith.constant 1 : index
    %c0_75 = arith.constant 0 : index
    %c0_76 = arith.constant 0 : index
    %161 = vector.load %arg8[%c1_74, %c0_75, %c0_76] : memref<2x64x64xf32, #tpu.memory_space<vmem>>, vector<1x64x64xf32>
    %162 = vector.shape_cast %161 : vector<1x64x64xf32> to vector<64x64xf32>
    %cst_77 = arith.constant 0.000000e+00 : f32
    %163 = vector.broadcast %cst_77 : f32 to vector<8x64xf32>
    %164 = vector.extract_strided_slice %160 {offsets = [0, 0], sizes = [8, 8], strides = [1, 1]} : vector<32x8xf32> to vector<8x8xf32>
    %165 = vector.extract_strided_slice %136 {offsets = [0, 96], sizes = [8, 16], strides = [1, 1]} : vector<8x128xf32> to vector<8x16xf32>
    %cst_78 = arith.constant dense<0.000000e+00> : vector<8x16xf32>
    %166 = tpu.matmul %164, %165, %cst_78 {dimension_numbers = #tpu.dot_dimension_numbers<[1], [0], [0], [1], [0, 0, 1, 1], [], []>} : vector<8x8xf32>, vector<8x16xf32>, vector<8x16xf32> -> vector<8x16xf32>
    %167 = vector.extract_strided_slice %162 {offsets = [0, 0], sizes = [16, 64], strides = [1, 1]} : vector<64x64xf32> to vector<16x64xf32>
    %cst_79 = arith.constant dense<0.000000e+00> : vector<8x64xf32>
    %168 = tpu.matmul %166, %167, %cst_79 {dimension_numbers = #tpu.dot_dimension_numbers<[1], [0], [0], [1], [0, 0, 1, 1], [], []>} : vector<8x16xf32>, vector<16x64xf32>, vector<8x64xf32> -> vector<8x64xf32>
    %169 = arith.addf %163, %168 : vector<8x64xf32>
    %170 = vector.extract_strided_slice %160 {offsets = [8, 0], sizes = [8, 8], strides = [1, 1]} : vector<32x8xf32> to vector<8x8xf32>
    %171 = vector.extract_strided_slice %136 {offsets = [0, 96], sizes = [8, 16], strides = [1, 1]} : vector<8x128xf32> to vector<8x16xf32>
    %cst_80 = arith.constant dense<0.000000e+00> : vector<8x16xf32>
    %172 = tpu.matmul %170, %171, %cst_80 {dimension_numbers = #tpu.dot_dimension_numbers<[1], [0], [0], [1], [0, 0, 1, 1], [], []>} : vector<8x8xf32>, vector<8x16xf32>, vector<8x16xf32> -> vector<8x16xf32>
    %173 = vector.extract_strided_slice %162 {offsets = [16, 0], sizes = [16, 64], strides = [1, 1]} : vector<64x64xf32> to vector<16x64xf32>
    %cst_81 = arith.constant dense<0.000000e+00> : vector<8x64xf32>
    %174 = tpu.matmul %172, %173, %cst_81 {dimension_numbers = #tpu.dot_dimension_numbers<[1], [0], [0], [1], [0, 0, 1, 1], [], []>} : vector<8x16xf32>, vector<16x64xf32>, vector<8x64xf32> -> vector<8x64xf32>
    %175 = arith.addf %169, %174 : vector<8x64xf32>
    %176 = vector.extract_strided_slice %160 {offsets = [16, 0], sizes = [8, 8], strides = [1, 1]} : vector<32x8xf32> to vector<8x8xf32>
    %177 = vector.extract_strided_slice %136 {offsets = [0, 112], sizes = [8, 16], strides = [1, 1]} : vector<8x128xf32> to vector<8x16xf32>
    %cst_82 = arith.constant dense<0.000000e+00> : vector<8x16xf32>
    %178 = tpu.matmul %176, %177, %cst_82 {dimension_numbers = #tpu.dot_dimension_numbers<[1], [0], [0], [1], [0, 0, 1, 1], [], []>} : vector<8x8xf32>, vector<8x16xf32>, vector<8x16xf32> -> vector<8x16xf32>
    %179 = vector.extract_strided_slice %162 {offsets = [32, 0], sizes = [16, 64], strides = [1, 1]} : vector<64x64xf32> to vector<16x64xf32>
    %cst_83 = arith.constant dense<0.000000e+00> : vector<8x64xf32>
    %180 = tpu.matmul %178, %179, %cst_83 {dimension_numbers = #tpu.dot_dimension_numbers<[1], [0], [0], [1], [0, 0, 1, 1], [], []>} : vector<8x16xf32>, vector<16x64xf32>, vector<8x64xf32> -> vector<8x64xf32>
    %181 = arith.addf %175, %180 : vector<8x64xf32>
    %182 = vector.extract_strided_slice %160 {offsets = [24, 0], sizes = [8, 8], strides = [1, 1]} : vector<32x8xf32> to vector<8x8xf32>
    %183 = vector.extract_strided_slice %136 {offsets = [0, 112], sizes = [8, 16], strides = [1, 1]} : vector<8x128xf32> to vector<8x16xf32>
    %cst_84 = arith.constant dense<0.000000e+00> : vector<8x16xf32>
    %184 = tpu.matmul %182, %183, %cst_84 {dimension_numbers = #tpu.dot_dimension_numbers<[1], [0], [0], [1], [0, 0, 1, 1], [], []>} : vector<8x8xf32>, vector<8x16xf32>, vector<8x16xf32> -> vector<8x16xf32>
    %185 = vector.extract_strided_slice %162 {offsets = [48, 0], sizes = [16, 64], strides = [1, 1]} : vector<64x64xf32> to vector<16x64xf32>
    %cst_85 = arith.constant dense<0.000000e+00> : vector<8x64xf32>
    %186 = tpu.matmul %184, %185, %cst_85 {dimension_numbers = #tpu.dot_dimension_numbers<[1], [0], [0], [1], [0, 0, 1, 1], [], []>} : vector<8x16xf32>, vector<16x64xf32>, vector<8x64xf32> -> vector<8x64xf32>
    %187 = arith.addf %181, %186 : vector<8x64xf32>
    %188 = arith.addf %187, %111 : vector<8x64xf32>
    %c1_86 = arith.constant 1 : index
    %c0_87 = arith.constant 0 : index
    %c0_88 = arith.constant 0 : index
    %189 = vector.load %arg9[%c1_86, %c0_87, %c0_88] : memref<2x1x64xf32, #tpu.memory_space<vmem>>, vector<1x1x64xf32>
    %190 = vector.shape_cast %189 : vector<1x1x64xf32> to vector<1x64xf32>
    %191 = arith.mulf %188, %188 : vector<8x64xf32>
    %cst_89 = arith.constant dense<0.000000e+00> : vector<8xf32>
    %192 = vector.multi_reduction <add>, %191, %cst_89 [1] : vector<8x64xf32> to vector<8xf32>
    %193 = vector.shape_cast %192 : vector<8xf32> to vector<8x1xf32>
    %cst_90 = arith.constant 6.400000e+01 : f32
    %194 = vector.broadcast %cst_90 : f32 to vector<8x1xf32>
    %195 = arith.divf %193, %194 : vector<8x1xf32>
    %cst_91 = arith.constant 9.99999997E-7 : f32
    %196 = vector.broadcast %cst_91 : f32 to vector<8x1xf32>
    %197 = arith.addf %195, %196 : vector<8x1xf32>
    %198 = math.rsqrt %197 : vector<8x1xf32>
    %199 = vector.broadcast %198 : vector<8x1xf32> to vector<8x64xf32>
    %200 = arith.mulf %188, %199 : vector<8x64xf32>
    %201 = vector.broadcast %190 : vector<1x64xf32> to vector<8x64xf32>
    %202 = arith.mulf %200, %201 : vector<8x64xf32>
    %c1_92 = arith.constant 1 : index
    %c0_93 = arith.constant 0 : index
    %c0_94 = arith.constant 0 : index
    %203 = vector.load %arg10[%c1_92, %c0_93, %c0_94] : memref<2x64x256xf32, #tpu.memory_space<vmem>>, vector<1x64x256xf32>
    %204 = vector.shape_cast %203 : vector<1x64x256xf32> to vector<64x256xf32>
    %cst_95 = arith.constant dense<0.000000e+00> : vector<8x256xf32>
    %205 = tpu.matmul %202, %204, %cst_95 {dimension_numbers = #tpu.dot_dimension_numbers<[1], [0], [0], [1], [0, 0, 1, 1], [], []>} : vector<8x64xf32>, vector<64x256xf32>, vector<8x256xf32> -> vector<8x256xf32>
    %206 = vector.extract_strided_slice %205 {offsets = [0, 0], sizes = [8, 128], strides = [1, 1]} : vector<8x256xf32> to vector<8x128xf32>
    %207 = vector.extract_strided_slice %205 {offsets = [0, 128], sizes = [8, 128], strides = [1, 1]} : vector<8x256xf32> to vector<8x128xf32>
    %208 = arith.negf %206 : vector<8x128xf32>
    %209 = math.exp %208 : vector<8x128xf32>
    %cst_96 = arith.constant 1.000000e+00 : f32
    %210 = vector.broadcast %cst_96 : f32 to vector<8x128xf32>
    %211 = arith.addf %210, %209 : vector<8x128xf32>
    %212 = arith.divf %210, %211 : vector<8x128xf32>
    %213 = arith.mulf %206, %212 : vector<8x128xf32>
    %214 = arith.mulf %213, %207 : vector<8x128xf32>
    %c1_97 = arith.constant 1 : index
    %c0_98 = arith.constant 0 : index
    %c0_99 = arith.constant 0 : index
    %215 = vector.load %arg11[%c1_97, %c0_98, %c0_99] : memref<2x128x64xf32, #tpu.memory_space<vmem>>, vector<1x128x64xf32>
    %216 = vector.shape_cast %215 : vector<1x128x64xf32> to vector<128x64xf32>
    %cst_100 = arith.constant dense<0.000000e+00> : vector<8x64xf32>
    %217 = tpu.matmul %214, %216, %cst_100 {dimension_numbers = #tpu.dot_dimension_numbers<[1], [0], [0], [1], [0, 0, 1, 1], [], []>} : vector<8x128xf32>, vector<128x64xf32>, vector<8x64xf32> -> vector<8x64xf32>
    %218 = arith.addf %217, %188 : vector<8x64xf32>
    %c0_101 = arith.constant 0 : index
    %c0_102 = arith.constant 0 : index
    %219 = vector.load %arg12[%c0_101, %c0_102] : memref<1x64xf32, #tpu.memory_space<vmem>>, vector<1x64xf32>
    %220 = arith.mulf %218, %218 : vector<8x64xf32>
    %cst_103 = arith.constant dense<0.000000e+00> : vector<8xf32>
    %221 = vector.multi_reduction <add>, %220, %cst_103 [1] : vector<8x64xf32> to vector<8xf32>
    %222 = vector.shape_cast %221 : vector<8xf32> to vector<8x1xf32>
    %cst_104 = arith.constant 6.400000e+01 : f32
    %223 = vector.broadcast %cst_104 : f32 to vector<8x1xf32>
    %224 = arith.divf %222, %223 : vector<8x1xf32>
    %cst_105 = arith.constant 9.99999997E-7 : f32
    %225 = vector.broadcast %cst_105 : f32 to vector<8x1xf32>
    %226 = arith.addf %224, %225 : vector<8x1xf32>
    %227 = math.rsqrt %226 : vector<8x1xf32>
    %228 = vector.broadcast %227 : vector<8x1xf32> to vector<8x64xf32>
    %229 = arith.mulf %218, %228 : vector<8x64xf32>
    %230 = vector.broadcast %219 : vector<1x64xf32> to vector<8x64xf32>
    %231 = arith.mulf %229, %230 : vector<8x64xf32>
    %c0_106 = arith.constant 0 : index
    %c0_107 = arith.constant 0 : index
    %232 = vector.load %arg13[%c0_106, %c0_107] : memref<8x64xf32, #tpu.memory_space<vmem>>, vector<8x64xf32>
    tpu.vector_store %arg13[%c0_106, %c0_107], %231 {strides = array<i32>} : memref<8x64xf32, #tpu.memory_space<vmem>>, vector<8x64xf32>,
    return
  }
}

</mosaic_0001>

<llo_original>
// kernel: tile.29
$region0: #{tile.29}
  %s0 = inlined_call_operand.vmem [shape: f32[8,2,16], index: 0, kind: input, shape index: {}]
  %s1 = inlined_call_operand.vmem [shape: f32[8,32], index: 1, kind: output, shape index: {}]
  $region1: #{tile.29} parent=0
    #allocation0 [shape = 'u8[32768]{0}', space=vmem, size = 0x8000, scoped, tag = 'scoped mem for input reshape']
    %s3 = sshllo.u32 0, 2
    %s4 = smul.addr 2, 7
    %s5 = scalar_lea.vmem %s0, %s4
    %v6 = vld [vmem:[%s5] sm:%s3]
    %s7 = scalar_lea.vmem [#allocation0], 56
    %8 = vst [vmem:[%s7] sm:%s3] %v6
    %s9 = smul.addr 2, 6
    %s10 = scalar_lea.vmem %s0, %s9
    %v11 = vld [vmem:[%s10] sm:%s3]
    %s12 = scalar_lea.vmem [#allocation0], 48
    %13 = vst [vmem:[%s12] sm:%s3] %v11
    %s14 = smul.addr 2, 5
    %s15 = scalar_lea.vmem %s0, %s14
    %v16 = vld [vmem:[%s15] sm:%s3]
    %s17 = scalar_lea.vmem [#allocation0], 40
    %18 = vst [vmem:[%s17] sm:%s3] %v16
    %s19 = smul.addr 2, 4
    %s20 = scalar_lea.vmem %s0, %s19
    %v21 = vld [vmem:[%s20] sm:%s3]
    %s22 = scalar_lea.vmem [#allocation0], 32
    %23 = vst [vmem:[%s22] sm:%s3] %v21
    %s24 = smul.addr 2, 3
    %s25 = scalar_lea.vmem %s0, %s24
    %v26 = vld [vmem:[%s25] sm:%s3]
    %s27 = scalar_lea.vmem [#allocation0], 24
    %28 = vst [vmem:[%s27] sm:%s3] %v26
    %s29 = smul.addr 2, 2
    %s30 = scalar_lea.vmem %s0, %s29
    %v31 = vld [vmem:[%s30] sm:%s3]
    %s32 = scalar_lea.vmem [#allocation0], 16
    %33 = vst [vmem:[%s32] sm:%s3] %v31
    %s34 = scalar_lea.vmem %s0, 2
    %v35 = vld [vmem:[%s34] sm:%s3]
    %s36 = scalar_lea.vmem [#allocation0], 8
    %37 = vst [vmem:[%s36] sm:%s3] %v35
    %v38 = vld [vmem:[%s0] sm:%s3]
    %39 = vst [vmem:[#allocation0] sm:%s3] %v38
    %v40 = vld [vmem:[#allocation0] ss:$8 sm:$0xf]
    %v41 = vld [vmem:[#allocation0] ss:$8 sm:$0xf0]
    %vm42 = vcmask 1047556
    %v43 = vsel %vm42, %v41, %v40
    %vm44 = vcmask 130048
    %45 = vst.msk [vmem:[%s1] sm:$0xff] %vm44, %v43
    %s46 = scalar_lea.vmem [#allocation0], 1
    %v47 = vld [vmem:[%s46] ss:$8 sm:$0xf]
    %s48 = scalar_lea.vmem [#allocation0], 1
    %v49 = vld [vmem:[%s48] ss:$8 sm:$0xf0]
    %vm50 = vcmask 1047556
    %v51 = vsel %vm50, %v49, %v47
    %52 = vrot.lane.b32.xlu0 %v51, 16
    %v53 = vpop.permute.xlu0 %52
    %vm54 = vcmask 261248
    %55 = vst.msk [vmem:[%s1] sm:$0xff] %vm54, %v53

// kernel: tile.24
$region0: #{tile.24}
  %s0 = inlined_call_operand.vmem [shape: f32[8,4,16], index: 0, kind: input, shape index: {}]
  %s1 = inlined_call_operand.vmem [shape: f32[8,64], index: 1, kind: output, shape index: {}]
  $region1: #{tile.24} parent=0
    #allocation0 [shape = 'u8[32768]{0}', space=vmem, size = 0x8000, scoped, tag = 'scoped mem for input reshape']
    %s3 = sshllo.u32 0, 4
    %s4 = smul.addr 4, 7
    %s5 = scalar_lea.vmem %s0, %s4
    %v6 = vld [vmem:[%s5] sm:%s3]
    %s7 = scalar_lea.vmem [#allocation0], 56
    %8 = vst [vmem:[%s7] sm:%s3] %v6
    %s9 = smul.addr 4, 6
    %s10 = scalar_lea.vmem %s0, %s9
    %v11 = vld [vmem:[%s10] sm:%s3]
    %s12 = scalar_lea.vmem [#allocation0], 48
    %13 = vst [vmem:[%s12] sm:%s3] %v11
    %s14 = smul.addr 4, 5
    %s15 = scalar_lea.vmem %s0, %s14
    %v16 = vld [vmem:[%s15] sm:%s3]
    %s17 = scalar_lea.vmem [#allocation0], 40
    %18 = vst [vmem:[%s17] sm:%s3] %v16
    %s19 = smul.addr 4, 4
    %s20 = scalar_lea.vmem %s0, %s19
    %v21 = vld [vmem:[%s20] sm:%s3]
    %s22 = scalar_lea.vmem [#allocation0], 32
    %23 = vst [vmem:[%s22] sm:%s3] %v21
    %s24 = smul.addr 4, 3
    %s25 = scalar_lea.vmem %s0, %s24
    %v26 = vld [vmem:[%s25] sm:%s3]
    %s27 = scalar_lea.vmem [#allocation0], 24
    %28 = vst [vmem:[%s27] sm:%s3] %v26
    %s29 = smul.addr 4, 2
    %s30 = scalar_lea.vmem %s0, %s29
    %v31 = vld [vmem:[%s30] sm:%s3]
    %s32 = scalar_lea.vmem [#allocation0], 16
    %33 = vst [vmem:[%s32] sm:%s3] %v31
    %s34 = scalar_lea.vmem %s0, 4
    %v35 = vld [vmem:[%s34] sm:%s3]
    %s36 = scalar_lea.vmem [#allocation0], 8
    %37 = vst [vmem:[%s36] sm:%s3] %v35
    %v38 = vld [vmem:[%s0] sm:%s3]
    %39 = vst [vmem:[#allocation0] sm:%s3] %v38
    %v40 = vld [vmem:[#allocation0] ss:$8 sm:$0xf]
    %v41 = vld [vmem:[#allocation0] ss:$8 sm:$0xf0]
    %vm42 = vcmask 1047556
    %v43 = vsel %vm42, %v41, %v40
    %vm44 = vcmask 130048
    %45 = vst.msk [vmem:[%s1] sm:$0xff] %vm44, %v43
    %s46 = scalar_lea.vmem [#allocation0], 3
    %v47 = vld [vmem:[%s46] ss:$8 sm:$0xf]
    %s48 = scalar_lea.vmem [#allocation0], 3
    %v49 = vld [vmem:[%s48] ss:$8 sm:$0xf0]
    %vm50 = vcmask 1047556
    %v51 = vsel %vm50, %v49, %v47
    %52 = vrot.lane.b32.xlu0 %v51, 48
    %v53 = vpop.permute.xlu0 %52
    %vm54 = vcmask 523648
    %55 = vst.msk [vmem:[%s1] sm:$0xff] %vm54, %v53
    %s56 = scalar_lea.vmem [#allocation0], 2
    %v57 = vld [vmem:[%s56] ss:$8 sm:$0xf]
    %s58 = scalar_lea.vmem [#allocation0], 2
    %v59 = vld [vmem:[%s58] ss:$8 sm:$0xf0]
    %vm60 = vcmask 1047556
    %v61 = vsel %vm60, %v59, %v57
    %62 = vrot.lane.b32.xlu0 %v61, 32
    %v63 = vpop.permute.xlu0 %62
    %vm64 = vcmask 392448
    %65 = vst.msk [vmem:[%s1] sm:$0xff] %vm64, %v63
    %s66 = scalar_lea.vmem [#allocation0], 1
    %v67 = vld [vmem:[%s66] ss:$8 sm:$0xf]
    %s68 = scalar_lea.vmem [#allocation0], 1
    %v69 = vld [vmem:[%s68] ss:$8 sm:$0xf0]
    %vm70 = vcmask 1047556
    %v71 = vsel %vm70, %v69, %v67
    %72 = vrot.lane.b32.xlu0 %v71, 16
    %v73 = vpop.permute.xlu0 %72
    %vm74 = vcmask 261248
    %75 = vst.msk [vmem:[%s1] sm:$0xff] %vm74, %v73

// kernel: qwen2_forward.1
$region0: #{qwen2_forward.1}
  #allocation0 [shape = 'u32[]', space=smem, size = 0x4, offset = 0x4, fixed_abs, tag = 'smem constant byte address 0x4 - core index']
  #allocation1 [shape = 'u32[144,128]{1,0:T(1,128)}', space=vmem, size = 0x12000, scoped, tag = 'internal scratch']
  %s0 = inlined_call_operand.vmem [shape: f32[8,64], index: 0, kind: input, shape index: {}]
  %s1 = inlined_call_operand.vmem [shape: f32[8,128], index: 1, kind: input, shape index: {}]
  %s2 = inlined_call_operand.vmem [shape: f32[8,128], index: 2, kind: input, shape index: {}]
  %s3 = inlined_call_operand.vmem [shape: f32[128,128], index: 3, kind: input, shape index: {}]
  %s4 = inlined_call_operand.vmem [shape: f32[32,8], index: 4, kind: input, shape index: {}]
  %s5 = inlined_call_operand.vmem [shape: f32[2,1,64], index: 5, kind: input, shape index: {}]
  %s6 = inlined_call_operand.vmem [shape: f32[2,64,128], index: 6, kind: input, shape index: {}]
  %s7 = inlined_call_operand.vmem [shape: f32[2,1,128], index: 7, kind: input, shape index: {}]
  %s8 = inlined_call_operand.vmem [shape: f32[2,64,64], index: 8, kind: input, shape index: {}]
  %s9 = inlined_call_operand.vmem [shape: f32[2,1,64], index: 9, kind: input, shape index: {}]
  %s10 = inlined_call_operand.vmem [shape: f32[2,64,256], index: 10, kind: input, shape index: {}]
  %s11 = inlined_call_operand.vmem [shape: f32[2,128,64], index: 11, kind: input, shape index: {}]
  %s12 = inlined_call_operand.vmem [shape: f32[1,64], index: 12, kind: input, shape index: {}]
  %s13 = inlined_call_operand.hbm [shape: f32[8,64], index: 13, kind: output, shape index: {}]
  %s14 = sld [smem:[#allocation0]]
  $region62: #{qwen2_forward.1} parent=0
    _
  %s16 = ssub.s32 1, %s14
  %s17 = scalar_select 0, %s16, %s14
  $region1: #{qwen2_forward.1} parent=0
    #allocation2 [shape = 'u8[4096]{0}', space=vmem, size = 0x1000, scoped, tag = 'output window, operand 0, single buffered']
    #allocation3 [shape = 's32[1]{0}', space=sflag, size = 0x4, scoped, tag = 'scoped memory for qwen2_forward.1']
    %18 = vsyncpa [#allocation3], 0
    // Predicated region
    $region2: #{qwen2_forward.1} parent=1 // pred_check
      _
    $region3: #{qwen2_forward.1} parent=1 // pred_check_branch
      %20 = sbr.rel (0) target = $region5
    $region4: #{qwen2_forward.1} parent=1 // pred_region
      _
    $region5: #{qwen2_forward.1} parent=1 // pred_fallthru
      _
    // Predicated region
    $region6: #{qwen2_forward.1} parent=1 // pred_check
      _
    $region7: #{qwen2_forward.1} parent=1 // pred_check_branch
      %22 = sbr.rel (0) target = $region9
    $region8: #{qwen2_forward.1} parent=1 // pred_region
      _
    $region9: #{qwen2_forward.1} parent=1 // pred_fallthru
      _
    // Predicated region
    $region10: #{qwen2_forward.1} parent=1 // pred_check
      _
    $region11: #{qwen2_forward.1} parent=1 // pred_check_branch
      %24 = sbr.rel (0) target = $region13
    $region12: #{qwen2_forward.1} parent=1 // pred_region
      _
    $region13: #{qwen2_forward.1} parent=1 // pred_fallthru
      _
    // Predicated region
    $region14: #{qwen2_forward.1} parent=1 // pred_check
      _
    $region15: #{qwen2_forward.1} parent=1 // pred_check_branch
      %26 = sbr.rel (0) target = $region17
    $region16: #{qwen2_forward.1} parent=1 // pred_region
      _
    $region17: #{qwen2_forward.1} parent=1 // pred_fallthru
      _
    // Predicated region
    $region18: #{qwen2_forward.1} parent=1 // pred_check
      _
    $region19: #{qwen2_forward.1} parent=1 // pred_check_branch
      %28 = sbr.rel (0) target = $region21
    $region20: #{qwen2_forward.1} parent=1 // pred_region
      _
    $region21: #{qwen2_forward.1} parent=1 // pred_fallthru
      _
    // Predicated region
    $region22: #{qwen2_forward.1} parent=1 // pred_check
      _
    $region23: #{qwen2_forward.1} parent=1 // pred_check_branch
      %30 = sbr.rel (0) target = $region25
    $region24: #{qwen2_forward.1} parent=1 // pred_region
      _
    $region25: #{qwen2_forward.1} parent=1 // pred_fallthru
      _
    // Predicated region
    $region26: #{qwen2_forward.1} parent=1 // pred_check
      _
    $region27: #{qwen2_forward.1} parent=1 // pred_check_branch
      %32 = sbr.rel (0) target = $region29
    $region28: #{qwen2_forward.1} parent=1 // pred_region
      _
    $region29: #{qwen2_forward.1} parent=1 // pred_fallthru
      _
    // Predicated region
    $region30: #{qwen2_forward.1} parent=1 // pred_check
      _
    $region31: #{qwen2_forward.1} parent=1 // pred_check_branch
      %34 = sbr.rel (0) target = $region33
    $region32: #{qwen2_forward.1} parent=1 // pred_region
      _
    $region33: #{qwen2_forward.1} parent=1 // pred_fallthru
      _
    // Predicated region
    $region34: #{qwen2_forward.1} parent=1 // pred_check
      _
    $region35: #{qwen2_forward.1} parent=1 // pred_check_branch
      %36 = sbr.rel (0) target = $region37
    $region36: #{qwen2_forward.1} parent=1 // pred_region
      _
    $region37: #{qwen2_forward.1} parent=1 // pred_fallthru
      _
    // Predicated region
    $region38: #{qwen2_forward.1} parent=1 // pred_check
      _
    $region39: #{qwen2_forward.1} parent=1 // pred_check_branch
      %38 = sbr.rel (0) target = $region41
    $region40: #{qwen2_forward.1} parent=1 // pred_region
      _
    $region41: #{qwen2_forward.1} parent=1 // pred_fallthru
      _
    // Predicated region
    $region42: #{qwen2_forward.1} parent=1 // pred_check
      _
    $region43: #{qwen2_forward.1} parent=1 // pred_check_branch
      %40 = sbr.rel (0) target = $region45
    $region44: #{qwen2_forward.1} parent=1 // pred_region
      _
    $region45: #{qwen2_forward.1} parent=1 // pred_fallthru
      _
    // Predicated region
    $region46: #{qwen2_forward.1} parent=1 // pred_check
      _
    $region47: #{qwen2_forward.1} parent=1 // pred_check_branch
      %42 = sbr.rel (0) target = $region49
    $region48: #{qwen2_forward.1} parent=1 // pred_region
      _
    $region49: #{qwen2_forward.1} parent=1 // pred_fallthru
      _
    // Predicated region
    $region50: #{qwen2_forward.1} parent=1 // pred_check
      _
    $region51: #{qwen2_forward.1} parent=1 // pred_check_branch
      %44 = sbr.rel (0) target = $region53
    $region52: #{qwen2_forward.1} parent=1 // pred_region
      _
    $region53: #{qwen2_forward.1} parent=1 // pred_fallthru
      _
    %v45 = vld [vmem:[%s1] sm:$0xff]
    %v46 = vld [vmem:[%s2] sm:$0xff]
    %v47 = vld [vmem:[%s3] sm:$0xff]
    %v48 = vld [vmem:[%s3 + $0x8] sm:$0xff]
    %v49 = vld [vmem:[%s3 + $0x10] sm:$0xff]
    %v50 = vld [vmem:[%s3 + $0x18] sm:$0xff]
    %v51 = vld [vmem:[%s3 + $0x20] sm:$0xff]
    %v52 = vld [vmem:[%s3 + $0x28] sm:$0xff]
    %v53 = vld [vmem:[%s3 + $0x30] sm:$0xff]
    %v54 = vld [vmem:[%s3 + $0x38] sm:$0xff]
    %v55 = vld [vmem:[%s3 + $0x40] sm:$0xff]
    %v56 = vld [vmem:[%s3 + $0x48] sm:$0xff]
    %v57 = vld [vmem:[%s3 + $0x50] sm:$0xff]
    %v58 = vld [vmem:[%s3 + $0x58] sm:$0xff]
    %v59 = vld [vmem:[%s3 + $0x60] sm:$0xff]
    %v60 = vld [vmem:[%s3 + $0x68] sm:$0xff]
    %v61 = vld [vmem:[%s3 + $0x70] sm:$0xff]
    %v62 = vld [vmem:[%s3 + $0x78] sm:$0xff]
    %v63 = vld [vmem:[%s4] sm:$0xff]
    %v64 = vld [vmem:[%s4 + $0x8] sm:$0xff]
    %v65 = vld [vmem:[%s4 + $0x10] sm:$0xff]
    %v66 = vld [vmem:[%s4 + $0x18] sm:$0xff]
    %v67 = vld [vmem:[%s0] sm:$0xff]
    %v68 = vld [vmem:[%s5] sm:$0x1]
    %v69 = vmul.f32 %v67, %v67
    %vm70 = vcmask 523264
    %v71 = vsel %vm70, %v69, 0.0
    %72 = vadd.xlane.f32.xlu0 %v71
    %v73 = vpop.xlane.xlu0 %72
    %v74 = vrcp.pop 64.0
    %v75 = vmul.f32 %v73, %v74
    %v76 = vadd.f32 %v75, 1e-06
    %v77 = vrsqrt.pop %v76
    %v78 = vmul.f32 %v67, %v77
    %v80 = vlaneseq
    %v81 = vshrl.u32 %v80, 7
    %v82 = vsub.s32 0, %v81
    %v83 = vrot.slane %v68, %v82
    %v85 = vmul.f32 %v78, %v83
    %v86 = vld [vmem:[%s6] sm:$0xff]
    %v87 = vld [vmem:[%s6 + $0x8] sm:$0xff]
    %v88 = vld [vmem:[%s6 + $0x10] sm:$0xff]
    %v89 = vld [vmem:[%s6 + $0x18] sm:$0xff]
    %v90 = vld [vmem:[%s6 + $0x20] sm:$0xff]
    %v91 = vld [vmem:[%s6 + $0x28] sm:$0xff]
    %v92 = vld [vmem:[%s6 + $0x30] sm:$0xff]
    %v93 = vld [vmem:[%s6 + $0x38] sm:$0xff]
    %v94 = vld [vmem:[%s7] sm:$0x1]
    %v96 = vlaneseq
    %v97 = vshrl.u32 %v96, 7
    %v98 = vsub.s32 0, %v97
    %v99 = vrot.slane %v94, %v98
    %v102 = vsel %vm70, %v85, 0
    %104 = vmatprep.subr.mxu0 0.0
    %105 = vmatpush1.msra.mxu0 %v86
    %106 = vmatprep.subr.mxu0 0.0
    %107 = vmatpush1.msra.mxu0 %v87
    %108 = vmatprep.subr.mxu0 0.0
    %109 = vmatpush1.msra.mxu0 %v88
    %110 = vmatprep.subr.mxu0 0.0
    %111 = vmatpush1.msra.mxu0 %v89
    %112 = vmatprep.subr.mxu0 0.0
    %113 = vmatpush1.msra.mxu0 %v90
    %114 = vmatprep.subr.mxu0 0.0
    %115 = vmatpush1.msra.mxu0 %v91
    %116 = vmatprep.subr.mxu0 0.0
    %117 = vmatpush1.msra.mxu0 %v92
    %118 = vmatprep.subr.mxu0 0.0
    %119 = vmatpush1.msra.mxu0 %v93
    %120 = vmatprep.subr.mxu0 0.0
    %121 = vmatpush1.msra.mxu0 0.0
    %122 = vmatprep.subr.mxu0 0.0
    %123 = vmatpush1.msra.mxu0 0.0
    %124 = vmatprep.subr.mxu0 0.0
    %125 = vmatpush1.msra.mxu0 0.0
    %126 = vmatprep.subr.mxu0 0.0
    %127 = vmatpush1.msra.mxu0 0.0
    %128 = vmatprep.subr.mxu0 0.0
    %129 = vmatpush1.msra.mxu0 0.0
    %130 = vmatprep.subr.mxu0 0.0
    %131 = vmatpush1.msra.mxu0 0.0
    %132 = vmatprep.subr.mxu0 0.0
    %133 = vmatpush1.msra.mxu0 0.0
    %134 = vmatprep.subr.mxu0 0.0
    %135 = vmatpush1.msra.mxu0 0.0
    %136 = vmatprep.subr.mxu0 0.0
    %137 = vmatpush1.msra.mxu0 0.0
    %138 = vmatprep.subr.mxu0 0.0
    %139 = vmatpush1.msra.mxu0 0.0
    %140 = vmatprep.subr.mxu0 0.0
    %141 = vmatpush1.msra.mxu0 0.0
    %142 = vmatprep.subr.mxu0 0.0
    %143 = vmatpush1.msra.mxu0 0.0
    %144 = vmatprep.subr.mxu0 0.0
    %145 = vmatpush1.msra.mxu0 0.0
    %146 = vmatprep.subr.mxu0 0.0
    %147 = vmatpush1.msra.mxu0 0.0
    %148 = vmatprep.subr.mxu0 0.0
    %149 = vmatpush1.msra.mxu0 0.0
    %150 = vmatprep.subr.mxu0 0.0
    %151 = vmatpush1.msra.mxu0 0.0
    %152 = vmatprep.subr.mxu0 0.0
    %153 = vmatpush1.msra.mxu0 0.0
    %154 = vmatprep.subr.mxu0 0.0
    %155 = vmatpush1.msra.mxu0 0.0
    %156 = vmatprep.subr.mxu0 0.0
    %157 = vmatpush1.msra.mxu0 0.0
    %158 = vmatprep.subr.mxu0 0.0
    %159 = vmatpush1.msra.mxu0 0.0
    %160 = vmatprep.subr.mxu0 0.0
    %161 = vmatpush1.msra.mxu0 0.0
    %162 = vmatprep.subr.mxu0 0.0
    %163 = vmatpush1.msra.mxu0 0.0
    %164 = vmatprep.subr.mxu0 0.0
    %165 = vmatpush1.msra.mxu0 0.0
    %166 = vmatprep.subr.mxu0 0.0
    %167 = vmatpush1.msra.mxu0 0.0
    %168 = vmatprep.mubr.f32.mxu0 0.0
    %169 = vmatmul.mubr.f32.gmra.mrb[0].mxu0 %v102
    %v170 = vpop.f32.mrb[0].mxu0
    %v171 = vadd.f32 %v99, %v170
    %v172 = vpop.f32.mrb[0].mxu0
    %173 = vdwg.mxu0
    %v174 = vmul.f32 %v171, %v45
    %175 = vmatprep.subr.mxu0 0.0
    %176 = vmatpush1.msra.mxu0 %v47
    %177 = vmatprep.subr.mxu0 0.0
    %178 = vmatpush1.msra.mxu0 %v48
    %179 = vmatprep.subr.mxu0 0.0
    %180 = vmatpush1.msra.mxu0 %v49
    %181 = vmatprep.subr.mxu0 0.0
    %182 = vmatpush1.msra.mxu0 %v50
    %183 = vmatprep.subr.mxu0 0.0
    %184 = vmatpush1.msra.mxu0 %v51
    %185 = vmatprep.subr.mxu0 0.0
    %186 = vmatpush1.msra.mxu0 %v52
    %187 = vmatprep.subr.mxu0 0.0
    %188 = vmatpush1.msra.mxu0 %v53
    %189 = vmatprep.subr.mxu0 0.0
    %190 = vmatpush1.msra.mxu0 %v54
    %191 = vmatprep.subr.mxu0 0.0
    %192 = vmatpush1.msra.mxu0 %v55
    %193 = vmatprep.subr.mxu0 0.0
    %194 = vmatpush1.msra.mxu0 %v56
    %195 = vmatprep.subr.mxu0 0.0
    %196 = vmatpush1.msra.mxu0 %v57
    %197 = vmatprep.subr.mxu0 0.0
    %198 = vmatpush1.msra.mxu0 %v58
    %199 = vmatprep.subr.mxu0 0.0
    %200 = vmatpush1.msra.mxu0 %v59
    %201 = vmatprep.subr.mxu0 0.0
    %202 = vmatpush1.msra.mxu0 %v60
    %203 = vmatprep.subr.mxu0 0.0
    %204 = vmatpush1.msra.mxu0 %v61
    %205 = vmatprep.subr.mxu0 0.0
    %206 = vmatpush1.msra.mxu0 %v62
    %207 = vmatprep.subr.mxu0 0.0
    %208 = vmatpush1.msra.mxu0 0.0
    %209 = vmatprep.subr.mxu0 0.0
    %210 = vmatpush1.msra.mxu0 0.0
    %211 = vmatprep.subr.mxu0 0.0
    %212 = vmatpush1.msra.mxu0 0.0
    %213 = vmatprep.subr.mxu0 0.0
    %214 = vmatpush1.msra.mxu0 0.0
    %215 = vmatprep.subr.mxu0 0.0
    %216 = vmatpush1.msra.mxu0 0.0
    %217 = vmatprep.subr.mxu0 0.0
    %218 = vmatpush1.msra.mxu0 0.0
    %219 = vmatprep.subr.mxu0 0.0
    %220 = vmatpush1.msra.mxu0 0.0
    %221 = vmatprep.subr.mxu0 0.0
    %222 = vmatpush1.msra.mxu0 0.0
    %223 = vmatprep.subr.mxu0 0.0
    %224 = vmatpush1.msra.mxu0 0.0
    %225 = vmatprep.subr.mxu0 0.0
    %226 = vmatpush1.msra.mxu0 0.0
    %227 = vmatprep.subr.mxu0 0.0
    %228 = vmatpush1.msra.mxu0 0.0
    %229 = vmatprep.subr.mxu0 0.0
    %230 = vmatpush1.msra.mxu0 0.0
    %231 = vmatprep.subr.mxu0 0.0
    %232 = vmatpush1.msra.mxu0 0.0
    %233 = vmatprep.subr.mxu0 0.0
    %234 = vmatpush1.msra.mxu0 0.0
    %235 = vmatprep.subr.mxu0 0.0
    %236 = vmatpush1.msra.mxu0 0.0
    %237 = vmatprep.subr.mxu0 0.0
    %238 = vmatpush1.msra.mxu0 0.0
    %239 = vmatprep.mubr.f32.mxu0 0.0
    %240 = vmatmul.mubr.f32.gmra.mrb[0].mxu0 %v171
    %v241 = vpop.f32.mrb[0].mxu0
    %v242 = vadd.f32 0.0, %v241
    %v243 = vpop.f32.mrb[0].mxu0
    %244 = vdwg.mxu0
    %v245 = vmul.f32 %v242, %v46
    %v246 = vadd.f32 %v174, %v245
    %248 = vrot.lane.b32.xlu0 %v246, 64
    %v249 = vpop.permute.xlu0 %248
    %vm250 = vcmask 130048
    %v251 = vsel %vm250, %v246, 0
    %v253 = vsel %vm250, %v249, 0
    %255 = vmatprep.subr.mxu0 0.0
    %256 = vmatpush1.xpose.msra.mxu0 %v253
    %257 = vmatprep.subr.mxu0 0.0
    %258 = vmatpush1.xpose.msra.mxu0 0.0
    %259 = vmatprep.subr.mxu0 0.0
    %260 = vmatpush1.xpose.msra.mxu0 0.0
    %261 = vmatprep.subr.mxu0 0.0
    %262 = vmatpush1.xpose.msra.mxu0 0.0
    %263 = vmatprep.subr.mxu0 0.0
    %264 = vmatpush1.xpose.msra.mxu0 0.0
    %265 = vmatprep.subr.mxu0 0.0
    %266 = vmatpush1.xpose.msra.mxu0 0.0
    %267 = vmatprep.subr.mxu0 0.0
    %268 = vmatpush1.xpose.msra.mxu0 0.0
    %269 = vmatprep.subr.mxu0 0.0
    %270 = vmatpush1.xpose.msra.mxu0 0.0
    %271 = vmatprep.subr.mxu0 0.0
    %272 = vmatpush1.xpose.msra.mxu0 0.0
    %273 = vmatprep.subr.mxu0 0.0
    %274 = vmatpush1.xpose.msra.mxu0 0.0
    %275 = vmatprep.subr.mxu0 0.0
    %276 = vmatpush1.xpose.msra.mxu0 0.0
    %277 = vmatprep.subr.mxu0 0.0
    %278 = vmatpush1.xpose.msra.mxu0 0.0
    %279 = vmatprep.subr.mxu0 0.0
    %280 = vmatpush1.xpose.msra.mxu0 0.0
    %281 = vmatprep.subr.mxu0 0.0
    %282 = vmatpush1.xpose.msra.mxu0 0.0
    %283 = vmatprep.subr.mxu0 0.0
    %284 = vmatpush1.xpose.msra.mxu0 0.0
    %285 = vmatprep.subr.mxu0 0.0
    %286 = vmatpush1.xpose.msra.mxu0 0.0
    %287 = vmatprep.subr.mxu0 0.0
    %288 = vmatpush1.xpose.msra.mxu0 0.0
    %289 = vmatprep.subr.mxu0 0.0
    %290 = vmatpush1.xpose.msra.mxu0 0.0
    %291 = vmatprep.subr.mxu0 0.0
    %292 = vmatpush1.xpose.msra.mxu0 0.0
    %293 = vmatprep.subr.mxu0 0.0
    %294 = vmatpush1.xpose.msra.mxu0 0.0
    %295 = vmatprep.subr.mxu0 0.0
    %296 = vmatpush1.xpose.msra.mxu0 0.0
    %297 = vmatprep.subr.mxu0 0.0
    %298 = vmatpush1.xpose.msra.mxu0 0.0
    %299 = vmatprep.subr.mxu0 0.0
    %300 = vmatpush1.xpose.msra.mxu0 0.0
    %301 = vmatprep.subr.mxu0 0.0
    %302 = vmatpush1.xpose.msra.mxu0 0.0
    %303 = vmatprep.subr.mxu0 0.0
    %304 = vmatpush1.xpose.msra.mxu0 0.0
    %305 = vmatprep.subr.mxu0 0.0
    %306 = vmatpush1.xpose.msra.mxu0 0.0
    %307 = vmatprep.subr.mxu0 0.0
    %308 = vmatpush1.xpose.msra.mxu0 0.0
    %309 = vmatprep.subr.mxu0 0.0
    %310 = vmatpush1.xpose.msra.mxu0 0.0
    %311 = vmatprep.subr.mxu0 0.0
    %312 = vmatpush1.xpose.msra.mxu0 0.0
    %313 = vmatprep.subr.mxu0 0.0
    %314 = vmatpush1.xpose.msra.mxu0 0.0
    %315 = vmatprep.subr.mxu0 0.0
    %316 = vmatpush1.xpose.msra.mxu0 0.0
    %317 = vmatprep.subr.mxu0 0.0
    %318 = vmatpush1.xpose.msra.mxu0 0.0
    %319 = vmatprep.mubr.f32.mxu0 0.0
    %320 = vmatmul.mubr.f32.gmra.mrb[0].mxu0 %v251
    %v321 = vpop.f32.mrb[0].mxu0
    %v322 = vadd.f32 0.0, %v321
    %v323 = vpop.f32.mrb[0].mxu0
    %324 = vdwg.mxu0
    %325 = vrot.lane.b32.xlu0 %v246, 112
    %v326 = vpop.permute.xlu0 %325
    %v327 = vsel %vm250, %v326, 0
    %329 = vmatprep.subr.mxu0 0.0
    %330 = vmatpush1.xpose.msra.mxu0 %v253
    %331 = vmatprep.subr.mxu0 0.0
    %332 = vmatpush1.xpose.msra.mxu0 0.0
    %333 = vmatprep.subr.mxu0 0.0
    %334 = vmatpush1.xpose.msra.mxu0 0.0
    %335 = vmatprep.subr.mxu0 0.0
    %336 = vmatpush1.xpose.msra.mxu0 0.0
    %337 = vmatprep.subr.mxu0 0.0
    %338 = vmatpush1.xpose.msra.mxu0 0.0
    %339 = vmatprep.subr.mxu0 0.0
    %340 = vmatpush1.xpose.msra.mxu0 0.0
    %341 = vmatprep.subr.mxu0 0.0
    %342 = vmatpush1.xpose.msra.mxu0 0.0
    %343 = vmatprep.subr.mxu0 0.0
    %344 = vmatpush1.xpose.msra.mxu0 0.0
    %345 = vmatprep.subr.mxu0 0.0
    %346 = vmatpush1.xpose.msra.mxu0 0.0
    %347 = vmatprep.subr.mxu0 0.0
    %348 = vmatpush1.xpose.msra.mxu0 0.0
    %349 = vmatprep.subr.mxu0 0.0
    %350 = vmatpush1.xpose.msra.mxu0 0.0
    %351 = vmatprep.subr.mxu0 0.0
    %352 = vmatpush1.xpose.msra.mxu0 0.0
    %353 = vmatprep.subr.mxu0 0.0
    %354 = vmatpush1.xpose.msra.mxu0 0.0
    %355 = vmatprep.subr.mxu0 0.0
    %356 = vmatpush1.xpose.msra.mxu0 0.0
    %357 = vmatprep.subr.mxu0 0.0
    %358 = vmatpush1.xpose.msra.mxu0 0.0
    %359 = vmatprep.subr.mxu0 0.0
    %360 = vmatpush1.xpose.msra.mxu0 0.0
    %361 = vmatprep.subr.mxu0 0.0
    %362 = vmatpush1.xpose.msra.mxu0 0.0
    %363 = vmatprep.subr.mxu0 0.0
    %364 = vmatpush1.xpose.msra.mxu0 0.0
    %365 = vmatprep.subr.mxu0 0.0
    %366 = vmatpush1.xpose.msra.mxu0 0.0
    %367 = vmatprep.subr.mxu0 0.0
    %368 = vmatpush1.xpose.msra.mxu0 0.0
    %369 = vmatprep.subr.mxu0 0.0
    %370 = vmatpush1.xpose.msra.mxu0 0.0
    %371 = vmatprep.subr.mxu0 0.0
    %372 = vmatpush1.xpose.msra.mxu0 0.0
    %373 = vmatprep.subr.mxu0 0.0
    %374 = vmatpush1.xpose.msra.mxu0 0.0
    %375 = vmatprep.subr.mxu0 0.0
    %376 = vmatpush1.xpose.msra.mxu0 0.0
    %377 = vmatprep.subr.mxu0 0.0
    %378 = vmatpush1.xpose.msra.mxu0 0.0
    %379 = vmatprep.subr.mxu0 0.0
    %380 = vmatpush1.xpose.msra.mxu0 0.0
    %381 = vmatprep.subr.mxu0 0.0
    %382 = vmatpush1.xpose.msra.mxu0 0.0
    %383 = vmatprep.subr.mxu0 0.0
    %384 = vmatpush1.xpose.msra.mxu0 0.0
    %385 = vmatprep.subr.mxu0 0.0
    %386 = vmatpush1.xpose.msra.mxu0 0.0
    %387 = vmatprep.subr.mxu0 0.0
    %388 = vmatpush1.xpose.msra.mxu0 0.0
    %389 = vmatprep.subr.mxu0 0.0
    %390 = vmatpush1.xpose.msra.mxu0 0.0
    %391 = vmatprep.subr.mxu0 0.0
    %392 = vmatpush1.xpose.msra.mxu0 0.0
    %393 = vmatprep.mubr.f32.mxu0 0.0
    %394 = vmatmul.mubr.f32.gmra.mrb[0].mxu0 %v327
    %v395 = vpop.f32.mrb[0].mxu0
    %v396 = vadd.f32 0.0, %v395
    %v397 = vpop.f32.mrb[0].mxu0
    %398 = vdwg.mxu0
    %399 = vrot.lane.b32.xlu0 %v246, 96
    %v400 = vpop.permute.xlu0 %399
    %401 = vrot.lane.b32.xlu0 %v246, 48
    %v402 = vpop.permute.xlu0 %401
    %v403 = vsel %vm250, %v400, 0
    %v405 = vsel %vm250, %v402, 0
    %407 = vmatprep.subr.mxu0 0.0
    %408 = vmatpush1.xpose.msra.mxu0 %v405
    %409 = vmatprep.subr.mxu0 0.0
    %410 = vmatpush1.xpose.msra.mxu0 0.0
    %411 = vmatprep.subr.mxu0 0.0
    %412 = vmatpush1.xpose.msra.mxu0 0.0
    %413 = vmatprep.subr.mxu0 0.0
    %414 = vmatpush1.xpose.msra.mxu0 0.0
    %415 = vmatprep.subr.mxu0 0.0
    %416 = vmatpush1.xpose.msra.mxu0 0.0
    %417 = vmatprep.subr.mxu0 0.0
    %418 = vmatpush1.xpose.msra.mxu0 0.0
    %419 = vmatprep.subr.mxu0 0.0
    %420 = vmatpush1.xpose.msra.mxu0 0.0
    %421 = vmatprep.subr.mxu0 0.0
    %422 = vmatpush1.xpose.msra.mxu0 0.0
    %423 = vmatprep.subr.mxu0 0.0
    %424 = vmatpush1.xpose.msra.mxu0 0.0
    %425 = vmatprep.subr.mxu0 0.0
    %426 = vmatpush1.xpose.msra.mxu0 0.0
    %427 = vmatprep.subr.mxu0 0.0
    %428 = vmatpush1.xpose.msra.mxu0 0.0
    %429 = vmatprep.subr.mxu0 0.0
    %430 = vmatpush1.xpose.msra.mxu0 0.0
    %431 = vmatprep.subr.mxu0 0.0
    %432 = vmatpush1.xpose.msra.mxu0 0.0
    %433 = vmatprep.subr.mxu0 0.0
    %434 = vmatpush1.xpose.msra.mxu0 0.0
    %435 = vmatprep.subr.mxu0 0.0
    %436 = vmatpush1.xpose.msra.mxu0 0.0
    %437 = vmatprep.subr.mxu0 0.0
    %438 = vmatpush1.xpose.msra.mxu0 0.0
    %439 = vmatprep.subr.mxu0 0.0
    %440 = vmatpush1.xpose.msra.mxu0 0.0
    %441 = vmatprep.subr.mxu0 0.0
    %442 = vmatpush1.xpose.msra.mxu0 0.0
    %443 = vmatprep.subr.mxu0 0.0
    %444 = vmatpush1.xpose.msra.mxu0 0.0
    %445 = vmatprep.subr.mxu0 0.0
    %446 = vmatpush1.xpose.msra.mxu0 0.0
    %447 = vmatprep.subr.mxu0 0.0
    %448 = vmatpush1.xpose.msra.mxu0 0.0
    %449 = vmatprep.subr.mxu0 0.0
    %450 = vmatpush1.xpose.msra.mxu0 0.0
    %451 = vmatprep.subr.mxu0 0.0
    %452 = vmatpush1.xpose.msra.mxu0 0.0
    %453 = vmatprep.subr.mxu0 0.0
    %454 = vmatpush1.xpose.msra.mxu0 0.0
    %455 = vmatprep.subr.mxu0 0.0
    %456 = vmatpush1.xpose.msra.mxu0 0.0
    %457 = vmatprep.subr.mxu0 0.0
    %458 = vmatpush1.xpose.msra.mxu0 0.0
    %459 = vmatprep.subr.mxu0 0.0
    %460 = vmatpush1.xpose.msra.mxu0 0.0
    %461 = vmatprep.subr.mxu0 0.0
    %462 = vmatpush1.xpose.msra.mxu0 0.0
    %463 = vmatprep.subr.mxu0 0.0
    %464 = vmatpush1.xpose.msra.mxu0 0.0
    %465 = vmatprep.subr.mxu0 0.0
    %466 = vmatpush1.xpose.msra.mxu0 0.0
    %467 = vmatprep.subr.mxu0 0.0
    %468 = vmatpush1.xpose.msra.mxu0 0.0
    %469 = vmatprep.subr.mxu0 0.0
    %470 = vmatpush1.xpose.msra.mxu0 0.0
    %471 = vmatprep.mubr.f32.mxu0 0.0
    %472 = vmatmul.mubr.f32.gmra.mrb[0].mxu0 %v403
    %v473 = vpop.f32.mrb[0].mxu0
    %v474 = vadd.f32 0.0, %v473
    %v475 = vpop.f32.mrb[0].mxu0
    %476 = vdwg.mxu0
    %477 = vrot.lane.b32.xlu0 %v246, 80
    %v478 = vpop.permute.xlu0 %477
    %v479 = vsel %vm250, %v478, 0
    %481 = vmatprep.subr.mxu0 0.0
    %482 = vmatpush1.xpose.msra.mxu0 %v405
    %483 = vmatprep.subr.mxu0 0.0
    %484 = vmatpush1.xpose.msra.mxu0 0.0
    %485 = vmatprep.subr.mxu0 0.0
    %486 = vmatpush1.xpose.msra.mxu0 0.0
    %487 = vmatprep.subr.mxu0 0.0
    %488 = vmatpush1.xpose.msra.mxu0 0.0
    %489 = vmatprep.subr.mxu0 0.0
    %490 = vmatpush1.xpose.msra.mxu0 0.0
    %491 = vmatprep.subr.mxu0 0.0
    %492 = vmatpush1.xpose.msra.mxu0 0.0
    %493 = vmatprep.subr.mxu0 0.0
    %494 = vmatpush1.xpose.msra.mxu0 0.0
    %495 = vmatprep.subr.mxu0 0.0
    %496 = vmatpush1.xpose.msra.mxu0 0.0
    %497 = vmatprep.subr.mxu0 0.0
    %498 = vmatpush1.xpose.msra.mxu0 0.0
    %499 = vmatprep.subr.mxu0 0.0
    %500 = vmatpush1.xpose.msra.mxu0 0.0
    %501 = vmatprep.subr.mxu0 0.0
    %502 = vmatpush1.xpose.msra.mxu0 0.0
    %503 = vmatprep.subr.mxu0 0.0
    %504 = vmatpush1.xpose.msra.mxu0 0.0
    %505 = vmatprep.subr.mxu0 0.0
    %506 = vmatpush1.xpose.msra.mxu0 0.0
    %507 = vmatprep.subr.mxu0 0.0
    %508 = vmatpush1.xpose.msra.mxu0 0.0
    %509 = vmatprep.subr.mxu0 0.0
    %510 = vmatpush1.xpose.msra.mxu0 0.0
    %511 = vmatprep.subr.mxu0 0.0
    %512 = vmatpush1.xpose.msra.mxu0 0.0
    %513 = vmatprep.subr.mxu0 0.0
    %514 = vmatpush1.xpose.msra.mxu0 0.0
    %515 = vmatprep.subr.mxu0 0.0
    %516 = vmatpush1.xpose.msra.mxu0 0.0
    %517 = vmatprep.subr.mxu0 0.0
    %518 = vmatpush1.xpose.msra.mxu0 0.0
    %519 = vmatprep.subr.mxu0 0.0
    %520 = vmatpush1.xpose.msra.mxu0 0.0
    %521 = vmatprep.subr.mxu0 0.0
    %522 = vmatpush1.xpose.msra.mxu0 0.0
    %523 = vmatprep.subr.mxu0 0.0
    %524 = vmatpush1.xpose.msra.mxu0 0.0
    %525 = vmatprep.subr.mxu0 0.0
    %526 = vmatpush1.xpose.msra.mxu0 0.0
    %527 = vmatprep.subr.mxu0 0.0
    %528 = vmatpush1.xpose.msra.mxu0 0.0
    %529 = vmatprep.subr.mxu0 0.0
    %530 = vmatpush1.xpose.msra.mxu0 0.0
    %531 = vmatprep.subr.mxu0 0.0
    %532 = vmatpush1.xpose.msra.mxu0 0.0
    %533 = vmatprep.subr.mxu0 0.0
    %534 = vmatpush1.xpose.msra.mxu0 0.0
    %535 = vmatprep.subr.mxu0 0.0
    %536 = vmatpush1.xpose.msra.mxu0 0.0
    %537 = vmatprep.subr.mxu0 0.0
    %538 = vmatpush1.xpose.msra.mxu0 0.0
    %539 = vmatprep.subr.mxu0 0.0
    %540 = vmatpush1.xpose.msra.mxu0 0.0
    %541 = vmatprep.subr.mxu0 0.0
    %542 = vmatpush1.xpose.msra.mxu0 0.0
    %543 = vmatprep.subr.mxu0 0.0
    %544 = vmatpush1.xpose.msra.mxu0 0.0
    %545 = vmatprep.mubr.f32.mxu0 0.0
    %546 = vmatmul.mubr.f32.gmra.mrb[0].mxu0 %v479
    %v547 = vpop.f32.mrb[0].mxu0
    %v548 = vadd.f32 0.0, %v547
    %v549 = vpop.f32.mrb[0].mxu0
    %550 = vdwg.mxu0
    %v551 = vadd.f32 %v322, %v63
    %v552 = vadd.f32 %v396, %v64
    %v553 = vadd.f32 %v474, %v65
    %v554 = vadd.f32 %v548, %v66
    %vm555 = vcmask 64512
    %v556 = vsel %vm555, %v551, -inf
    %557 = vmax.xlane.f32.xlu0 %v556
    %v558 = vpop.xlane.xlu0 %557
    %v559 = vsel %vm555, %v552, -inf
    %560 = vmax.xlane.f32.xlu0 %v559
    %v561 = vpop.xlane.xlu0 %560
    %v562 = vsel %vm555, %v553, -inf
    %563 = vmax.xlane.f32.xlu0 %v562
    %v564 = vpop.xlane.xlu0 %563
    %v565 = vsel %vm555, %v554, -inf
    %566 = vmax.xlane.f32.xlu0 %v565
    %v567 = vpop.xlane.xlu0 %566
    %v568 = vsub.f32 %v551, %v558
    %v569 = vsub.f32 %v552, %v561
    %v570 = vsub.f32 %v553, %v564
    %v571 = vsub.f32 %v554, %v567
    %v572 = vmul.f32 %v568, 1.442695
    %v573 = vpow.pop %v572
    %v574 = vmul.f32 %v569, 1.442695
    %v575 = vpow.pop %v574
    %v576 = vmul.f32 %v570, 1.442695
    %v577 = vpow.pop %v576
    %v578 = vmul.f32 %v571, 1.442695
    %v579 = vpow.pop %v578
    %v580 = vsel %vm555, %v573, 0.0
    %581 = vadd.xlane.f32.xlu0 %v580
    %v582 = vpop.xlane.xlu0 %581
    %v583 = vsel %vm555, %v575, 0.0
    %584 = vadd.xlane.f32.xlu0 %v583
    %v585 = vpop.xlane.xlu0 %584
    %v586 = vsel %vm555, %v577, 0.0
    %587 = vadd.xlane.f32.xlu0 %v586
    %v588 = vpop.xlane.xlu0 %587
    %v589 = vsel %vm555, %v579, 0.0
    %590 = vadd.xlane.f32.xlu0 %v589
    %v591 = vpop.xlane.xlu0 %590
    %v592 = vrcp.pop %v582
    %v593 = vrcp.pop %v585
    %v594 = vrcp.pop %v588
    %v595 = vrcp.pop %v591
    %v596 = vmul.f32 %v573, %v592
    %v597 = vmul.f32 %v575, %v593
    %v598 = vmul.f32 %v577, %v594
    %v599 = vmul.f32 %v579, %v595
    %v600 = vld [vmem:[%s8] sm:$0xff]
    %v601 = vld [vmem:[%s8 + $0x8] sm:$0xff]
    %v602 = vld [vmem:[%s8 + $0x10] sm:$0xff]
    %v603 = vld [vmem:[%s8 + $0x18] sm:$0xff]
    %v604 = vld [vmem:[%s8 + $0x20] sm:$0xff]
    %v605 = vld [vmem:[%s8 + $0x28] sm:$0xff]
    %v606 = vld [vmem:[%s8 + $0x30] sm:$0xff]
    %v607 = vld [vmem:[%s8 + $0x38] sm:$0xff]
    %608 = vrot.lane.b32.xlu0 %v246, 32
    %v609 = vpop.permute.xlu0 %608
    %v612 = vsel %vm555, %v596, 0
    %614 = vmatprep.subr.mxu0 0.0
    %615 = vmatpush1.msra.mxu0 %v609
    %616 = vmatprep.subr.mxu0 0.0
    %617 = vmatpush1.msra.mxu0 0.0
    %618 = vmatprep.subr.mxu0 0.0
    %619 = vmatpush1.msra.mxu0 0.0
    %620 = vmatprep.subr.mxu0 0.0
    %621 = vmatpush1.msra.mxu0 0.0
    %622 = vmatprep.subr.mxu0 0.0
    %623 = vmatpush1.msra.mxu0 0.0
    %624 = vmatprep.subr.mxu0 0.0
    %625 = vmatpush1.msra.mxu0 0.0
    %626 = vmatprep.subr.mxu0 0.0
    %627 = vmatpush1.msra.mxu0 0.0
    %628 = vmatprep.subr.mxu0 0.0
    %629 = vmatpush1.msra.mxu0 0.0
    %630 = vmatprep.subr.mxu0 0.0
    %631 = vmatpush1.msra.mxu0 0.0
    %632 = vmatprep.subr.mxu0 0.0
    %633 = vmatpush1.msra.mxu0 0.0
    %634 = vmatprep.subr.mxu0 0.0
    %635 = vmatpush1.msra.mxu0 0.0
    %636 = vmatprep.subr.mxu0 0.0
    %637 = vmatpush1.msra.mxu0 0.0
    %638 = vmatprep.subr.mxu0 0.0
    %639 = vmatpush1.msra.mxu0 0.0
    %640 = vmatprep.subr.mxu0 0.0
    %641 = vmatpush1.msra.mxu0 0.0
    %642 = vmatprep.subr.mxu0 0.0
    %643 = vmatpush1.msra.mxu0 0.0
    %644 = vmatprep.subr.mxu0 0.0
    %645 = vmatpush1.msra.mxu0 0.0
    %646 = vmatprep.subr.mxu0 0.0
    %647 = vmatpush1.msra.mxu0 0.0
    %648 = vmatprep.subr.mxu0 0.0
    %649 = vmatpush1.msra.mxu0 0.0
    %650 = vmatprep.subr.mxu0 0.0
    %651 = vmatpush1.msra.mxu0 0.0
    %652 = vmatprep.subr.mxu0 0.0
    %653 = vmatpush1.msra.mxu0 0.0
    %654 = vmatprep.subr.mxu0 0.0
    %655 = vmatpush1.msra.mxu0 0.0
    %656 = vmatprep.subr.mxu0 0.0
    %657 = vmatpush1.msra.mxu0 0.0
    %658 = vmatprep.subr.mxu0 0.0
    %659 = vmatpush1.msra.mxu0 0.0
    %660 = vmatprep.subr.mxu0 0.0
    %661 = vmatpush1.msra.mxu0 0.0
    %662 = vmatprep.subr.mxu0 0.0
    %663 = vmatpush1.msra.mxu0 0.0
    %664 = vmatprep.subr.mxu0 0.0
    %665 = vmatpush1.msra.mxu0 0.0
    %666 = vmatprep.subr.mxu0 0.0
    %667 = vmatpush1.msra.mxu0 0.0
    %668 = vmatprep.subr.mxu0 0.0
    %669 = vmatpush1.msra.mxu0 0.0
    %670 = vmatprep.subr.mxu0 0.0
    %671 = vmatpush1.msra.mxu0 0.0
    %672 = vmatprep.subr.mxu0 0.0
    %673 = vmatpush1.msra.mxu0 0.0
    %674 = vmatprep.subr.mxu0 0.0
    %675 = vmatpush1.msra.mxu0 0.0
    %676 = vmatprep.subr.mxu0 0.0
    %677 = vmatpush1.msra.mxu0 0.0
    %678 = vmatprep.mubr.f32.mxu0 0.0
    %679 = vmatmul.mubr.f32.gmra.mrb[0].mxu0 %v612
    %v680 = vpop.f32.mrb[0].mxu0
    %v681 = vadd.f32 0.0, %v680
    %v682 = vpop.f32.mrb[0].mxu0
    %683 = vdwg.mxu0
    %v685 = vsel %vm555, %v597, 0
    %687 = vmatprep.subr.mxu0 0.0
    %688 = vmatpush1.msra.mxu0 %v609
    %689 = vmatprep.subr.mxu0 0.0
    %690 = vmatpush1.msra.mxu0 0.0
    %691 = vmatprep.subr.mxu0 0.0
    %692 = vmatpush1.msra.mxu0 0.0
    %693 = vmatprep.subr.mxu0 0.0
    %694 = vmatpush1.msra.mxu0 0.0
    %695 = vmatprep.subr.mxu0 0.0
    %696 = vmatpush1.msra.mxu0 0.0
    %697 = vmatprep.subr.mxu0 0.0
    %698 = vmatpush1.msra.mxu0 0.0
    %699 = vmatprep.subr.mxu0 0.0
    %700 = vmatpush1.msra.mxu0 0.0
    %701 = vmatprep.subr.mxu0 0.0
    %702 = vmatpush1.msra.mxu0 0.0
    %703 = vmatprep.subr.mxu0 0.0
    %704 = vmatpush1.msra.mxu0 0.0
    %705 = vmatprep.subr.mxu0 0.0
    %706 = vmatpush1.msra.mxu0 0.0
    %707 = vmatprep.subr.mxu0 0.0
    %708 = vmatpush1.msra.mxu0 0.0
    %709 = vmatprep.subr.mxu0 0.0
    %710 = vmatpush1.msra.mxu0 0.0
    %711 = vmatprep.subr.mxu0 0.0
    %712 = vmatpush1.msra.mxu0 0.0
    %713 = vmatprep.subr.mxu0 0.0
    %714 = vmatpush1.msra.mxu0 0.0
    %715 = vmatprep.subr.mxu0 0.0
    %716 = vmatpush1.msra.mxu0 0.0
    %717 = vmatprep.subr.mxu0 0.0
    %718 = vmatpush1.msra.mxu0 0.0
    %719 = vmatprep.subr.mxu0 0.0
    %720 = vmatpush1.msra.mxu0 0.0
    %721 = vmatprep.subr.mxu0 0.0
    %722 = vmatpush1.msra.mxu0 0.0
    %723 = vmatprep.subr.mxu0 0.0
    %724 = vmatpush1.msra.mxu0 0.0
    %725 = vmatprep.subr.mxu0 0.0
    %726 = vmatpush1.msra.mxu0 0.0
    %727 = vmatprep.subr.mxu0 0.0
    %728 = vmatpush1.msra.mxu0 0.0
    %729 = vmatprep.subr.mxu0 0.0
    %730 = vmatpush1.msra.mxu0 0.0
    %731 = vmatprep.subr.mxu0 0.0
    %732 = vmatpush1.msra.mxu0 0.0
    %733 = vmatprep.subr.mxu0 0.0
    %734 = vmatpush1.msra.mxu0 0.0
    %735 = vmatprep.subr.mxu0 0.0
    %736 = vmatpush1.msra.mxu0 0.0
    %737 = vmatprep.subr.mxu0 0.0
    %738 = vmatpush1.msra.mxu0 0.0
    %739 = vmatprep.subr.mxu0 0.0
    %740 = vmatpush1.msra.mxu0 0.0
    %741 = vmatprep.subr.mxu0 0.0
    %742 = vmatpush1.msra.mxu0 0.0
    %743 = vmatprep.subr.mxu0 0.0
    %744 = vmatpush1.msra.mxu0 0.0
    %745 = vmatprep.subr.mxu0 0.0
    %746 = vmatpush1.msra.mxu0 0.0
    %747 = vmatprep.subr.mxu0 0.0
    %748 = vmatpush1.msra.mxu0 0.0
    %749 = vmatprep.subr.mxu0 0.0
    %750 = vmatpush1.msra.mxu0 0.0
    %751 = vmatprep.mubr.f32.mxu0 0.0
    %752 = vmatmul.mubr.f32.gmra.mrb[0].mxu0 %v685
    %v753 = vpop.f32.mrb[0].mxu0
    %v754 = vadd.f32 0.0, %v753
    %v755 = vpop.f32.mrb[0].mxu0
    %756 = vdwg.mxu0
    %v758 = vsel %vm250, %v754, 0
    %760 = vmatprep.subr.mxu0 0.0
    %761 = vmatpush1.msra.mxu0 %v602
    %762 = vmatprep.subr.mxu0 0.0
    %763 = vmatpush1.msra.mxu0 %v603
    %764 = vmatprep.subr.mxu0 0.0
    %765 = vmatpush1.msra.mxu0 0.0
    %766 = vmatprep.subr.mxu0 0.0
    %767 = vmatpush1.msra.mxu0 0.0
    %768 = vmatprep.subr.mxu0 0.0
    %769 = vmatpush1.msra.mxu0 0.0
    %770 = vmatprep.subr.mxu0 0.0
    %771 = vmatpush1.msra.mxu0 0.0
    %772 = vmatprep.subr.mxu0 0.0
    %773 = vmatpush1.msra.mxu0 0.0
    %774 = vmatprep.subr.mxu0 0.0
    %775 = vmatpush1.msra.mxu0 0.0
    %776 = vmatprep.subr.mxu0 0.0
    %777 = vmatpush1.msra.mxu0 0.0
    %778 = vmatprep.subr.mxu0 0.0
    %779 = vmatpush1.msra.mxu0 0.0
    %780 = vmatprep.subr.mxu0 0.0
    %781 = vmatpush1.msra.mxu0 0.0
    %782 = vmatprep.subr.mxu0 0.0
    %783 = vmatpush1.msra.mxu0 0.0
    %784 = vmatprep.subr.mxu0 0.0
    %785 = vmatpush1.msra.mxu0 0.0
    %786 = vmatprep.subr.mxu0 0.0
    %787 = vmatpush1.msra.mxu0 0.0
    %788 = vmatprep.subr.mxu0 0.0
    %789 = vmatpush1.msra.mxu0 0.0
    %790 = vmatprep.subr.mxu0 0.0
    %791 = vmatpush1.msra.mxu0 0.0
    %792 = vmatprep.subr.mxu0 0.0
    %793 = vmatpush1.msra.mxu0 0.0
    %794 = vmatprep.subr.mxu0 0.0
    %795 = vmatpush1.msra.mxu0 0.0
    %796 = vmatprep.subr.mxu0 0.0
    %797 = vmatpush1.msra.mxu0 0.0
    %798 = vmatprep.subr.mxu0 0.0
    %799 = vmatpush1.msra.mxu0 0.0
    %800 = vmatprep.subr.mxu0 0.0
    %801 = vmatpush1.msra.mxu0 0.0
    %802 = vmatprep.subr.mxu0 0.0
    %803 = vmatpush1.msra.mxu0 0.0
    %804 = vmatprep.subr.mxu0 0.0
    %805 = vmatpush1.msra.mxu0 0.0
    %806 = vmatprep.subr.mxu0 0.0
    %807 = vmatpush1.msra.mxu0 0.0
    %808 = vmatprep.subr.mxu0 0.0
    %809 = vmatpush1.msra.mxu0 0.0
    %810 = vmatprep.subr.mxu0 0.0
    %811 = vmatpush1.msra.mxu0 0.0
    %812 = vmatprep.subr.mxu0 0.0
    %813 = vmatpush1.msra.mxu0 0.0
    %814 = vmatprep.subr.mxu0 0.0
    %815 = vmatpush1.msra.mxu0 0.0
    %816 = vmatprep.subr.mxu0 0.0
    %817 = vmatpush1.msra.mxu0 0.0
    %818 = vmatprep.subr.mxu0 0.0
    %819 = vmatpush1.msra.mxu0 0.0
    %820 = vmatprep.subr.mxu0 0.0
    %821 = vmatpush1.msra.mxu0 0.0
    %822 = vmatprep.subr.mxu0 0.0
    %823 = vmatpush1.msra.mxu0 0.0
    %824 = vmatprep.mubr.f32.mxu0 0.0
    %825 = vmatmul.mubr.f32.gmra.mrb[0].mxu0 %v758
    %v826 = vpop.f32.mrb[0].mxu0
    %v827 = vadd.f32 0.0, %v826
    %v828 = vpop.f32.mrb[0].mxu0
    %829 = vdwg.mxu0
    %v831 = vsel %vm250, %v681, 0
    %833 = vmatprep.subr.mxu0 0.0
    %834 = vmatpush1.msra.mxu0 %v600
    %835 = vmatprep.subr.mxu0 0.0
    %836 = vmatpush1.msra.mxu0 %v601
    %837 = vmatprep.subr.mxu0 0.0
    %838 = vmatpush1.msra.mxu0 0.0
    %839 = vmatprep.subr.mxu0 0.0
    %840 = vmatpush1.msra.mxu0 0.0
    %841 = vmatprep.subr.mxu0 0.0
    %842 = vmatpush1.msra.mxu0 0.0
    %843 = vmatprep.subr.mxu0 0.0
    %844 = vmatpush1.msra.mxu0 0.0
    %845 = vmatprep.subr.mxu0 0.0
    %846 = vmatpush1.msra.mxu0 0.0
    %847 = vmatprep.subr.mxu0 0.0
    %848 = vmatpush1.msra.mxu0 0.0
    %849 = vmatprep.subr.mxu0 0.0
    %850 = vmatpush1.msra.mxu0 0.0
    %851 = vmatprep.subr.mxu0 0.0
    %852 = vmatpush1.msra.mxu0 0.0
    %853 = vmatprep.subr.mxu0 0.0
    %854 = vmatpush1.msra.mxu0 0.0
    %855 = vmatprep.subr.mxu0 0.0
    %856 = vmatpush1.msra.mxu0 0.0
    %857 = vmatprep.subr.mxu0 0.0
    %858 = vmatpush1.msra.mxu0 0.0
    %859 = vmatprep.subr.mxu0 0.0
    %860 = vmatpush1.msra.mxu0 0.0
    %861 = vmatprep.subr.mxu0 0.0
    %862 = vmatpush1.msra.mxu0 0.0
    %863 = vmatprep.subr.mxu0 0.0
    %864 = vmatpush1.msra.mxu0 0.0
    %865 = vmatprep.subr.mxu0 0.0
    %866 = vmatpush1.msra.mxu0 0.0
    %867 = vmatprep.subr.mxu0 0.0
    %868 = vmatpush1.msra.mxu0 0.0
    %869 = vmatprep.subr.mxu0 0.0
    %870 = vmatpush1.msra.mxu0 0.0
    %871 = vmatprep.subr.mxu0 0.0
    %872 = vmatpush1.msra.mxu0 0.0
    %873 = vmatprep.subr.mxu0 0.0
    %874 = vmatpush1.msra.mxu0 0.0
    %875 = vmatprep.subr.mxu0 0.0
    %876 = vmatpush1.msra.mxu0 0.0
    %877 = vmatprep.subr.mxu0 0.0
    %878 = vmatpush1.msra.mxu0 0.0
    %879 = vmatprep.subr.mxu0 0.0
    %880 = vmatpush1.msra.mxu0 0.0
    %881 = vmatprep.subr.mxu0 0.0
    %882 = vmatpush1.msra.mxu0 0.0
    %883 = vmatprep.subr.mxu0 0.0
    %884 = vmatpush1.msra.mxu0 0.0
    %885 = vmatprep.subr.mxu0 0.0
    %886 = vmatpush1.msra.mxu0 0.0
    %887 = vmatprep.subr.mxu0 0.0
    %888 = vmatpush1.msra.mxu0 0.0
    %889 = vmatprep.subr.mxu0 0.0
    %890 = vmatpush1.msra.mxu0 0.0
    %891 = vmatprep.subr.mxu0 0.0
    %892 = vmatpush1.msra.mxu0 0.0
    %893 = vmatprep.subr.mxu0 0.0
    %894 = vmatpush1.msra.mxu0 0.0
    %895 = vmatprep.subr.mxu0 0.0
    %896 = vmatpush1.msra.mxu0 0.0
    %897 = vmatprep.mubr.f32.mxu0 0.0
    %898 = vmatmul.mubr.f32.gmra.mrb[0].mxu0 %v831
    %v899 = vpop.f32.mrb[0].mxu0
    %v900 = vadd.f32 %v827, %v899
    %v901 = vpop.f32.mrb[0].mxu0
    %902 = vdwg.mxu0
    %903 = vrot.lane.b32.xlu0 %v246, 16
    %v904 = vpop.permute.xlu0 %903
    %v907 = vsel %vm555, %v598, 0
    %909 = vmatprep.subr.mxu0 0.0
    %910 = vmatpush1.msra.mxu0 %v904
    %911 = vmatprep.subr.mxu0 0.0
    %912 = vmatpush1.msra.mxu0 0.0
    %913 = vmatprep.subr.mxu0 0.0
    %914 = vmatpush1.msra.mxu0 0.0
    %915 = vmatprep.subr.mxu0 0.0
    %916 = vmatpush1.msra.mxu0 0.0
    %917 = vmatprep.subr.mxu0 0.0
    %918 = vmatpush1.msra.mxu0 0.0
    %919 = vmatprep.subr.mxu0 0.0
    %920 = vmatpush1.msra.mxu0 0.0
    %921 = vmatprep.subr.mxu0 0.0
    %922 = vmatpush1.msra.mxu0 0.0
    %923 = vmatprep.subr.mxu0 0.0
    %924 = vmatpush1.msra.mxu0 0.0
    %925 = vmatprep.subr.mxu0 0.0
    %926 = vmatpush1.msra.mxu0 0.0
    %927 = vmatprep.subr.mxu0 0.0
    %928 = vmatpush1.msra.mxu0 0.0
    %929 = vmatprep.subr.mxu0 0.0
    %930 = vmatpush1.msra.mxu0 0.0
    %931 = vmatprep.subr.mxu0 0.0
    %932 = vmatpush1.msra.mxu0 0.0
    %933 = vmatprep.subr.mxu0 0.0
    %934 = vmatpush1.msra.mxu0 0.0
    %935 = vmatprep.subr.mxu0 0.0
    %936 = vmatpush1.msra.mxu0 0.0
    %937 = vmatprep.subr.mxu0 0.0
    %938 = vmatpush1.msra.mxu0 0.0
    %939 = vmatprep.subr.mxu0 0.0
    %940 = vmatpush1.msra.mxu0 0.0
    %941 = vmatprep.subr.mxu0 0.0
    %942 = vmatpush1.msra.mxu0 0.0
    %943 = vmatprep.subr.mxu0 0.0
    %944 = vmatpush1.msra.mxu0 0.0
    %945 = vmatprep.subr.mxu0 0.0
    %946 = vmatpush1.msra.mxu0 0.0
    %947 = vmatprep.subr.mxu0 0.0
    %948 = vmatpush1.msra.mxu0 0.0
    %949 = vmatprep.subr.mxu0 0.0
    %950 = vmatpush1.msra.mxu0 0.0
    %951 = vmatprep.subr.mxu0 0.0
    %952 = vmatpush1.msra.mxu0 0.0
    %953 = vmatprep.subr.mxu0 0.0
    %954 = vmatpush1.msra.mxu0 0.0
    %955 = vmatprep.subr.mxu0 0.0
    %956 = vmatpush1.msra.mxu0 0.0
    %957 = vmatprep.subr.mxu0 0.0
    %958 = vmatpush1.msra.mxu0 0.0
    %959 = vmatprep.subr.mxu0 0.0
    %960 = vmatpush1.msra.mxu0 0.0
    %961 = vmatprep.subr.mxu0 0.0
    %962 = vmatpush1.msra.mxu0 0.0
    %963 = vmatprep.subr.mxu0 0.0
    %964 = vmatpush1.msra.mxu0 0.0
    %965 = vmatprep.subr.mxu0 0.0
    %966 = vmatpush1.msra.mxu0 0.0
    %967 = vmatprep.subr.mxu0 0.0
    %968 = vmatpush1.msra.mxu0 0.0
    %969 = vmatprep.subr.mxu0 0.0
    %970 = vmatpush1.msra.mxu0 0.0
    %971 = vmatprep.subr.mxu0 0.0
    %972 = vmatpush1.msra.mxu0 0.0
    %973 = vmatprep.mubr.f32.mxu0 0.0
    %974 = vmatmul.mubr.f32.gmra.mrb[0].mxu0 %v907
    %v975 = vpop.f32.mrb[0].mxu0
    %v976 = vadd.f32 0.0, %v975
    %v977 = vpop.f32.mrb[0].mxu0
    %978 = vdwg.mxu0
    %v980 = vsel %vm250, %v976, 0
    %982 = vmatprep.subr.mxu0 0.0
    %983 = vmatpush1.msra.mxu0 %v604
    %984 = vmatprep.subr.mxu0 0.0
    %985 = vmatpush1.msra.mxu0 %v605
    %986 = vmatprep.subr.mxu0 0.0
    %987 = vmatpush1.msra.mxu0 0.0
    %988 = vmatprep.subr.mxu0 0.0
    %989 = vmatpush1.msra.mxu0 0.0
    %990 = vmatprep.subr.mxu0 0.0
    %991 = vmatpush1.msra.mxu0 0.0
    %992 = vmatprep.subr.mxu0 0.0
    %993 = vmatpush1.msra.mxu0 0.0
    %994 = vmatprep.subr.mxu0 0.0
    %995 = vmatpush1.msra.mxu0 0.0
    %996 = vmatprep.subr.mxu0 0.0
    %997 = vmatpush1.msra.mxu0 0.0
    %998 = vmatprep.subr.mxu0 0.0
    %999 = vmatpush1.msra.mxu0 0.0
    %1000 = vmatprep.subr.mxu0 0.0
    %1001 = vmatpush1.msra.mxu0 0.0
    %1002 = vmatprep.subr.mxu0 0.0
    %1003 = vmatpush1.msra.mxu0 0.0
    %1004 = vmatprep.subr.mxu0 0.0
    %1005 = vmatpush1.msra.mxu0 0.0
    %1006 = vmatprep.subr.mxu0 0.0
    %1007 = vmatpush1.msra.mxu0 0.0
    %1008 = vmatprep.subr.mxu0 0.0
    %1009 = vmatpush1.msra.mxu0 0.0
    %1010 = vmatprep.subr.mxu0 0.0
    %1011 = vmatpush1.msra.mxu0 0.0
    %1012 = vmatprep.subr.mxu0 0.0
    %1013 = vmatpush1.msra.mxu0 0.0
    %1014 = vmatprep.subr.mxu0 0.0
    %1015 = vmatpush1.msra.mxu0 0.0
    %1016 = vmatprep.subr.mxu0 0.0
    %1017 = vmatpush1.msra.mxu0 0.0
    %1018 = vmatprep.subr.mxu0 0.0
    %1019 = vmatpush1.msra.mxu0 0.0
    %1020 = vmatprep.subr.mxu0 0.0
    %1021 = vmatpush1.msra.mxu0 0.0
    %1022 = vmatprep.subr.mxu0 0.0
    %1023 = vmatpush1.msra.mxu0 0.0
    %1024 = vmatprep.subr.mxu0 0.0
    %1025 = vmatpush1.msra.mxu0 0.0
    %1026 = vmatprep.subr.mxu0 0.0
    %1027 = vmatpush1.msra.mxu0 0.0
    %1028 = vmatprep.subr.mxu0 0.0
    %1029 = vmatpush1.msra.mxu0 0.0
    %1030 = vmatprep.subr.mxu0 0.0
    %1031 = vmatpush1.msra.mxu0 0.0
    %1032 = vmatprep.subr.mxu0 0.0
    %1033 = vmatpush1.msra.mxu0 0.0
    %1034 = vmatprep.subr.mxu0 0.0
    %1035 = vmatpush1.msra.mxu0 0.0
    %1036 = vmatprep.subr.mxu0 0.0
    %1037 = vmatpush1.msra.mxu0 0.0
    %1038 = vmatprep.subr.mxu0 0.0
    %1039 = vmatpush1.msra.mxu0 0.0
    %1040 = vmatprep.subr.mxu0 0.0
    %1041 = vmatpush1.msra.mxu0 0.0
    %1042 = vmatprep.subr.mxu0 0.0
    %1043 = vmatpush1.msra.mxu0 0.0
    %1044 = vmatprep.subr.mxu0 0.0
    %1045 = vmatpush1.msra.mxu0 0.0
    %1046 = vmatprep.mubr.f32.mxu0 0.0
    %1047 = vmatmul.mubr.f32.gmra.mrb[0].mxu0 %v980
    %v1048 = vpop.f32.mrb[0].mxu0
    %v1049 = vadd.f32 0.0, %v1048
    %v1050 = vpop.f32.mrb[0].mxu0
    %1051 = vdwg.mxu0
    %v1052 = vadd.f32 %v900, %v1049
    %v1054 = vsel %vm555, %v599, 0
    %1056 = vmatprep.subr.mxu0 0.0
    %1057 = vmatpush1.msra.mxu0 %v904
    %1058 = vmatprep.subr.mxu0 0.0
    %1059 = vmatpush1.msra.mxu0 0.0
    %1060 = vmatprep.subr.mxu0 0.0
    %1061 = vmatpush1.msra.mxu0 0.0
    %1062 = vmatprep.subr.mxu0 0.0
    %1063 = vmatpush1.msra.mxu0 0.0
    %1064 = vmatprep.subr.mxu0 0.0
    %1065 = vmatpush1.msra.mxu0 0.0
    %1066 = vmatprep.subr.mxu0 0.0
    %1067 = vmatpush1.msra.mxu0 0.0
    %1068 = vmatprep.subr.mxu0 0.0
    %1069 = vmatpush1.msra.mxu0 0.0
    %1070 = vmatprep.subr.mxu0 0.0
    %1071 = vmatpush1.msra.mxu0 0.0
    %1072 = vmatprep.subr.mxu0 0.0
    %1073 = vmatpush1.msra.mxu0 0.0
    %1074 = vmatprep.subr.mxu0 0.0
    %1075 = vmatpush1.msra.mxu0 0.0
    %1076 = vmatprep.subr.mxu0 0.0
    %1077 = vmatpush1.msra.mxu0 0.0
    %1078 = vmatprep.subr.mxu0 0.0
    %1079 = vmatpush1.msra.mxu0 0.0
    %1080 = vmatprep.subr.mxu0 0.0
    %1081 = vmatpush1.msra.mxu0 0.0
    %1082 = vmatprep.subr.mxu0 0.0
    %1083 = vmatpush1.msra.mxu0 0.0
    %1084 = vmatprep.subr.mxu0 0.0
    %1085 = vmatpush1.msra.mxu0 0.0
    %1086 = vmatprep.subr.mxu0 0.0
    %1087 = vmatpush1.msra.mxu0 0.0
    %1088 = vmatprep.subr.mxu0 0.0
    %1089 = vmatpush1.msra.mxu0 0.0
    %1090 = vmatprep.subr.mxu0 0.0
    %1091 = vmatpush1.msra.mxu0 0.0
    %1092 = vmatprep.subr.mxu0 0.0
    %1093 = vmatpush1.msra.mxu0 0.0
    %1094 = vmatprep.subr.mxu0 0.0
    %1095 = vmatpush1.msra.mxu0 0.0
    %1096 = vmatprep.subr.mxu0 0.0
    %1097 = vmatpush1.msra.mxu0 0.0
    %1098 = vmatprep.subr.mxu0 0.0
    %1099 = vmatpush1.msra.mxu0 0.0
    %1100 = vmatprep.subr.mxu0 0.0
    %1101 = vmatpush1.msra.mxu0 0.0
    %1102 = vmatprep.subr.mxu0 0.0
    %1103 = vmatpush1.msra.mxu0 0.0
    %1104 = vmatprep.subr.mxu0 0.0
    %1105 = vmatpush1.msra.mxu0 0.0
    %1106 = vmatprep.subr.mxu0 0.0
    %1107 = vmatpush1.msra.mxu0 0.0
    %1108 = vmatprep.subr.mxu0 0.0
    %1109 = vmatpush1.msra.mxu0 0.0
    %1110 = vmatprep.subr.mxu0 0.0
    %1111 = vmatpush1.msra.mxu0 0.0
    %1112 = vmatprep.subr.mxu0 0.0
    %1113 = vmatpush1.msra.mxu0 0.0
    %1114 = vmatprep.subr.mxu0 0.0
    %1115 = vmatpush1.msra.mxu0 0.0
    %1116 = vmatprep.subr.mxu0 0.0
    %1117 = vmatpush1.msra.mxu0 0.0
    %1118 = vmatprep.subr.mxu0 0.0
    %1119 = vmatpush1.msra.mxu0 0.0
    %1120 = vmatprep.mubr.f32.mxu0 0.0
    %1121 = vmatmul.mubr.f32.gmra.mrb[0].mxu0 %v1054
    %v1122 = vpop.f32.mrb[0].mxu0
    %v1123 = vadd.f32 0.0, %v1122
    %v1124 = vpop.f32.mrb[0].mxu0
    %1125 = vdwg.mxu0
    %v1127 = vsel %vm250, %v1123, 0
    %1129 = vmatprep.subr.mxu0 0.0
    %1130 = vmatpush1.msra.mxu0 %v606
    %1131 = vmatprep.subr.mxu0 0.0
    %1132 = vmatpush1.msra.mxu0 %v607
    %1133 = vmatprep.subr.mxu0 0.0
    %1134 = vmatpush1.msra.mxu0 0.0
    %1135 = vmatprep.subr.mxu0 0.0
    %1136 = vmatpush1.msra.mxu0 0.0
    %1137 = vmatprep.subr.mxu0 0.0
    %1138 = vmatpush1.msra.mxu0 0.0
    %1139 = vmatprep.subr.mxu0 0.0
    %1140 = vmatpush1.msra.mxu0 0.0
    %1141 = vmatprep.subr.mxu0 0.0
    %1142 = vmatpush1.msra.mxu0 0.0
    %1143 = vmatprep.subr.mxu0 0.0
    %1144 = vmatpush1.msra.mxu0 0.0
    %1145 = vmatprep.subr.mxu0 0.0
    %1146 = vmatpush1.msra.mxu0 0.0
    %1147 = vmatprep.subr.mxu0 0.0
    %1148 = vmatpush1.msra.mxu0 0.0
    %1149 = vmatprep.subr.mxu0 0.0
    %1150 = vmatpush1.msra.mxu0 0.0
    %1151 = vmatprep.subr.mxu0 0.0
    %1152 = vmatpush1.msra.mxu0 0.0
    %1153 = vmatprep.subr.mxu0 0.0
    %1154 = vmatpush1.msra.mxu0 0.0
    %1155 = vmatprep.subr.mxu0 0.0
    %1156 = vmatpush1.msra.mxu0 0.0
    %1157 = vmatprep.subr.mxu0 0.0
    %1158 = vmatpush1.msra.mxu0 0.0
    %1159 = vmatprep.subr.mxu0 0.0
    %1160 = vmatpush1.msra.mxu0 0.0
    %1161 = vmatprep.subr.mxu0 0.0
    %1162 = vmatpush1.msra.mxu0 0.0
    %1163 = vmatprep.subr.mxu0 0.0
    %1164 = vmatpush1.msra.mxu0 0.0
    %1165 = vmatprep.subr.mxu0 0.0
    %1166 = vmatpush1.msra.mxu0 0.0
    %1167 = vmatprep.subr.mxu0 0.0
    %1168 = vmatpush1.msra.mxu0 0.0
    %1169 = vmatprep.subr.mxu0 0.0
    %1170 = vmatpush1.msra.mxu0 0.0
    %1171 = vmatprep.subr.mxu0 0.0
    %1172 = vmatpush1.msra.mxu0 0.0
    %1173 = vmatprep.subr.mxu0 0.0
    %1174 = vmatpush1.msra.mxu0 0.0
    %1175 = vmatprep.subr.mxu0 0.0
    %1176 = vmatpush1.msra.mxu0 0.0
    %1177 = vmatprep.subr.mxu0 0.0
    %1178 = vmatpush1.msra.mxu0 0.0
    %1179 = vmatprep.subr.mxu0 0.0
    %1180 = vmatpush1.msra.mxu0 0.0
    %1181 = vmatprep.subr.mxu0 0.0
    %1182 = vmatpush1.msra.mxu0 0.0
    %1183 = vmatprep.subr.mxu0 0.0
    %1184 = vmatpush1.msra.mxu0 0.0
    %1185 = vmatprep.subr.mxu0 0.0
    %1186 = vmatpush1.msra.mxu0 0.0
    %1187 = vmatprep.subr.mxu0 0.0
    %1188 = vmatpush1.msra.mxu0 0.0
    %1189 = vmatprep.subr.mxu0 0.0
    %1190 = vmatpush1.msra.mxu0 0.0
    %1191 = vmatprep.subr.mxu0 0.0
    %1192 = vmatpush1.msra.mxu0 0.0
    %1193 = vmatprep.mubr.f32.mxu0 0.0
    %1194 = vmatmul.mubr.f32.gmra.mrb[0].mxu0 %v1127
    %v1195 = vpop.f32.mrb[0].mxu0
    %v1196 = vadd.f32 0.0, %v1195
    %v1197 = vpop.f32.mrb[0].mxu0
    %1198 = vdwg.mxu0
    %v1199 = vadd.f32 %v1052, %v1196
    %v1200 = vadd.f32 %v1199, %v67
    %v1201 = vld [vmem:[%s9] sm:$0x1]
    %v1202 = vmul.f32 %v1200, %v1200
    %v1203 = vsel %vm70, %v1202, 0.0
    %1204 = vadd.xlane.f32.xlu0 %v1203
    %v1205 = vpop.xlane.xlu0 %1204
    %v1206 = vmul.f32 %v1205, %v74
    %v1207 = vadd.f32 %v1206, 1e-06
    %v1208 = vrsqrt.pop %v1207
    %v1209 = vmul.f32 %v1200, %v1208
    %v1211 = vlaneseq
    %v1212 = vshrl.u32 %v1211, 7
    %v1213 = vsub.s32 0, %v1212
    %v1214 = vrot.slane %v1201, %v1213
    %v1216 = vmul.f32 %v1209, %v1214
    %v1217 = vld [vmem:[%s10] sm:$0xff]
    %v1218 = vld [vmem:[%s10 + $0x8] sm:$0xff]
    %v1219 = vld [vmem:[%s10 + $0x10] sm:$0xff]
    %v1220 = vld [vmem:[%s10 + $0x18] sm:$0xff]
    %v1221 = vld [vmem:[%s10 + $0x20] sm:$0xff]
    %v1222 = vld [vmem:[%s10 + $0x28] sm:$0xff]
    %v1223 = vld [vmem:[%s10 + $0x30] sm:$0xff]
    %v1224 = vld [vmem:[%s10 + $0x38] sm:$0xff]
    %v1225 = vld [vmem:[%s10 + $0x40] sm:$0xff]
    %v1226 = vld [vmem:[%s10 + $0x48] sm:$0xff]
    %v1227 = vld [vmem:[%s10 + $0x50] sm:$0xff]
    %v1228 = vld [vmem:[%s10 + $0x58] sm:$0xff]
    %v1229 = vld [vmem:[%s10 + $0x60] sm:$0xff]
    %v1230 = vld [vmem:[%s10 + $0x68] sm:$0xff]
    %v1231 = vld [vmem:[%s10 + $0x70] sm:$0xff]
    %v1232 = vld [vmem:[%s10 + $0x78] sm:$0xff]
    %v1234 = vsel %vm70, %v1216, 0
    %1236 = vmatprep.subr.mxu0 %v1218
    %1237 = vmatpush1.msra.mxu0 %v1217
    %1238 = vmatprep.subr.mxu0 %v1220
    %1239 = vmatpush1.msra.mxu0 %v1219
    %1240 = vmatprep.subr.mxu0 %v1222
    %1241 = vmatpush1.msra.mxu0 %v1221
    %1242 = vmatprep.subr.mxu0 %v1224
    %1243 = vmatpush1.msra.mxu0 %v1223
    %1244 = vmatprep.subr.mxu0 %v1226
    %1245 = vmatpush1.msra.mxu0 %v1225
    %1246 = vmatprep.subr.mxu0 %v1228
    %1247 = vmatpush1.msra.mxu0 %v1227
    %1248 = vmatprep.subr.mxu0 %v1230
    %1249 = vmatpush1.msra.mxu0 %v1229
    %1250 = vmatprep.subr.mxu0 %v1232
    %1251 = vmatpush1.msra.mxu0 %v1231
    %1252 = vmatprep.subr.mxu0 0.0
    %1253 = vmatpush1.msra.mxu0 0.0
    %1254 = vmatprep.subr.mxu0 0.0
    %1255 = vmatpush1.msra.mxu0 0.0
    %1256 = vmatprep.subr.mxu0 0.0
    %1257 = vmatpush1.msra.mxu0 0.0
    %1258 = vmatprep.subr.mxu0 0.0
    %1259 = vmatpush1.msra.mxu0 0.0
    %1260 = vmatprep.subr.mxu0 0.0
    %1261 = vmatpush1.msra.mxu0 0.0
    %1262 = vmatprep.subr.mxu0 0.0
    %1263 = vmatpush1.msra.mxu0 0.0
    %1264 = vmatprep.subr.mxu0 0.0
    %1265 = vmatpush1.msra.mxu0 0.0
    %1266 = vmatprep.subr.mxu0 0.0
    %1267 = vmatpush1.msra.mxu0 0.0
    %1268 = vmatprep.subr.mxu0 0.0
    %1269 = vmatpush1.msra.mxu0 0.0
    %1270 = vmatprep.subr.mxu0 0.0
    %1271 = vmatpush1.msra.mxu0 0.0
    %1272 = vmatprep.subr.mxu0 0.0
    %1273 = vmatpush1.msra.mxu0 0.0
    %1274 = vmatprep.subr.mxu0 0.0
    %1275 = vmatpush1.msra.mxu0 0.0
    %1276 = vmatprep.subr.mxu0 0.0
    %1277 = vmatpush1.msra.mxu0 0.0
    %1278 = vmatprep.subr.mxu0 0.0
    %1279 = vmatpush1.msra.mxu0 0.0
    %1280 = vmatprep.subr.mxu0 0.0
    %1281 = vmatpush1.msra.mxu0 0.0
    %1282 = vmatprep.subr.mxu0 0.0
    %1283 = vmatpush1.msra.mxu0 0.0
    %1284 = vmatprep.subr.mxu0 0.0
    %1285 = vmatpush1.msra.mxu0 0.0
    %1286 = vmatprep.subr.mxu0 0.0
    %1287 = vmatpush1.msra.mxu0 0.0
    %1288 = vmatprep.subr.mxu0 0.0
    %1289 = vmatpush1.msra.mxu0 0.0
    %1290 = vmatprep.subr.mxu0 0.0
    %1291 = vmatpush1.msra.mxu0 0.0
    %1292 = vmatprep.subr.mxu0 0.0
    %1293 = vmatpush1.msra.mxu0 0.0
    %1294 = vmatprep.subr.mxu0 0.0
    %1295 = vmatpush1.msra.mxu0 0.0
    %1296 = vmatprep.subr.mxu0 0.0
    %1297 = vmatpush1.msra.mxu0 0.0
    %1298 = vmatprep.subr.mxu0 0.0
    %1299 = vmatpush1.msra.mxu0 0.0
    %1300 = vmatprep.mubr.f32.mxu0 0.0
    %1301 = vmatmul.mubr.f32.gmra.mrb[0].mxu0 %v1234
    %v1302 = vpop.f32.mrb[0].mxu0
    %v1303 = vadd.f32 0.0, %v1302
    %v1304 = vpop.f32.mrb[0].mxu0
    %v1305 = vadd.f32 0.0, %v1304
    %1306 = vdwg.mxu0
    %v1307 = vxor.u32 %v1303, 2147483648
    %v1308 = vmul.f32 %v1307, 1.442695
    %v1309 = vpow.pop %v1308
    %v1310 = vadd.f32 %v1309, 1.0
    %v1311 = vrcp.pop %v1310
    %v1312 = vmul.f32 1.0, %v1311
    %v1313 = vmul.f32 %v1303, %v1312
    %v1314 = vmul.f32 %v1313, %v1305
    %v1315 = vld [vmem:[%s11] sm:$0xff]
    %v1316 = vld [vmem:[%s11 + $0x8] sm:$0xff]
    %v1317 = vld [vmem:[%s11 + $0x10] sm:$0xff]
    %v1318 = vld [vmem:[%s11 + $0x18] sm:$0xff]
    %v1319 = vld [vmem:[%s11 + $0x20] sm:$0xff]
    %v1320 = vld [vmem:[%s11 + $0x28] sm:$0xff]
    %v1321 = vld [vmem:[%s11 + $0x30] sm:$0xff]
    %v1322 = vld [vmem:[%s11 + $0x38] sm:$0xff]
    %v1323 = vld [vmem:[%s11 + $0x40] sm:$0xff]
    %v1324 = vld [vmem:[%s11 + $0x48] sm:$0xff]
    %v1325 = vld [vmem:[%s11 + $0x50] sm:$0xff]
    %v1326 = vld [vmem:[%s11 + $0x58] sm:$0xff]
    %v1327 = vld [vmem:[%s11 + $0x60] sm:$0xff]
    %v1328 = vld [vmem:[%s11 + $0x68] sm:$0xff]
    %v1329 = vld [vmem:[%s11 + $0x70] sm:$0xff]
    %v1330 = vld [vmem:[%s11 + $0x78] sm:$0xff]
    %1331 = vmatprep.subr.mxu0 0.0
    %1332 = vmatpush1.msra.mxu0 %v1315
    %1333 = vmatprep.subr.mxu0 0.0
    %1334 = vmatpush1.msra.mxu0 %v1316
    %1335 = vmatprep.subr.mxu0 0.0
    %1336 = vmatpush1.msra.mxu0 %v1317
    %1337 = vmatprep.subr.mxu0 0.0
    %1338 = vmatpush1.msra.mxu0 %v1318
    %1339 = vmatprep.subr.mxu0 0.0
    %1340 = vmatpush1.msra.mxu0 %v1319
    %1341 = vmatprep.subr.mxu0 0.0
    %1342 = vmatpush1.msra.mxu0 %v1320
    %1343 = vmatprep.subr.mxu0 0.0
    %1344 = vmatpush1.msra.mxu0 %v1321
    %1345 = vmatprep.subr.mxu0 0.0
    %1346 = vmatpush1.msra.mxu0 %v1322
    %1347 = vmatprep.subr.mxu0 0.0
    %1348 = vmatpush1.msra.mxu0 %v1323
    %1349 = vmatprep.subr.mxu0 0.0
    %1350 = vmatpush1.msra.mxu0 %v1324
    %1351 = vmatprep.subr.mxu0 0.0
    %1352 = vmatpush1.msra.mxu0 %v1325
    %1353 = vmatprep.subr.mxu0 0.0
    %1354 = vmatpush1.msra.mxu0 %v1326
    %1355 = vmatprep.subr.mxu0 0.0
    %1356 = vmatpush1.msra.mxu0 %v1327
    %1357 = vmatprep.subr.mxu0 0.0
    %1358 = vmatpush1.msra.mxu0 %v1328
    %1359 = vmatprep.subr.mxu0 0.0
    %1360 = vmatpush1.msra.mxu0 %v1329
    %1361 = vmatprep.subr.mxu0 0.0
    %1362 = vmatpush1.msra.mxu0 %v1330
    %1363 = vmatprep.subr.mxu0 0.0
    %1364 = vmatpush1.msra.mxu0 0.0
    %1365 = vmatprep.subr.mxu0 0.0
    %1366 = vmatpush1.msra.mxu0 0.0
    %1367 = vmatprep.subr.mxu0 0.0
    %1368 = vmatpush1.msra.mxu0 0.0
    %1369 = vmatprep.subr.mxu0 0.0
    %1370 = vmatpush1.msra.mxu0 0.0
    %1371 = vmatprep.subr.mxu0 0.0
    %1372 = vmatpush1.msra.mxu0 0.0
    %1373 = vmatprep.subr.mxu0 0.0
    %1374 = vmatpush1.msra.mxu0 0.0
    %1375 = vmatprep.subr.mxu0 0.0
    %1376 = vmatpush1.msra.mxu0 0.0
    %1377 = vmatprep.subr.mxu0 0.0
    %1378 = vmatpush1.msra.mxu0 0.0
    %1379 = vmatprep.subr.mxu0 0.0
    %1380 = vmatpush1.msra.mxu0 0.0
    %1381 = vmatprep.subr.mxu0 0.0
    %1382 = vmatpush1.msra.mxu0 0.0
    %1383 = vmatprep.subr.mxu0 0.0
    %1384 = vmatpush1.msra.mxu0 0.0
    %1385 = vmatprep.subr.mxu0 0.0
    %1386 = vmatpush1.msra.mxu0 0.0
    %1387 = vmatprep.subr.mxu0 0.0
    %1388 = vmatpush1.msra.mxu0 0.0
    %1389 = vmatprep.subr.mxu0 0.0
    %1390 = vmatpush1.msra.mxu0 0.0
    %1391 = vmatprep.subr.mxu0 0.0
    %1392 = vmatpush1.msra.mxu0 0.0
    %1393 = vmatprep.subr.mxu0 0.0
    %1394 = vmatpush1.msra.mxu0 0.0
    %1395 = vmatprep.mubr.f32.mxu0 0.0
    %1396 = vmatmul.mubr.f32.gmra.mrb[0].mxu0 %v1314
    %v1397 = vpop.f32.mrb[0].mxu0
    %v1398 = vadd.f32 %v1200, %v1397
    %v1399 = vpop.f32.mrb[0].mxu0
    %1400 = vdwg.mxu0
    %s1401 = scalar_lea.vmem %s5, 1
    %v1402 = vld [vmem:[%s1401] sm:$0x1]
    %v1403 = vmul.f32 %v1398, %v1398
    %v1404 = vsel %vm70, %v1403, 0.0
    %1405 = vadd.xlane.f32.xlu0 %v1404
    %v1406 = vpop.xlane.xlu0 %1405
    %v1407 = vmul.f32 %v1406, %v74
    %v1408 = vadd.f32 %v1407, 1e-06
    %v1409 = vrsqrt.pop %v1408
    %v1410 = vmul.f32 %v1398, %v1409
    %v1412 = vlaneseq
    %v1413 = vshrl.u32 %v1412, 7
    %v1414 = vsub.s32 0, %v1413
    %v1415 = vrot.slane %v1402, %v1414
    %v1417 = vmul.f32 %v1410, %v1415
    %s1418 = scalar_lea.vmem %s6, 64
    %v1419 = vld [vmem:[%s1418] sm:$0xff]
    %v1420 = vld [vmem:[%s1418 + $0x8] sm:$0xff]
    %v1421 = vld [vmem:[%s1418 + $0x10] sm:$0xff]
    %v1422 = vld [vmem:[%s1418 + $0x18] sm:$0xff]
    %v1423 = vld [vmem:[%s1418 + $0x20] sm:$0xff]
    %v1424 = vld [vmem:[%s1418 + $0x28] sm:$0xff]
    %v1425 = vld [vmem:[%s1418 + $0x30] sm:$0xff]
    %v1426 = vld [vmem:[%s1418 + $0x38] sm:$0xff]
    %s1427 = scalar_lea.vmem %s7, 1
    %v1428 = vld [vmem:[%s1427] sm:$0x1]
    %v1430 = vlaneseq
    %v1431 = vshrl.u32 %v1430, 7
    %v1432 = vsub.s32 0, %v1431
    %v1433 = vrot.slane %v1428, %v1432
    %v1436 = vsel %vm70, %v1417, 0
    %1438 = vmatprep.subr.mxu0 0.0
    %1439 = vmatpush1.msra.mxu0 %v1419
    %1440 = vmatprep.subr.mxu0 0.0
    %1441 = vmatpush1.msra.mxu0 %v1420
    %1442 = vmatprep.subr.mxu0 0.0
    %1443 = vmatpush1.msra.mxu0 %v1421
    %1444 = vmatprep.subr.mxu0 0.0
    %1445 = vmatpush1.msra.mxu0 %v1422
    %1446 = vmatprep.subr.mxu0 0.0
    %1447 = vmatpush1.msra.mxu0 %v1423
    %1448 = vmatprep.subr.mxu0 0.0
    %1449 = vmatpush1.msra.mxu0 %v1424
    %1450 = vmatprep.subr.mxu0 0.0
    %1451 = vmatpush1.msra.mxu0 %v1425
    %1452 = vmatprep.subr.mxu0 0.0
    %1453 = vmatpush1.msra.mxu0 %v1426
    %1454 = vmatprep.subr.mxu0 0.0
    %1455 = vmatpush1.msra.mxu0 0.0
    %1456 = vmatprep.subr.mxu0 0.0
    %1457 = vmatpush1.msra.mxu0 0.0
    %1458 = vmatprep.subr.mxu0 0.0
    %1459 = vmatpush1.msra.mxu0 0.0
    %1460 = vmatprep.subr.mxu0 0.0
    %1461 = vmatpush1.msra.mxu0 0.0
    %1462 = vmatprep.subr.mxu0 0.0
    %1463 = vmatpush1.msra.mxu0 0.0
    %1464 = vmatprep.subr.mxu0 0.0
    %1465 = vmatpush1.msra.mxu0 0.0
    %1466 = vmatprep.subr.mxu0 0.0
    %1467 = vmatpush1.msra.mxu0 0.0
    %1468 = vmatprep.subr.mxu0 0.0
    %1469 = vmatpush1.msra.mxu0 0.0
    %1470 = vmatprep.subr.mxu0 0.0
    %1471 = vmatpush1.msra.mxu0 0.0
    %1472 = vmatprep.subr.mxu0 0.0
    %1473 = vmatpush1.msra.mxu0 0.0
    %1474 = vmatprep.subr.mxu0 0.0
    %1475 = vmatpush1.msra.mxu0 0.0
    %1476 = vmatprep.subr.mxu0 0.0
    %1477 = vmatpush1.msra.mxu0 0.0
    %1478 = vmatprep.subr.mxu0 0.0
    %1479 = vmatpush1.msra.mxu0 0.0
    %1480 = vmatprep.subr.mxu0 0.0
    %1481 = vmatpush1.msra.mxu0 0.0
    %1482 = vmatprep.subr.mxu0 0.0
    %1483 = vmatpush1.msra.mxu0 0.0
    %1484 = vmatprep.subr.mxu0 0.0
    %1485 = vmatpush1.msra.mxu0 0.0
    %1486 = vmatprep.subr.mxu0 0.0
    %1487 = vmatpush1.msra.mxu0 0.0
    %1488 = vmatprep.subr.mxu0 0.0
    %1489 = vmatpush1.msra.mxu0 0.0
    %1490 = vmatprep.subr.mxu0 0.0
    %1491 = vmatpush1.msra.mxu0 0.0
    %1492 = vmatprep.subr.mxu0 0.0
    %1493 = vmatpush1.msra.mxu0 0.0
    %1494 = vmatprep.subr.mxu0 0.0
    %1495 = vmatpush1.msra.mxu0 0.0
    %1496 = vmatprep.subr.mxu0 0.0
    %1497 = vmatpush1.msra.mxu0 0.0
    %1498 = vmatprep.subr.mxu0 0.0
    %1499 = vmatpush1.msra.mxu0 0.0
    %1500 = vmatprep.subr.mxu0 0.0
    %1501 = vmatpush1.msra.mxu0 0.0
    %1502 = vmatprep.mubr.f32.mxu0 0.0
    %1503 = vmatmul.mubr.f32.gmra.mrb[0].mxu0 %v1436
    %v1504 = vpop.f32.mrb[0].mxu0
    %v1505 = vadd.f32 %v1433, %v1504
    %v1506 = vpop.f32.mrb[0].mxu0
    %1507 = vdwg.mxu0
    %v1508 = vmul.f32 %v1505, %v45
    %1509 = vmatprep.subr.mxu0 0.0
    %1510 = vmatpush1.msra.mxu0 %v47
    %1511 = vmatprep.subr.mxu0 0.0
    %1512 = vmatpush1.msra.mxu0 %v48
    %1513 = vmatprep.subr.mxu0 0.0
    %1514 = vmatpush1.msra.mxu0 %v49
    %1515 = vmatprep.subr.mxu0 0.0
    %1516 = vmatpush1.msra.mxu0 %v50
    %1517 = vmatprep.subr.mxu0 0.0
    %1518 = vmatpush1.msra.mxu0 %v51
    %1519 = vmatprep.subr.mxu0 0.0
    %1520 = vmatpush1.msra.mxu0 %v52
    %1521 = vmatprep.subr.mxu0 0.0
    %1522 = vmatpush1.msra.mxu0 %v53
    %1523 = vmatprep.subr.mxu0 0.0
    %1524 = vmatpush1.msra.mxu0 %v54
    %1525 = vmatprep.subr.mxu0 0.0
    %1526 = vmatpush1.msra.mxu0 %v55
    %1527 = vmatprep.subr.mxu0 0.0
    %1528 = vmatpush1.msra.mxu0 %v56
    %1529 = vmatprep.subr.mxu0 0.0
    %1530 = vmatpush1.msra.mxu0 %v57
    %1531 = vmatprep.subr.mxu0 0.0
    %1532 = vmatpush1.msra.mxu0 %v58
    %1533 = vmatprep.subr.mxu0 0.0
    %1534 = vmatpush1.msra.mxu0 %v59
    %1535 = vmatprep.subr.mxu0 0.0
    %1536 = vmatpush1.msra.mxu0 %v60
    %1537 = vmatprep.subr.mxu0 0.0
    %1538 = vmatpush1.msra.mxu0 %v61
    %1539 = vmatprep.subr.mxu0 0.0
    %1540 = vmatpush1.msra.mxu0 %v62
    %1541 = vmatprep.subr.mxu0 0.0
    %1542 = vmatpush1.msra.mxu0 0.0
    %1543 = vmatprep.subr.mxu0 0.0
    %1544 = vmatpush1.msra.mxu0 0.0
    %1545 = vmatprep.subr.mxu0 0.0
    %1546 = vmatpush1.msra.mxu0 0.0
    %1547 = vmatprep.subr.mxu0 0.0
    %1548 = vmatpush1.msra.mxu0 0.0
    %1549 = vmatprep.subr.mxu0 0.0
    %1550 = vmatpush1.msra.mxu0 0.0
    %1551 = vmatprep.subr.mxu0 0.0
    %1552 = vmatpush1.msra.mxu0 0.0
    %1553 = vmatprep.subr.mxu0 0.0
    %1554 = vmatpush1.msra.mxu0 0.0
    %1555 = vmatprep.subr.mxu0 0.0
    %1556 = vmatpush1.msra.mxu0 0.0
    %1557 = vmatprep.subr.mxu0 0.0
    %1558 = vmatpush1.msra.mxu0 0.0
    %1559 = vmatprep.subr.mxu0 0.0
    %1560 = vmatpush1.msra.mxu0 0.0
    %1561 = vmatprep.subr.mxu0 0.0
    %1562 = vmatpush1.msra.mxu0 0.0
    %1563 = vmatprep.subr.mxu0 0.0
    %1564 = vmatpush1.msra.mxu0 0.0
    %1565 = vmatprep.subr.mxu0 0.0
    %1566 = vmatpush1.msra.mxu0 0.0
    %1567 = vmatprep.subr.mxu0 0.0
    %1568 = vmatpush1.msra.mxu0 0.0
    %1569 = vmatprep.subr.mxu0 0.0
    %1570 = vmatpush1.msra.mxu0 0.0
    %1571 = vmatprep.subr.mxu0 0.0
    %1572 = vmatpush1.msra.mxu0 0.0
    %1573 = vmatprep.mubr.f32.mxu0 0.0
    %1574 = vmatmul.mubr.f32.gmra.mrb[0].mxu0 %v1505
    %v1575 = vpop.f32.mrb[0].mxu0
    %v1576 = vadd.f32 0.0, %v1575
    %v1577 = vpop.f32.mrb[0].mxu0
    %1578 = vdwg.mxu0
    %v1579 = vmul.f32 %v1576, %v46
    %v1580 = vadd.f32 %v1508, %v1579
    %1582 = vrot.lane.b32.xlu0 %v1580, 64
    %v1583 = vpop.permute.xlu0 %1582
    %v1584 = vsel %vm250, %v1580, 0
    %v1586 = vsel %vm250, %v1583, 0
    %1588 = vmatprep.subr.mxu0 0.0
    %1589 = vmatpush1.xpose.msra.mxu0 %v1586
    %1590 = vmatprep.subr.mxu0 0.0
    %1591 = vmatpush1.xpose.msra.mxu0 0.0
    %1592 = vmatprep.subr.mxu0 0.0
    %1593 = vmatpush1.xpose.msra.mxu0 0.0
    %1594 = vmatprep.subr.mxu0 0.0
    %1595 = vmatpush1.xpose.msra.mxu0 0.0
    %1596 = vmatprep.subr.mxu0 0.0
    %1597 = vmatpush1.xpose.msra.mxu0 0.0
    %1598 = vmatprep.subr.mxu0 0.0
    %1599 = vmatpush1.xpose.msra.mxu0 0.0
    %1600 = vmatprep.subr.mxu0 0.0
    %1601 = vmatpush1.xpose.msra.mxu0 0.0
    %1602 = vmatprep.subr.mxu0 0.0
    %1603 = vmatpush1.xpose.msra.mxu0 0.0
    %1604 = vmatprep.subr.mxu0 0.0
    %1605 = vmatpush1.xpose.msra.mxu0 0.0
    %1606 = vmatprep.subr.mxu0 0.0
    %1607 = vmatpush1.xpose.msra.mxu0 0.0
    %1608 = vmatprep.subr.mxu0 0.0
    %1609 = vmatpush1.xpose.msra.mxu0 0.0
    %1610 = vmatprep.subr.mxu0 0.0
    %1611 = vmatpush1.xpose.msra.mxu0 0.0
    %1612 = vmatprep.subr.mxu0 0.0
    %1613 = vmatpush1.xpose.msra.mxu0 0.0
    %1614 = vmatprep.subr.mxu0 0.0
    %1615 = vmatpush1.xpose.msra.mxu0 0.0
    %1616 = vmatprep.subr.mxu0 0.0
    %1617 = vmatpush1.xpose.msra.mxu0 0.0
    %1618 = vmatprep.subr.mxu0 0.0
    %1619 = vmatpush1.xpose.msra.mxu0 0.0
    %1620 = vmatprep.subr.mxu0 0.0
    %1621 = vmatpush1.xpose.msra.mxu0 0.0
    %1622 = vmatprep.subr.mxu0 0.0
    %1623 = vmatpush1.xpose.msra.mxu0 0.0
    %1624 = vmatprep.subr.mxu0 0.0
    %1625 = vmatpush1.xpose.msra.mxu0 0.0
    %1626 = vmatprep.subr.mxu0 0.0
    %1627 = vmatpush1.xpose.msra.mxu0 0.0
    %1628 = vmatprep.subr.mxu0 0.0
    %1629 = vmatpush1.xpose.msra.mxu0 0.0
    %1630 = vmatprep.subr.mxu0 0.0
    %1631 = vmatpush1.xpose.msra.mxu0 0.0
    %1632 = vmatprep.subr.mxu0 0.0
    %1633 = vmatpush1.xpose.msra.mxu0 0.0
    %1634 = vmatprep.subr.mxu0 0.0
    %1635 = vmatpush1.xpose.msra.mxu0 0.0
    %1636 = vmatprep.subr.mxu0 0.0
    %1637 = vmatpush1.xpose.msra.mxu0 0.0
    %1638 = vmatprep.subr.mxu0 0.0
    %1639 = vmatpush1.xpose.msra.mxu0 0.0
    %1640 = vmatprep.subr.mxu0 0.0
    %1641 = vmatpush1.xpose.msra.mxu0 0.0
    %1642 = vmatprep.subr.mxu0 0.0
    %1643 = vmatpush1.xpose.msra.mxu0 0.0
    %1644 = vmatprep.subr.mxu0 0.0
    %1645 = vmatpush1.xpose.msra.mxu0 0.0
    %1646 = vmatprep.subr.mxu0 0.0
    %1647 = vmatpush1.xpose.msra.mxu0 0.0
    %1648 = vmatprep.subr.mxu0 0.0
    %1649 = vmatpush1.xpose.msra.mxu0 0.0
    %1650 = vmatprep.subr.mxu0 0.0
    %1651 = vmatpush1.xpose.msra.mxu0 0.0
    %1652 = vmatprep.mubr.f32.mxu0 0.0
    %1653 = vmatmul.mubr.f32.gmra.mrb[0].mxu0 %v1584
    %v1654 = vpop.f32.mrb[0].mxu0
    %v1655 = vadd.f32 0.0, %v1654
    %v1656 = vpop.f32.mrb[0].mxu0
    %1657 = vdwg.mxu0
    %1658 = vrot.lane.b32.xlu0 %v1580, 112
    %v1659 = vpop.permute.xlu0 %1658
    %v1660 = vsel %vm250, %v1659, 0
    %1662 = vmatprep.subr.mxu0 0.0
    %1663 = vmatpush1.xpose.msra.mxu0 %v1586
    %1664 = vmatprep.subr.mxu0 0.0
    %1665 = vmatpush1.xpose.msra.mxu0 0.0
    %1666 = vmatprep.subr.mxu0 0.0
    %1667 = vmatpush1.xpose.msra.mxu0 0.0
    %1668 = vmatprep.subr.mxu0 0.0
    %1669 = vmatpush1.xpose.msra.mxu0 0.0
    %1670 = vmatprep.subr.mxu0 0.0
    %1671 = vmatpush1.xpose.msra.mxu0 0.0
    %1672 = vmatprep.subr.mxu0 0.0
    %1673 = vmatpush1.xpose.msra.mxu0 0.0
    %1674 = vmatprep.subr.mxu0 0.0
    %1675 = vmatpush1.xpose.msra.mxu0 0.0
    %1676 = vmatprep.subr.mxu0 0.0
    %1677 = vmatpush1.xpose.msra.mxu0 0.0
    %1678 = vmatprep.subr.mxu0 0.0
    %1679 = vmatpush1.xpose.msra.mxu0 0.0
    %1680 = vmatprep.subr.mxu0 0.0
    %1681 = vmatpush1.xpose.msra.mxu0 0.0
    %1682 = vmatprep.subr.mxu0 0.0
    %1683 = vmatpush1.xpose.msra.mxu0 0.0
    %1684 = vmatprep.subr.mxu0 0.0
    %1685 = vmatpush1.xpose.msra.mxu0 0.0
    %1686 = vmatprep.subr.mxu0 0.0
    %1687 = vmatpush1.xpose.msra.mxu0 0.0
    %1688 = vmatprep.subr.mxu0 0.0
    %1689 = vmatpush1.xpose.msra.mxu0 0.0
    %1690 = vmatprep.subr.mxu0 0.0
    %1691 = vmatpush1.xpose.msra.mxu0 0.0
    %1692 = vmatprep.subr.mxu0 0.0
    %1693 = vmatpush1.xpose.msra.mxu0 0.0
    %1694 = vmatprep.subr.mxu0 0.0
    %1695 = vmatpush1.xpose.msra.mxu0 0.0
    %1696 = vmatprep.subr.mxu0 0.0
    %1697 = vmatpush1.xpose.msra.mxu0 0.0
    %1698 = vmatprep.subr.mxu0 0.0
    %1699 = vmatpush1.xpose.msra.mxu0 0.0
    %1700 = vmatprep.subr.mxu0 0.0
    %1701 = vmatpush1.xpose.msra.mxu0 0.0
    %1702 = vmatprep.subr.mxu0 0.0
    %1703 = vmatpush1.xpose.msra.mxu0 0.0
    %1704 = vmatprep.subr.mxu0 0.0
    %1705 = vmatpush1.xpose.msra.mxu0 0.0
    %1706 = vmatprep.subr.mxu0 0.0
    %1707 = vmatpush1.xpose.msra.mxu0 0.0
    %1708 = vmatprep.subr.mxu0 0.0
    %1709 = vmatpush1.xpose.msra.mxu0 0.0
    %1710 = vmatprep.subr.mxu0 0.0
    %1711 = vmatpush1.xpose.msra.mxu0 0.0
    %1712 = vmatprep.subr.mxu0 0.0
    %1713 = vmatpush1.xpose.msra.mxu0 0.0
    %1714 = vmatprep.subr.mxu0 0.0
    %1715 = vmatpush1.xpose.msra.mxu0 0.0
    %1716 = vmatprep.subr.mxu0 0.0
    %1717 = vmatpush1.xpose.msra.mxu0 0.0
    %1718 = vmatprep.subr.mxu0 0.0
    %1719 = vmatpush1.xpose.msra.mxu0 0.0
    %1720 = vmatprep.subr.mxu0 0.0
    %1721 = vmatpush1.xpose.msra.mxu0 0.0
    %1722 = vmatprep.subr.mxu0 0.0
    %1723 = vmatpush1.xpose.msra.mxu0 0.0
    %1724 = vmatprep.subr.mxu0 0.0
    %1725 = vmatpush1.xpose.msra.mxu0 0.0
    %1726 = vmatprep.mubr.f32.mxu0 0.0
    %1727 = vmatmul.mubr.f32.gmra.mrb[0].mxu0 %v1660
    %v1728 = vpop.f32.mrb[0].mxu0
    %v1729 = vadd.f32 0.0, %v1728
    %v1730 = vpop.f32.mrb[0].mxu0
    %1731 = vdwg.mxu0
    %1732 = vrot.lane.b32.xlu0 %v1580, 96
    %v1733 = vpop.permute.xlu0 %1732
    %1734 = vrot.lane.b32.xlu0 %v1580, 48
    %v1735 = vpop.permute.xlu0 %1734
    %v1736 = vsel %vm250, %v1733, 0
    %v1738 = vsel %vm250, %v1735, 0
    %1740 = vmatprep.subr.mxu0 0.0
    %1741 = vmatpush1.xpose.msra.mxu0 %v1738
    %1742 = vmatprep.subr.mxu0 0.0
    %1743 = vmatpush1.xpose.msra.mxu0 0.0
    %1744 = vmatprep.subr.mxu0 0.0
    %1745 = vmatpush1.xpose.msra.mxu0 0.0
    %1746 = vmatprep.subr.mxu0 0.0
    %1747 = vmatpush1.xpose.msra.mxu0 0.0
    %1748 = vmatprep.subr.mxu0 0.0
    %1749 = vmatpush1.xpose.msra.mxu0 0.0
    %1750 = vmatprep.subr.mxu0 0.0
    %1751 = vmatpush1.xpose.msra.mxu0 0.0
    %1752 = vmatprep.subr.mxu0 0.0
    %1753 = vmatpush1.xpose.msra.mxu0 0.0
    %1754 = vmatprep.subr.mxu0 0.0
    %1755 = vmatpush1.xpose.msra.mxu0 0.0
    %1756 = vmatprep.subr.mxu0 0.0
    %1757 = vmatpush1.xpose.msra.mxu0 0.0
    %1758 = vmatprep.subr.mxu0 0.0
    %1759 = vmatpush1.xpose.msra.mxu0 0.0
    %1760 = vmatprep.subr.mxu0 0.0
    %1761 = vmatpush1.xpose.msra.mxu0 0.0
    %1762 = vmatprep.subr.mxu0 0.0
    %1763 = vmatpush1.xpose.msra.mxu0 0.0
    %1764 = vmatprep.subr.mxu0 0.0
    %1765 = vmatpush1.xpose.msra.mxu0 0.0
    %1766 = vmatprep.subr.mxu0 0.0
    %1767 = vmatpush1.xpose.msra.mxu0 0.0
    %1768 = vmatprep.subr.mxu0 0.0
    %1769 = vmatpush1.xpose.msra.mxu0 0.0
    %1770 = vmatprep.subr.mxu0 0.0
    %1771 = vmatpush1.xpose.msra.mxu0 0.0
    %1772 = vmatprep.subr.mxu0 0.0
    %1773 = vmatpush1.xpose.msra.mxu0 0.0
    %1774 = vmatprep.subr.mxu0 0.0
    %1775 = vmatpush1.xpose.msra.mxu0 0.0
    %1776 = vmatprep.subr.mxu0 0.0
    %1777 = vmatpush1.xpose.msra.mxu0 0.0
    %1778 = vmatprep.subr.mxu0 0.0
    %1779 = vmatpush1.xpose.msra.mxu0 0.0
    %1780 = vmatprep.subr.mxu0 0.0
    %1781 = vmatpush1.xpose.msra.mxu0 0.0
    %1782 = vmatprep.subr.mxu0 0.0
    %1783 = vmatpush1.xpose.msra.mxu0 0.0
    %1784 = vmatprep.subr.mxu0 0.0
    %1785 = vmatpush1.xpose.msra.mxu0 0.0
    %1786 = vmatprep.subr.mxu0 0.0
    %1787 = vmatpush1.xpose.msra.mxu0 0.0
    %1788 = vmatprep.subr.mxu0 0.0
    %1789 = vmatpush1.xpose.msra.mxu0 0.0
    %1790 = vmatprep.subr.mxu0 0.0
    %1791 = vmatpush1.xpose.msra.mxu0 0.0
    %1792 = vmatprep.subr.mxu0 0.0
    %1793 = vmatpush1.xpose.msra.mxu0 0.0
    %1794 = vmatprep.subr.mxu0 0.0
    %1795 = vmatpush1.xpose.msra.mxu0 0.0
    %1796 = vmatprep.subr.mxu0 0.0
    %1797 = vmatpush1.xpose.msra.mxu0 0.0
    %1798 = vmatprep.subr.mxu0 0.0
    %1799 = vmatpush1.xpose.msra.mxu0 0.0
    %1800 = vmatprep.subr.mxu0 0.0
    %1801 = vmatpush1.xpose.msra.mxu0 0.0
    %1802 = vmatprep.subr.mxu0 0.0
    %1803 = vmatpush1.xpose.msra.mxu0 0.0
    %1804 = vmatprep.mubr.f32.mxu0 0.0
    %1805 = vmatmul.mubr.f32.gmra.mrb[0].mxu0 %v1736
    %v1806 = vpop.f32.mrb[0].mxu0
    %v1807 = vadd.f32 0.0, %v1806
    %v1808 = vpop.f32.mrb[0].mxu0
    %1809 = vdwg.mxu0
    %1810 = vrot.lane.b32.xlu0 %v1580, 80
    %v1811 = vpop.permute.xlu0 %1810
    %v1812 = vsel %vm250, %v1811, 0
    %1814 = vmatprep.subr.mxu0 0.0
    %1815 = vmatpush1.xpose.msra.mxu0 %v1738
    %1816 = vmatprep.subr.mxu0 0.0
    %1817 = vmatpush1.xpose.msra.mxu0 0.0
    %1818 = vmatprep.subr.mxu0 0.0
    %1819 = vmatpush1.xpose.msra.mxu0 0.0
    %1820 = vmatprep.subr.mxu0 0.0
    %1821 = vmatpush1.xpose.msra.mxu0 0.0
    %1822 = vmatprep.subr.mxu0 0.0
    %1823 = vmatpush1.xpose.msra.mxu0 0.0
    %1824 = vmatprep.subr.mxu0 0.0
    %1825 = vmatpush1.xpose.msra.mxu0 0.0
    %1826 = vmatprep.subr.mxu0 0.0
    %1827 = vmatpush1.xpose.msra.mxu0 0.0
    %1828 = vmatprep.subr.mxu0 0.0
    %1829 = vmatpush1.xpose.msra.mxu0 0.0
    %1830 = vmatprep.subr.mxu0 0.0
    %1831 = vmatpush1.xpose.msra.mxu0 0.0
    %1832 = vmatprep.subr.mxu0 0.0
    %1833 = vmatpush1.xpose.msra.mxu0 0.0
    %1834 = vmatprep.subr.mxu0 0.0
    %1835 = vmatpush1.xpose.msra.mxu0 0.0
    %1836 = vmatprep.subr.mxu0 0.0
    %1837 = vmatpush1.xpose.msra.mxu0 0.0
    %1838 = vmatprep.subr.mxu0 0.0
    %1839 = vmatpush1.xpose.msra.mxu0 0.0
    %1840 = vmatprep.subr.mxu0 0.0
    %1841 = vmatpush1.xpose.msra.mxu0 0.0
    %1842 = vmatprep.subr.mxu0 0.0
    %1843 = vmatpush1.xpose.msra.mxu0 0.0
    %1844 = vmatprep.subr.mxu0 0.0
    %1845 = vmatpush1.xpose.msra.mxu0 0.0
    %1846 = vmatprep.subr.mxu0 0.0
    %1847 = vmatpush1.xpose.msra.mxu0 0.0
    %1848 = vmatprep.subr.mxu0 0.0
    %1849 = vmatpush1.xpose.msra.mxu0 0.0
    %1850 = vmatprep.subr.mxu0 0.0
    %1851 = vmatpush1.xpose.msra.mxu0 0.0
    %1852 = vmatprep.subr.mxu0 0.0
    %1853 = vmatpush1.xpose.msra.mxu0 0.0
    %1854 = vmatprep.subr.mxu0 0.0
    %1855 = vmatpush1.xpose.msra.mxu0 0.0
    %1856 = vmatprep.subr.mxu0 0.0
    %1857 = vmatpush1.xpose.msra.mxu0 0.0
    %1858 = vmatprep.subr.mxu0 0.0
    %1859 = vmatpush1.xpose.msra.mxu0 0.0
    %1860 = vmatprep.subr.mxu0 0.0
    %1861 = vmatpush1.xpose.msra.mxu0 0.0
    %1862 = vmatprep.subr.mxu0 0.0
    %1863 = vmatpush1.xpose.msra.mxu0 0.0
    %1864 = vmatprep.subr.mxu0 0.0
    %1865 = vmatpush1.xpose.msra.mxu0 0.0
    %1866 = vmatprep.subr.mxu0 0.0
    %1867 = vmatpush1.xpose.msra.mxu0 0.0
    %1868 = vmatprep.subr.mxu0 0.0
    %1869 = vmatpush1.xpose.msra.mxu0 0.0
    %1870 = vmatprep.subr.mxu0 0.0
    %1871 = vmatpush1.xpose.msra.mxu0 0.0
    %1872 = vmatprep.subr.mxu0 0.0
    %1873 = vmatpush1.xpose.msra.mxu0 0.0
    %1874 = vmatprep.subr.mxu0 0.0
    %1875 = vmatpush1.xpose.msra.mxu0 0.0
    %1876 = vmatprep.subr.mxu0 0.0
    %1877 = vmatpush1.xpose.msra.mxu0 0.0
    %1878 = vmatprep.mubr.f32.mxu0 0.0
    %1879 = vmatmul.mubr.f32.gmra.mrb[0].mxu0 %v1812
    %v1880 = vpop.f32.mrb[0].mxu0
    %v1881 = vadd.f32 0.0, %v1880
    %v1882 = vpop.f32.mrb[0].mxu0
    %1883 = vdwg.mxu0
    %v1884 = vadd.f32 %v1655, %v63
    %v1885 = vadd.f32 %v1729, %v64
    %v1886 = vadd.f32 %v1807, %v65
    %v1887 = vadd.f32 %v1881, %v66
    %v1888 = vsel %vm555, %v1884, -inf
    %1889 = vmax.xlane.f32.xlu0 %v1888
    %v1890 = vpop.xlane.xlu0 %1889
    %v1891 = vsel %vm555, %v1885, -inf
    %1892 = vmax.xlane.f32.xlu0 %v1891
    %v1893 = vpop.xlane.xlu0 %1892
    %v1894 = vsel %vm555, %v1886, -inf
    %1895 = vmax.xlane.f32.xlu0 %v1894
    %v1896 = vpop.xlane.xlu0 %1895
    %v1897 = vsel %vm555, %v1887, -inf
    %1898 = vmax.xlane.f32.xlu0 %v1897
    %v1899 = vpop.xlane.xlu0 %1898
    %v1900 = vsub.f32 %v1884, %v1890
    %v1901 = vsub.f32 %v1885, %v1893
    %v1902 = vsub.f32 %v1886, %v1896
    %v1903 = vsub.f32 %v1887, %v1899
    %v1904 = vmul.f32 %v1900, 1.442695
    %v1905 = vpow.pop %v1904
    %v1906 = vmul.f32 %v1901, 1.442695
    %v1907 = vpow.pop %v1906
    %v1908 = vmul.f32 %v1902, 1.442695
    %v1909 = vpow.pop %v1908
    %v1910 = vmul.f32 %v1903, 1.442695
    %v1911 = vpow.pop %v1910
    %v1912 = vsel %vm555, %v1905, 0.0
    %1913 = vadd.xlane.f32.xlu0 %v1912
    %v1914 = vpop.xlane.xlu0 %1913
    %v1915 = vsel %vm555, %v1907, 0.0
    %1916 = vadd.xlane.f32.xlu0 %v1915
    %v1917 = vpop.xlane.xlu0 %1916
    %v1918 = vsel %vm555, %v1909, 0.0
    %1919 = vadd.xlane.f32.xlu0 %v1918
    %v1920 = vpop.xlane.xlu0 %1919
    %v1921 = vsel %vm555, %v1911, 0.0
    %1922 = vadd.xlane.f32.xlu0 %v1921
    %v1923 = vpop.xlane.xlu0 %1922
    %v1924 = vrcp.pop %v1914
    %v1925 = vrcp.pop %v1917
    %v1926 = vrcp.pop %v1920
    %v1927 = vrcp.pop %v1923
    %v1928 = vmul.f32 %v1905, %v1924
    %v1929 = vmul.f32 %v1907, %v1925
    %v1930 = vmul.f32 %v1909, %v1926
    %v1931 = vmul.f32 %v1911, %v1927
    %s1932 = scalar_lea.vmem %s8, 64
    %v1933 = vld [vmem:[%s1932] sm:$0xff]
    %v1934 = vld [vmem:[%s1932 + $0x8] sm:$0xff]
    %v1935 = vld [vmem:[%s1932 + $0x10] sm:$0xff]
    %v1936 = vld [vmem:[%s1932 + $0x18] sm:$0xff]
    %v1937 = vld [vmem:[%s1932 + $0x20] sm:$0xff]
    %v1938 = vld [vmem:[%s1932 + $0x28] sm:$0xff]
    %v1939 = vld [vmem:[%s1932 + $0x30] sm:$0xff]
    %v1940 = vld [vmem:[%s1932 + $0x38] sm:$0xff]
    %1941 = vrot.lane.b32.xlu0 %v1580, 32
    %v1942 = vpop.permute.xlu0 %1941
    %v1945 = vsel %vm555, %v1928, 0
    %1947 = vmatprep.subr.mxu0 0.0
    %1948 = vmatpush1.msra.mxu0 %v1942
    %1949 = vmatprep.subr.mxu0 0.0
    %1950 = vmatpush1.msra.mxu0 0.0
    %1951 = vmatprep.subr.mxu0 0.0
    %1952 = vmatpush1.msra.mxu0 0.0
    %1953 = vmatprep.subr.mxu0 0.0
    %1954 = vmatpush1.msra.mxu0 0.0
    %1955 = vmatprep.subr.mxu0 0.0
    %1956 = vmatpush1.msra.mxu0 0.0
    %1957 = vmatprep.subr.mxu0 0.0
    %1958 = vmatpush1.msra.mxu0 0.0
    %1959 = vmatprep.subr.mxu0 0.0
    %1960 = vmatpush1.msra.mxu0 0.0
    %1961 = vmatprep.subr.mxu0 0.0
    %1962 = vmatpush1.msra.mxu0 0.0
    %1963 = vmatprep.subr.mxu0 0.0
    %1964 = vmatpush1.msra.mxu0 0.0
    %1965 = vmatprep.subr.mxu0 0.0
    %1966 = vmatpush1.msra.mxu0 0.0
    %1967 = vmatprep.subr.mxu0 0.0
    %1968 = vmatpush1.msra.mxu0 0.0
    %1969 = vmatprep.subr.mxu0 0.0
    %1970 = vmatpush1.msra.mxu0 0.0
    %1971 = vmatprep.subr.mxu0 0.0
    %1972 = vmatpush1.msra.mxu0 0.0
    %1973 = vmatprep.subr.mxu0 0.0
    %1974 = vmatpush1.msra.mxu0 0.0
    %1975 = vmatprep.subr.mxu0 0.0
    %1976 = vmatpush1.msra.mxu0 0.0
    %1977 = vmatprep.subr.mxu0 0.0
    %1978 = vmatpush1.msra.mxu0 0.0
    %1979 = vmatprep.subr.mxu0 0.0
    %1980 = vmatpush1.msra.mxu0 0.0
    %1981 = vmatprep.subr.mxu0 0.0
    %1982 = vmatpush1.msra.mxu0 0.0
    %1983 = vmatprep.subr.mxu0 0.0
    %1984 = vmatpush1.msra.mxu0 0.0
    %1985 = vmatprep.subr.mxu0 0.0
    %1986 = vmatpush1.msra.mxu0 0.0
    %1987 = vmatprep.subr.mxu0 0.0
    %1988 = vmatpush1.msra.mxu0 0.0
    %1989 = vmatprep.subr.mxu0 0.0
    %1990 = vmatpush1.msra.mxu0 0.0
    %1991 = vmatprep.subr.mxu0 0.0
    %1992 = vmatpush1.msra.mxu0 0.0
    %1993 = vmatprep.subr.mxu0 0.0
    %1994 = vmatpush1.msra.mxu0 0.0
    %1995 = vmatprep.subr.mxu0 0.0
    %1996 = vmatpush1.msra.mxu0 0.0
    %1997 = vmatprep.subr.mxu0 0.0
    %1998 = vmatpush1.msra.mxu0 0.0
    %1999 = vmatprep.subr.mxu0 0.0
    %2000 = vmatpush1.msra.mxu0 0.0
    %2001 = vmatprep.subr.mxu0 0.0
    %2002 = vmatpush1.msra.mxu0 0.0
    %2003 = vmatprep.subr.mxu0 0.0
    %2004 = vmatpush1.msra.mxu0 0.0
    %2005 = vmatprep.subr.mxu0 0.0
    %2006 = vmatpush1.msra.mxu0 0.0
    %2007 = vmatprep.subr.mxu0 0.0
    %2008 = vmatpush1.msra.mxu0 0.0
    %2009 = vmatprep.subr.mxu0 0.0
    %2010 = vmatpush1.msra.mxu0 0.0
    %2011 = vmatprep.mubr.f32.mxu0 0.0
    %2012 = vmatmul.mubr.f32.gmra.mrb[0].mxu0 %v1945
    %v2013 = vpop.f32.mrb[0].mxu0
    %v2014 = vadd.f32 0.0, %v2013
    %v2015 = vpop.f32.mrb[0].mxu0
    %2016 = vdwg.mxu0
    %v2018 = vsel %vm555, %v1929, 0
    %2020 = vmatprep.subr.mxu0 0.0
    %2021 = vmatpush1.msra.mxu0 %v1942
    %2022 = vmatprep.subr.mxu0 0.0
    %2023 = vmatpush1.msra.mxu0 0.0
    %2024 = vmatprep.subr.mxu0 0.0
    %2025 = vmatpush1.msra.mxu0 0.0
    %2026 = vmatprep.subr.mxu0 0.0
    %2027 = vmatpush1.msra.mxu0 0.0
    %2028 = vmatprep.subr.mxu0 0.0
    %2029 = vmatpush1.msra.mxu0 0.0
    %2030 = vmatprep.subr.mxu0 0.0
    %2031 = vmatpush1.msra.mxu0 0.0
    %2032 = vmatprep.subr.mxu0 0.0
    %2033 = vmatpush1.msra.mxu0 0.0
    %2034 = vmatprep.subr.mxu0 0.0
    %2035 = vmatpush1.msra.mxu0 0.0
    %2036 = vmatprep.subr.mxu0 0.0
    %2037 = vmatpush1.msra.mxu0 0.0
    %2038 = vmatprep.subr.mxu0 0.0
    %2039 = vmatpush1.msra.mxu0 0.0
    %2040 = vmatprep.subr.mxu0 0.0
    %2041 = vmatpush1.msra.mxu0 0.0
    %2042 = vmatprep.subr.mxu0 0.0
    %2043 = vmatpush1.msra.mxu0 0.0
    %2044 = vmatprep.subr.mxu0 0.0
    %2045 = vmatpush1.msra.mxu0 0.0
    %2046 = vmatprep.subr.mxu0 0.0
    %2047 = vmatpush1.msra.mxu0 0.0
    %2048 = vmatprep.subr.mxu0 0.0
    %2049 = vmatpush1.msra.mxu0 0.0
    %2050 = vmatprep.subr.mxu0 0.0
    %2051 = vmatpush1.msra.mxu0 0.0
    %2052 = vmatprep.subr.mxu0 0.0
    %2053 = vmatpush1.msra.mxu0 0.0
    %2054 = vmatprep.subr.mxu0 0.0
    %2055 = vmatpush1.msra.mxu0 0.0
    %2056 = vmatprep.subr.mxu0 0.0
    %2057 = vmatpush1.msra.mxu0 0.0
    %2058 = vmatprep.subr.mxu0 0.0
    %2059 = vmatpush1.msra.mxu0 0.0
    %2060 = vmatprep.subr.mxu0 0.0
    %2061 = vmatpush1.msra.mxu0 0.0
    %2062 = vmatprep.subr.mxu0 0.0
    %2063 = vmatpush1.msra.mxu0 0.0
    %2064 = vmatprep.subr.mxu0 0.0
    %2065 = vmatpush1.msra.mxu0 0.0
    %2066 = vmatprep.subr.mxu0 0.0
    %2067 = vmatpush1.msra.mxu0 0.0
    %2068 = vmatprep.subr.mxu0 0.0
    %2069 = vmatpush1.msra.mxu0 0.0
    %2070 = vmatprep.subr.mxu0 0.0
    %2071 = vmatpush1.msra.mxu0 0.0
    %2072 = vmatprep.subr.mxu0 0.0
    %2073 = vmatpush1.msra.mxu0 0.0
    %2074 = vmatprep.subr.mxu0 0.0
    %2075 = vmatpush1.msra.mxu0 0.0
    %2076 = vmatprep.subr.mxu0 0.0
    %2077 = vmatpush1.msra.mxu0 0.0
    %2078 = vmatprep.subr.mxu0 0.0
    %2079 = vmatpush1.msra.mxu0 0.0
    %2080 = vmatprep.subr.mxu0 0.0
    %2081 = vmatpush1.msra.mxu0 0.0
    %2082 = vmatprep.subr.mxu0 0.0
    %2083 = vmatpush1.msra.mxu0 0.0
    %2084 = vmatprep.mubr.f32.mxu0 0.0
    %2085 = vmatmul.mubr.f32.gmra.mrb[0].mxu0 %v2018
    %v2086 = vpop.f32.mrb[0].mxu0
    %v2087 = vadd.f32 0.0, %v2086
    %v2088 = vpop.f32.mrb[0].mxu0
    %2089 = vdwg.mxu0
    %v2091 = vsel %vm250, %v2087, 0
    %2093 = vmatprep.subr.mxu0 0.0
    %2094 = vmatpush1.msra.mxu0 %v1935
    %2095 = vmatprep.subr.mxu0 0.0
    %2096 = vmatpush1.msra.mxu0 %v1936
    %2097 = vmatprep.subr.mxu0 0.0
    %2098 = vmatpush1.msra.mxu0 0.0
    %2099 = vmatprep.subr.mxu0 0.0
    %2100 = vmatpush1.msra.mxu0 0.0
    %2101 = vmatprep.subr.mxu0 0.0
    %2102 = vmatpush1.msra.mxu0 0.0
    %2103 = vmatprep.subr.mxu0 0.0
    %2104 = vmatpush1.msra.mxu0 0.0
    %2105 = vmatprep.subr.mxu0 0.0
    %2106 = vmatpush1.msra.mxu0 0.0
    %2107 = vmatprep.subr.mxu0 0.0
    %2108 = vmatpush1.msra.mxu0 0.0
    %2109 = vmatprep.subr.mxu0 0.0
    %2110 = vmatpush1.msra.mxu0 0.0
    %2111 = vmatprep.subr.mxu0 0.0
    %2112 = vmatpush1.msra.mxu0 0.0
    %2113 = vmatprep.subr.mxu0 0.0
    %2114 = vmatpush1.msra.mxu0 0.0
    %2115 = vmatprep.subr.mxu0 0.0
    %2116 = vmatpush1.msra.mxu0 0.0
    %2117 = vmatprep.subr.mxu0 0.0
    %2118 = vmatpush1.msra.mxu0 0.0
    %2119 = vmatprep.subr.mxu0 0.0
    %2120 = vmatpush1.msra.mxu0 0.0
    %2121 = vmatprep.subr.mxu0 0.0
    %2122 = vmatpush1.msra.mxu0 0.0
    %2123 = vmatprep.subr.mxu0 0.0
    %2124 = vmatpush1.msra.mxu0 0.0
    %2125 = vmatprep.subr.mxu0 0.0
    %2126 = vmatpush1.msra.mxu0 0.0
    %2127 = vmatprep.subr.mxu0 0.0
    %2128 = vmatpush1.msra.mxu0 0.0
    %2129 = vmatprep.subr.mxu0 0.0
    %2130 = vmatpush1.msra.mxu0 0.0
    %2131 = vmatprep.subr.mxu0 0.0
    %2132 = vmatpush1.msra.mxu0 0.0
    %2133 = vmatprep.subr.mxu0 0.0
    %2134 = vmatpush1.msra.mxu0 0.0
    %2135 = vmatprep.subr.mxu0 0.0
    %2136 = vmatpush1.msra.mxu0 0.0
    %2137 = vmatprep.subr.mxu0 0.0
    %2138 = vmatpush1.msra.mxu0 0.0
    %2139 = vmatprep.subr.mxu0 0.0
    %2140 = vmatpush1.msra.mxu0 0.0
    %2141 = vmatprep.subr.mxu0 0.0
    %2142 = vmatpush1.msra.mxu0 0.0
    %2143 = vmatprep.subr.mxu0 0.0
    %2144 = vmatpush1.msra.mxu0 0.0
    %2145 = vmatprep.subr.mxu0 0.0
    %2146 = vmatpush1.msra.mxu0 0.0
    %2147 = vmatprep.subr.mxu0 0.0
    %2148 = vmatpush1.msra.mxu0 0.0
    %2149 = vmatprep.subr.mxu0 0.0
    %2150 = vmatpush1.msra.mxu0 0.0
    %2151 = vmatprep.subr.mxu0 0.0
    %2152 = vmatpush1.msra.mxu0 0.0
    %2153 = vmatprep.subr.mxu0 0.0
    %2154 = vmatpush1.msra.mxu0 0.0
    %2155 = vmatprep.subr.mxu0 0.0
    %2156 = vmatpush1.msra.mxu0 0.0
    %2157 = vmatprep.mubr.f32.mxu0 0.0
    %2158 = vmatmul.mubr.f32.gmra.mrb[0].mxu0 %v2091
    %v2159 = vpop.f32.mrb[0].mxu0
    %v2160 = vadd.f32 0.0, %v2159
    %v2161 = vpop.f32.mrb[0].mxu0
    %2162 = vdwg.mxu0
    %v2164 = vsel %vm250, %v2014, 0
    %2166 = vmatprep.subr.mxu0 0.0
    %2167 = vmatpush1.msra.mxu0 %v1933
    %2168 = vmatprep.subr.mxu0 0.0
    %2169 = vmatpush1.msra.mxu0 %v1934
    %2170 = vmatprep.subr.mxu0 0.0
    %2171 = vmatpush1.msra.mxu0 0.0
    %2172 = vmatprep.subr.mxu0 0.0
    %2173 = vmatpush1.msra.mxu0 0.0
    %2174 = vmatprep.subr.mxu0 0.0
    %2175 = vmatpush1.msra.mxu0 0.0
    %2176 = vmatprep.subr.mxu0 0.0
    %2177 = vmatpush1.msra.mxu0 0.0
    %2178 = vmatprep.subr.mxu0 0.0
    %2179 = vmatpush1.msra.mxu0 0.0
    %2180 = vmatprep.subr.mxu0 0.0
    %2181 = vmatpush1.msra.mxu0 0.0
    %2182 = vmatprep.subr.mxu0 0.0
    %2183 = vmatpush1.msra.mxu0 0.0
    %2184 = vmatprep.subr.mxu0 0.0
    %2185 = vmatpush1.msra.mxu0 0.0
    %2186 = vmatprep.subr.mxu0 0.0
    %2187 = vmatpush1.msra.mxu0 0.0
    %2188 = vmatprep.subr.mxu0 0.0
    %2189 = vmatpush1.msra.mxu0 0.0
    %2190 = vmatprep.subr.mxu0 0.0
    %2191 = vmatpush1.msra.mxu0 0.0
    %2192 = vmatprep.subr.mxu0 0.0
    %2193 = vmatpush1.msra.mxu0 0.0
    %2194 = vmatprep.subr.mxu0 0.0
    %2195 = vmatpush1.msra.mxu0 0.0
    %2196 = vmatprep.subr.mxu0 0.0
    %2197 = vmatpush1.msra.mxu0 0.0
    %2198 = vmatprep.subr.mxu0 0.0
    %2199 = vmatpush1.msra.mxu0 0.0
    %2200 = vmatprep.subr.mxu0 0.0
    %2201 = vmatpush1.msra.mxu0 0.0
    %2202 = vmatprep.subr.mxu0 0.0
    %2203 = vmatpush1.msra.mxu0 0.0
    %2204 = vmatprep.subr.mxu0 0.0
    %2205 = vmatpush1.msra.mxu0 0.0
    %2206 = vmatprep.subr.mxu0 0.0
    %2207 = vmatpush1.msra.mxu0 0.0
    %2208 = vmatprep.subr.mxu0 0.0
    %2209 = vmatpush1.msra.mxu0 0.0
    %2210 = vmatprep.subr.mxu0 0.0
    %2211 = vmatpush1.msra.mxu0 0.0
    %2212 = vmatprep.subr.mxu0 0.0
    %2213 = vmatpush1.msra.mxu0 0.0
    %2214 = vmatprep.subr.mxu0 0.0
    %2215 = vmatpush1.msra.mxu0 0.0
    %2216 = vmatprep.subr.mxu0 0.0
    %2217 = vmatpush1.msra.mxu0 0.0
    %2218 = vmatprep.subr.mxu0 0.0
    %2219 = vmatpush1.msra.mxu0 0.0
    %2220 = vmatprep.subr.mxu0 0.0
    %2221 = vmatpush1.msra.mxu0 0.0
    %2222 = vmatprep.subr.mxu0 0.0
    %2223 = vmatpush1.msra.mxu0 0.0
    %2224 = vmatprep.subr.mxu0 0.0
    %2225 = vmatpush1.msra.mxu0 0.0
    %2226 = vmatprep.subr.mxu0 0.0
    %2227 = vmatpush1.msra.mxu0 0.0
    %2228 = vmatprep.subr.mxu0 0.0
    %2229 = vmatpush1.msra.mxu0 0.0
    %2230 = vmatprep.mubr.f32.mxu0 0.0
    %2231 = vmatmul.mubr.f32.gmra.mrb[0].mxu0 %v2164
    %v2232 = vpop.f32.mrb[0].mxu0
    %v2233 = vadd.f32 %v2160, %v2232
    %v2234 = vpop.f32.mrb[0].mxu0
    %2235 = vdwg.mxu0
    %2236 = vrot.lane.b32.xlu0 %v1580, 16
    %v2237 = vpop.permute.xlu0 %2236
    %v2240 = vsel %vm555, %v1930, 0
    %2242 = vmatprep.subr.mxu0 0.0
    %2243 = vmatpush1.msra.mxu0 %v2237
    %2244 = vmatprep.subr.mxu0 0.0
    %2245 = vmatpush1.msra.mxu0 0.0
    %2246 = vmatprep.subr.mxu0 0.0
    %2247 = vmatpush1.msra.mxu0 0.0
    %2248 = vmatprep.subr.mxu0 0.0
    %2249 = vmatpush1.msra.mxu0 0.0
    %2250 = vmatprep.subr.mxu0 0.0
    %2251 = vmatpush1.msra.mxu0 0.0
    %2252 = vmatprep.subr.mxu0 0.0
    %2253 = vmatpush1.msra.mxu0 0.0
    %2254 = vmatprep.subr.mxu0 0.0
    %2255 = vmatpush1.msra.mxu0 0.0
    %2256 = vmatprep.subr.mxu0 0.0
    %2257 = vmatpush1.msra.mxu0 0.0
    %2258 = vmatprep.subr.mxu0 0.0
    %2259 = vmatpush1.msra.mxu0 0.0
    %2260 = vmatprep.subr.mxu0 0.0
    %2261 = vmatpush1.msra.mxu0 0.0
    %2262 = vmatprep.subr.mxu0 0.0
    %2263 = vmatpush1.msra.mxu0 0.0
    %2264 = vmatprep.subr.mxu0 0.0
    %2265 = vmatpush1.msra.mxu0 0.0
    %2266 = vmatprep.subr.mxu0 0.0
    %2267 = vmatpush1.msra.mxu0 0.0
    %2268 = vmatprep.subr.mxu0 0.0
    %2269 = vmatpush1.msra.mxu0 0.0
    %2270 = vmatprep.subr.mxu0 0.0
    %2271 = vmatpush1.msra.mxu0 0.0
    %2272 = vmatprep.subr.mxu0 0.0
    %2273 = vmatpush1.msra.mxu0 0.0
    %2274 = vmatprep.subr.mxu0 0.0
    %2275 = vmatpush1.msra.mxu0 0.0
    %2276 = vmatprep.subr.mxu0 0.0
    %2277 = vmatpush1.msra.mxu0 0.0
    %2278 = vmatprep.subr.mxu0 0.0
    %2279 = vmatpush1.msra.mxu0 0.0
    %2280 = vmatprep.subr.mxu0 0.0
    %2281 = vmatpush1.msra.mxu0 0.0
    %2282 = vmatprep.subr.mxu0 0.0
    %2283 = vmatpush1.msra.mxu0 0.0
    %2284 = vmatprep.subr.mxu0 0.0
    %2285 = vmatpush1.msra.mxu0 0.0
    %2286 = vmatprep.subr.mxu0 0.0
    %2287 = vmatpush1.msra.mxu0 0.0
    %2288 = vmatprep.subr.mxu0 0.0
    %2289 = vmatpush1.msra.mxu0 0.0
    %2290 = vmatprep.subr.mxu0 0.0
    %2291 = vmatpush1.msra.mxu0 0.0
    %2292 = vmatprep.subr.mxu0 0.0
    %2293 = vmatpush1.msra.mxu0 0.0
    %2294 = vmatprep.subr.mxu0 0.0
    %2295 = vmatpush1.msra.mxu0 0.0
    %2296 = vmatprep.subr.mxu0 0.0
    %2297 = vmatpush1.msra.mxu0 0.0
    %2298 = vmatprep.subr.mxu0 0.0
    %2299 = vmatpush1.msra.mxu0 0.0
    %2300 = vmatprep.subr.mxu0 0.0
    %2301 = vmatpush1.msra.mxu0 0.0
    %2302 = vmatprep.subr.mxu0 0.0
    %2303 = vmatpush1.msra.mxu0 0.0
    %2304 = vmatprep.subr.mxu0 0.0
    %2305 = vmatpush1.msra.mxu0 0.0
    %2306 = vmatprep.mubr.f32.mxu0 0.0
    %2307 = vmatmul.mubr.f32.gmra.mrb[0].mxu0 %v2240
    %v2308 = vpop.f32.mrb[0].mxu0
    %v2309 = vadd.f32 0.0, %v2308
    %v2310 = vpop.f32.mrb[0].mxu0
    %2311 = vdwg.mxu0
    %v2313 = vsel %vm250, %v2309, 0
    %2315 = vmatprep.subr.mxu0 0.0
    %2316 = vmatpush1.msra.mxu0 %v1937
    %2317 = vmatprep.subr.mxu0 0.0
    %2318 = vmatpush1.msra.mxu0 %v1938
    %2319 = vmatprep.subr.mxu0 0.0
    %2320 = vmatpush1.msra.mxu0 0.0
    %2321 = vmatprep.subr.mxu0 0.0
    %2322 = vmatpush1.msra.mxu0 0.0
    %2323 = vmatprep.subr.mxu0 0.0
    %2324 = vmatpush1.msra.mxu0 0.0
    %2325 = vmatprep.subr.mxu0 0.0
    %2326 = vmatpush1.msra.mxu0 0.0
    %2327 = vmatprep.subr.mxu0 0.0
    %2328 = vmatpush1.msra.mxu0 0.0
    %2329 = vmatprep.subr.mxu0 0.0
    %2330 = vmatpush1.msra.mxu0 0.0
    %2331 = vmatprep.subr.mxu0 0.0
    %2332 = vmatpush1.msra.mxu0 0.0
    %2333 = vmatprep.subr.mxu0 0.0
    %2334 = vmatpush1.msra.mxu0 0.0
    %2335 = vmatprep.subr.mxu0 0.0
    %2336 = vmatpush1.msra.mxu0 0.0
    %2337 = vmatprep.subr.mxu0 0.0
    %2338 = vmatpush1.msra.mxu0 0.0
    %2339 = vmatprep.subr.mxu0 0.0
    %2340 = vmatpush1.msra.mxu0 0.0
    %2341 = vmatprep.subr.mxu0 0.0
    %2342 = vmatpush1.msra.mxu0 0.0
    %2343 = vmatprep.subr.mxu0 0.0
    %2344 = vmatpush1.msra.mxu0 0.0
    %2345 = vmatprep.subr.mxu0 0.0
    %2346 = vmatpush1.msra.mxu0 0.0
    %2347 = vmatprep.subr.mxu0 0.0
    %2348 = vmatpush1.msra.mxu0 0.0
    %2349 = vmatprep.subr.mxu0 0.0
    %2350 = vmatpush1.msra.mxu0 0.0
    %2351 = vmatprep.subr.mxu0 0.0
    %2352 = vmatpush1.msra.mxu0 0.0
    %2353 = vmatprep.subr.mxu0 0.0
    %2354 = vmatpush1.msra.mxu0 0.0
    %2355 = vmatprep.subr.mxu0 0.0
    %2356 = vmatpush1.msra.mxu0 0.0
    %2357 = vmatprep.subr.mxu0 0.0
    %2358 = vmatpush1.msra.mxu0 0.0
    %2359 = vmatprep.subr.mxu0 0.0
    %2360 = vmatpush1.msra.mxu0 0.0
    %2361 = vmatprep.subr.mxu0 0.0
    %2362 = vmatpush1.msra.mxu0 0.0
    %2363 = vmatprep.subr.mxu0 0.0
    %2364 = vmatpush1.msra.mxu0 0.0
    %2365 = vmatprep.subr.mxu0 0.0
    %2366 = vmatpush1.msra.mxu0 0.0
    %2367 = vmatprep.subr.mxu0 0.0
    %2368 = vmatpush1.msra.mxu0 0.0
    %2369 = vmatprep.subr.mxu0 0.0
    %2370 = vmatpush1.msra.mxu0 0.0
    %2371 = vmatprep.subr.mxu0 0.0
    %2372 = vmatpush1.msra.mxu0 0.0
    %2373 = vmatprep.subr.mxu0 0.0
    %2374 = vmatpush1.msra.mxu0 0.0
    %2375 = vmatprep.subr.mxu0 0.0
    %2376 = vmatpush1.msra.mxu0 0.0
    %2377 = vmatprep.subr.mxu0 0.0
    %2378 = vmatpush1.msra.mxu0 0.0
    %2379 = vmatprep.mubr.f32.mxu0 0.0
    %2380 = vmatmul.mubr.f32.gmra.mrb[0].mxu0 %v2313
    %v2381 = vpop.f32.mrb[0].mxu0
    %v2382 = vadd.f32 0.0, %v2381
    %v2383 = vpop.f32.mrb[0].mxu0
    %2384 = vdwg.mxu0
    %v2385 = vadd.f32 %v2233, %v2382
    %v2387 = vsel %vm555, %v1931, 0
    %2389 = vmatprep.subr.mxu0 0.0
    %2390 = vmatpush1.msra.mxu0 %v2237
    %2391 = vmatprep.subr.mxu0 0.0
    %2392 = vmatpush1.msra.mxu0 0.0
    %2393 = vmatprep.subr.mxu0 0.0
    %2394 = vmatpush1.msra.mxu0 0.0
    %2395 = vmatprep.subr.mxu0 0.0
    %2396 = vmatpush1.msra.mxu0 0.0
    %2397 = vmatprep.subr.mxu0 0.0
    %2398 = vmatpush1.msra.mxu0 0.0
    %2399 = vmatprep.subr.mxu0 0.0
    %2400 = vmatpush1.msra.mxu0 0.0
    %2401 = vmatprep.subr.mxu0 0.0
    %2402 = vmatpush1.msra.mxu0 0.0
    %2403 = vmatprep.subr.mxu0 0.0
    %2404 = vmatpush1.msra.mxu0 0.0
    %2405 = vmatprep.subr.mxu0 0.0
    %2406 = vmatpush1.msra.mxu0 0.0
    %2407 = vmatprep.subr.mxu0 0.0
    %2408 = vmatpush1.msra.mxu0 0.0
    %2409 = vmatprep.subr.mxu0 0.0
    %2410 = vmatpush1.msra.mxu0 0.0
    %2411 = vmatprep.subr.mxu0 0.0
    %2412 = vmatpush1.msra.mxu0 0.0
    %2413 = vmatprep.subr.mxu0 0.0
    %2414 = vmatpush1.msra.mxu0 0.0
    %2415 = vmatprep.subr.mxu0 0.0
    %2416 = vmatpush1.msra.mxu0 0.0
    %2417 = vmatprep.subr.mxu0 0.0
    %2418 = vmatpush1.msra.mxu0 0.0
    %2419 = vmatprep.subr.mxu0 0.0
    %2420 = vmatpush1.msra.mxu0 0.0
    %2421 = vmatprep.subr.mxu0 0.0
    %2422 = vmatpush1.msra.mxu0 0.0
    %2423 = vmatprep.subr.mxu0 0.0
    %2424 = vmatpush1.msra.mxu0 0.0
    %2425 = vmatprep.subr.mxu0 0.0
    %2426 = vmatpush1.msra.mxu0 0.0
    %2427 = vmatprep.subr.mxu0 0.0
    %2428 = vmatpush1.msra.mxu0 0.0
    %2429 = vmatprep.subr.mxu0 0.0
    %2430 = vmatpush1.msra.mxu0 0.0
    %2431 = vmatprep.subr.mxu0 0.0
    %2432 = vmatpush1.msra.mxu0 0.0
    %2433 = vmatprep.subr.mxu0 0.0
    %2434 = vmatpush1.msra.mxu0 0.0
    %2435 = vmatprep.subr.mxu0 0.0
    %2436 = vmatpush1.msra.mxu0 0.0
    %2437 = vmatprep.subr.mxu0 0.0
    %2438 = vmatpush1.msra.mxu0 0.0
    %2439 = vmatprep.subr.mxu0 0.0
    %2440 = vmatpush1.msra.mxu0 0.0
    %2441 = vmatprep.subr.mxu0 0.0
    %2442 = vmatpush1.msra.mxu0 0.0
    %2443 = vmatprep.subr.mxu0 0.0
    %2444 = vmatpush1.msra.mxu0 0.0
    %2445 = vmatprep.subr.mxu0 0.0
    %2446 = vmatpush1.msra.mxu0 0.0
    %2447 = vmatprep.subr.mxu0 0.0
    %2448 = vmatpush1.msra.mxu0 0.0
    %2449 = vmatprep.subr.mxu0 0.0
    %2450 = vmatpush1.msra.mxu0 0.0
    %2451 = vmatprep.subr.mxu0 0.0
    %2452 = vmatpush1.msra.mxu0 0.0
    %2453 = vmatprep.mubr.f32.mxu0 0.0
    %2454 = vmatmul.mubr.f32.gmra.mrb[0].mxu0 %v2387
    %v2455 = vpop.f32.mrb[0].mxu0
    %v2456 = vadd.f32 0.0, %v2455
    %v2457 = vpop.f32.mrb[0].mxu0
    %2458 = vdwg.mxu0
    %v2460 = vsel %vm250, %v2456, 0
    %2462 = vmatprep.subr.mxu0 0.0
    %2463 = vmatpush1.msra.mxu0 %v1939
    %2464 = vmatprep.subr.mxu0 0.0
    %2465 = vmatpush1.msra.mxu0 %v1940
    %2466 = vmatprep.subr.mxu0 0.0
    %2467 = vmatpush1.msra.mxu0 0.0
    %2468 = vmatprep.subr.mxu0 0.0
    %2469 = vmatpush1.msra.mxu0 0.0
    %2470 = vmatprep.subr.mxu0 0.0
    %2471 = vmatpush1.msra.mxu0 0.0
    %2472 = vmatprep.subr.mxu0 0.0
    %2473 = vmatpush1.msra.mxu0 0.0
    %2474 = vmatprep.subr.mxu0 0.0
    %2475 = vmatpush1.msra.mxu0 0.0
    %2476 = vmatprep.subr.mxu0 0.0
    %2477 = vmatpush1.msra.mxu0 0.0
    %2478 = vmatprep.subr.mxu0 0.0
    %2479 = vmatpush1.msra.mxu0 0.0
    %2480 = vmatprep.subr.mxu0 0.0
    %2481 = vmatpush1.msra.mxu0 0.0
    %2482 = vmatprep.subr.mxu0 0.0
    %2483 = vmatpush1.msra.mxu0 0.0
    %2484 = vmatprep.subr.mxu0 0.0
    %2485 = vmatpush1.msra.mxu0 0.0
    %2486 = vmatprep.subr.mxu0 0.0
    %2487 = vmatpush1.msra.mxu0 0.0
    %2488 = vmatprep.subr.mxu0 0.0
    %2489 = vmatpush1.msra.mxu0 0.0
    %2490 = vmatprep.subr.mxu0 0.0
    %2491 = vmatpush1.msra.mxu0 0.0
    %2492 = vmatprep.subr.mxu0 0.0
    %2493 = vmatpush1.msra.mxu0 0.0
    %2494 = vmatprep.subr.mxu0 0.0
    %2495 = vmatpush1.msra.mxu0 0.0
    %2496 = vmatprep.subr.mxu0 0.0
    %2497 = vmatpush1.msra.mxu0 0.0
    %2498 = vmatprep.subr.mxu0 0.0
    %2499 = vmatpush1.msra.mxu0 0.0
    %2500 = vmatprep.subr.mxu0 0.0
    %2501 = vmatpush1.msra.mxu0 0.0
    %2502 = vmatprep.subr.mxu0 0.0
    %2503 = vmatpush1.msra.mxu0 0.0
    %2504 = vmatprep.subr.mxu0 0.0
    %2505 = vmatpush1.msra.mxu0 0.0
    %2506 = vmatprep.subr.mxu0 0.0
    %2507 = vmatpush1.msra.mxu0 0.0
    %2508 = vmatprep.subr.mxu0 0.0
    %2509 = vmatpush1.msra.mxu0 0.0
    %2510 = vmatprep.subr.mxu0 0.0
    %2511 = vmatpush1.msra.mxu0 0.0
    %2512 = vmatprep.subr.mxu0 0.0
    %2513 = vmatpush1.msra.mxu0 0.0
    %2514 = vmatprep.subr.mxu0 0.0
    %2515 = vmatpush1.msra.mxu0 0.0
    %2516 = vmatprep.subr.mxu0 0.0
    %2517 = vmatpush1.msra.mxu0 0.0
    %2518 = vmatprep.subr.mxu0 0.0
    %2519 = vmatpush1.msra.mxu0 0.0
    %2520 = vmatprep.subr.mxu0 0.0
    %2521 = vmatpush1.msra.mxu0 0.0
    %2522 = vmatprep.subr.mxu0 0.0
    %2523 = vmatpush1.msra.mxu0 0.0
    %2524 = vmatprep.subr.mxu0 0.0
    %2525 = vmatpush1.msra.mxu0 0.0
    %2526 = vmatprep.mubr.f32.mxu0 0.0
    %2527 = vmatmul.mubr.f32.gmra.mrb[0].mxu0 %v2460
    %v2528 = vpop.f32.mrb[0].mxu0
    %v2529 = vadd.f32 0.0, %v2528
    %v2530 = vpop.f32.mrb[0].mxu0
    %2531 = vdwg.mxu0
    %v2532 = vadd.f32 %v2385, %v2529
    %v2533 = vadd.f32 %v2532, %v1398
    %s2534 = scalar_lea.vmem %s9, 1
    %v2535 = vld [vmem:[%s2534] sm:$0x1]
    %v2536 = vmul.f32 %v2533, %v2533
    %v2537 = vsel %vm70, %v2536, 0.0
    %2538 = vadd.xlane.f32.xlu0 %v2537
    %v2539 = vpop.xlane.xlu0 %2538
    %v2540 = vmul.f32 %v2539, %v74
    %v2541 = vadd.f32 %v2540, 1e-06
    %v2542 = vrsqrt.pop %v2541
    %v2543 = vmul.f32 %v2533, %v2542
    %v2545 = vlaneseq
    %v2546 = vshrl.u32 %v2545, 7
    %v2547 = vsub.s32 0, %v2546
    %v2548 = vrot.slane %v2535, %v2547
    %v2550 = vmul.f32 %v2543, %v2548
    %s2551 = scalar_lea.vmem %s10, 128
    %v2552 = vld [vmem:[%s2551] sm:$0xff]
    %v2553 = vld [vmem:[%s2551 + $0x8] sm:$0xff]
    %v2554 = vld [vmem:[%s2551 + $0x10] sm:$0xff]
    %v2555 = vld [vmem:[%s2551 + $0x18] sm:$0xff]
    %v2556 = vld [vmem:[%s2551 + $0x20] sm:$0xff]
    %v2557 = vld [vmem:[%s2551 + $0x28] sm:$0xff]
    %v2558 = vld [vmem:[%s2551 + $0x30] sm:$0xff]
    %v2559 = vld [vmem:[%s2551 + $0x38] sm:$0xff]
    %v2560 = vld [vmem:[%s2551 + $0x40] sm:$0xff]
    %v2561 = vld [vmem:[%s2551 + $0x48] sm:$0xff]
    %v2562 = vld [vmem:[%s2551 + $0x50] sm:$0xff]
    %v2563 = vld [vmem:[%s2551 + $0x58] sm:$0xff]
    %v2564 = vld [vmem:[%s2551 + $0x60] sm:$0xff]
    %v2565 = vld [vmem:[%s2551 + $0x68] sm:$0xff]
    %v2566 = vld [vmem:[%s2551 + $0x70] sm:$0xff]
    %v2567 = vld [vmem:[%s2551 + $0x78] sm:$0xff]
    %v2569 = vsel %vm70, %v2550, 0
    %2571 = vmatprep.subr.mxu0 %v2553
    %2572 = vmatpush1.msra.mxu0 %v2552
    %2573 = vmatprep.subr.mxu0 %v2555
    %2574 = vmatpush1.msra.mxu0 %v2554
    %2575 = vmatprep.subr.mxu0 %v2557
    %2576 = vmatpush1.msra.mxu0 %v2556
    %2577 = vmatprep.subr.mxu0 %v2559
    %2578 = vmatpush1.msra.mxu0 %v2558
    %2579 = vmatprep.subr.mxu0 %v2561
    %2580 = vmatpush1.msra.mxu0 %v2560
    %2581 = vmatprep.subr.mxu0 %v2563
    %2582 = vmatpush1.msra.mxu0 %v2562
    %2583 = vmatprep.subr.mxu0 %v2565
    %2584 = vmatpush1.msra.mxu0 %v2564
    %2585 = vmatprep.subr.mxu0 %v2567
    %2586 = vmatpush1.msra.mxu0 %v2566
    %2587 = vmatprep.subr.mxu0 0.0
    %2588 = vmatpush1.msra.mxu0 0.0
    %2589 = vmatprep.subr.mxu0 0.0
    %2590 = vmatpush1.msra.mxu0 0.0
    %2591 = vmatprep.subr.mxu0 0.0
    %2592 = vmatpush1.msra.mxu0 0.0
    %2593 = vmatprep.subr.mxu0 0.0
    %2594 = vmatpush1.msra.mxu0 0.0
    %2595 = vmatprep.subr.mxu0 0.0
    %2596 = vmatpush1.msra.mxu0 0.0
    %2597 = vmatprep.subr.mxu0 0.0
    %2598 = vmatpush1.msra.mxu0 0.0
    %2599 = vmatprep.subr.mxu0 0.0
    %2600 = vmatpush1.msra.mxu0 0.0
    %2601 = vmatprep.subr.mxu0 0.0
    %2602 = vmatpush1.msra.mxu0 0.0
    %2603 = vmatprep.subr.mxu0 0.0
    %2604 = vmatpush1.msra.mxu0 0.0
    %2605 = vmatprep.subr.mxu0 0.0
    %2606 = vmatpush1.msra.mxu0 0.0
    %2607 = vmatprep.subr.mxu0 0.0
    %2608 = vmatpush1.msra.mxu0 0.0
    %2609 = vmatprep.subr.mxu0 0.0
    %2610 = vmatpush1.msra.mxu0 0.0
    %2611 = vmatprep.subr.mxu0 0.0
    %2612 = vmatpush1.msra.mxu0 0.0
    %2613 = vmatprep.subr.mxu0 0.0
    %2614 = vmatpush1.msra.mxu0 0.0
    %2615 = vmatprep.subr.mxu0 0.0
    %2616 = vmatpush1.msra.mxu0 0.0
    %2617 = vmatprep.subr.mxu0 0.0
    %2618 = vmatpush1.msra.mxu0 0.0
    %2619 = vmatprep.subr.mxu0 0.0
    %2620 = vmatpush1.msra.mxu0 0.0
    %2621 = vmatprep.subr.mxu0 0.0
    %2622 = vmatpush1.msra.mxu0 0.0
    %2623 = vmatprep.subr.mxu0 0.0
    %2624 = vmatpush1.msra.mxu0 0.0
    %2625 = vmatprep.subr.mxu0 0.0
    %2626 = vmatpush1.msra.mxu0 0.0
    %2627 = vmatprep.subr.mxu0 0.0
    %2628 = vmatpush1.msra.mxu0 0.0
    %2629 = vmatprep.subr.mxu0 0.0
    %2630 = vmatpush1.msra.mxu0 0.0
    %2631 = vmatprep.subr.mxu0 0.0
    %2632 = vmatpush1.msra.mxu0 0.0
    %2633 = vmatprep.subr.mxu0 0.0
    %2634 = vmatpush1.msra.mxu0 0.0
    %2635 = vmatprep.mubr.f32.mxu0 0.0
    %2636 = vmatmul.mubr.f32.gmra.mrb[0].mxu0 %v2569
    %v2637 = vpop.f32.mrb[0].mxu0
    %v2638 = vadd.f32 0.0, %v2637
    %v2639 = vpop.f32.mrb[0].mxu0
    %v2640 = vadd.f32 0.0, %v2639
    %2641 = vdwg.mxu0
    %v2642 = vxor.u32 %v2638, 2147483648
    %v2643 = vmul.f32 %v2642, 1.442695
    %v2644 = vpow.pop %v2643
    %v2645 = vadd.f32 %v2644, 1.0
    %v2646 = vrcp.pop %v2645
    %v2647 = vmul.f32 1.0, %v2646
    %v2648 = vmul.f32 %v2638, %v2647
    %v2649 = vmul.f32 %v2648, %v2640
    %s2650 = scalar_lea.vmem %s11, 128
    %v2651 = vld [vmem:[%s2650] sm:$0xff]
    %v2652 = vld [vmem:[%s2650 + $0x8] sm:$0xff]
    %v2653 = vld [vmem:[%s2650 + $0x10] sm:$0xff]
    %v2654 = vld [vmem:[%s2650 + $0x18] sm:$0xff]
    %v2655 = vld [vmem:[%s2650 + $0x20] sm:$0xff]
    %v2656 = vld [vmem:[%s2650 + $0x28] sm:$0xff]
    %v2657 = vld [vmem:[%s2650 + $0x30] sm:$0xff]
    %v2658 = vld [vmem:[%s2650 + $0x38] sm:$0xff]
    %v2659 = vld [vmem:[%s2650 + $0x40] sm:$0xff]
    %v2660 = vld [vmem:[%s2650 + $0x48] sm:$0xff]
    %v2661 = vld [vmem:[%s2650 + $0x50] sm:$0xff]
    %v2662 = vld [vmem:[%s2650 + $0x58] sm:$0xff]
    %v2663 = vld [vmem:[%s2650 + $0x60] sm:$0xff]
    %v2664 = vld [vmem:[%s2650 + $0x68] sm:$0xff]
    %v2665 = vld [vmem:[%s2650 + $0x70] sm:$0xff]
    %v2666 = vld [vmem:[%s2650 + $0x78] sm:$0xff]
    %2667 = vmatprep.subr.mxu0 0.0
    %2668 = vmatpush1.msra.mxu0 %v2651
    %2669 = vmatprep.subr.mxu0 0.0
    %2670 = vmatpush1.msra.mxu0 %v2652
    %2671 = vmatprep.subr.mxu0 0.0
    %2672 = vmatpush1.msra.mxu0 %v2653
    %2673 = vmatprep.subr.mxu0 0.0
    %2674 = vmatpush1.msra.mxu0 %v2654
    %2675 = vmatprep.subr.mxu0 0.0
    %2676 = vmatpush1.msra.mxu0 %v2655
    %2677 = vmatprep.subr.mxu0 0.0
    %2678 = vmatpush1.msra.mxu0 %v2656
    %2679 = vmatprep.subr.mxu0 0.0
    %2680 = vmatpush1.msra.mxu0 %v2657
    %2681 = vmatprep.subr.mxu0 0.0
    %2682 = vmatpush1.msra.mxu0 %v2658
    %2683 = vmatprep.subr.mxu0 0.0
    %2684 = vmatpush1.msra.mxu0 %v2659
    %2685 = vmatprep.subr.mxu0 0.0
    %2686 = vmatpush1.msra.mxu0 %v2660
    %2687 = vmatprep.subr.mxu0 0.0
    %2688 = vmatpush1.msra.mxu0 %v2661
    %2689 = vmatprep.subr.mxu0 0.0
    %2690 = vmatpush1.msra.mxu0 %v2662
    %2691 = vmatprep.subr.mxu0 0.0
    %2692 = vmatpush1.msra.mxu0 %v2663
    %2693 = vmatprep.subr.mxu0 0.0
    %2694 = vmatpush1.msra.mxu0 %v2664
    %2695 = vmatprep.subr.mxu0 0.0
    %2696 = vmatpush1.msra.mxu0 %v2665
    %2697 = vmatprep.subr.mxu0 0.0
    %2698 = vmatpush1.msra.mxu0 %v2666
    %2699 = vmatprep.subr.mxu0 0.0
    %2700 = vmatpush1.msra.mxu0 0.0
    %2701 = vmatprep.subr.mxu0 0.0
    %2702 = vmatpush1.msra.mxu0 0.0
    %2703 = vmatprep.subr.mxu0 0.0
    %2704 = vmatpush1.msra.mxu0 0.0
    %2705 = vmatprep.subr.mxu0 0.0
    %2706 = vmatpush1.msra.mxu0 0.0
    %2707 = vmatprep.subr.mxu0 0.0
    %2708 = vmatpush1.msra.mxu0 0.0
    %2709 = vmatprep.subr.mxu0 0.0
    %2710 = vmatpush1.msra.mxu0 0.0
    %2711 = vmatprep.subr.mxu0 0.0
    %2712 = vmatpush1.msra.mxu0 0.0
    %2713 = vmatprep.subr.mxu0 0.0
    %2714 = vmatpush1.msra.mxu0 0.0
    %2715 = vmatprep.subr.mxu0 0.0
    %2716 = vmatpush1.msra.mxu0 0.0
    %2717 = vmatprep.subr.mxu0 0.0
    %2718 = vmatpush1.msra.mxu0 0.0
    %2719 = vmatprep.subr.mxu0 0.0
    %2720 = vmatpush1.msra.mxu0 0.0
    %2721 = vmatprep.subr.mxu0 0.0
    %2722 = vmatpush1.msra.mxu0 0.0
    %2723 = vmatprep.subr.mxu0 0.0
    %2724 = vmatpush1.msra.mxu0 0.0
    %2725 = vmatprep.subr.mxu0 0.0
    %2726 = vmatpush1.msra.mxu0 0.0
    %2727 = vmatprep.subr.mxu0 0.0
    %2728 = vmatpush1.msra.mxu0 0.0
    %2729 = vmatprep.subr.mxu0 0.0
    %2730 = vmatpush1.msra.mxu0 0.0
    %2731 = vmatprep.mubr.f32.mxu0 0.0
    %2732 = vmatmul.mubr.f32.gmra.mrb[0].mxu0 %v2649
    %v2733 = vpop.f32.mrb[0].mxu0
    %v2734 = vadd.f32 %v2533, %v2733
    %v2735 = vpop.f32.mrb[0].mxu0
    %2736 = vdwg.mxu0
    %v2737 = vld [vmem:[%s12] sm:$0x1]
    %v2738 = vmul.f32 %v2734, %v2734
    %v2739 = vsel %vm70, %v2738, 0.0
    %2740 = vadd.xlane.f32.xlu0 %v2739
    %v2741 = vpop.xlane.xlu0 %2740
    %v2742 = vmul.f32 %v2741, %v74
    %v2743 = vadd.f32 %v2742, 1e-06
    %v2744 = vrsqrt.pop %v2743
    %v2745 = vmul.f32 %v2734, %v2744
    %v2747 = vlaneseq
    %v2748 = vshrl.u32 %v2747, 7
    %v2749 = vsub.s32 0, %v2748
    %v2750 = vrot.slane %v2737, %v2749
    %v2752 = vmul.f32 %v2745, %v2750
    %2753 = vst.msk [vmem:[#allocation2] sm:$0xff] %vm70, %v2752
    // Predicated region
    $region54: #{qwen2_forward.1} parent=1 // pred_check
      _
    $region55: #{qwen2_forward.1} parent=1 // pred_check_branch
      %2755 = sbr.rel (0) target = $region57
    $region56: #{qwen2_forward.1} parent=1 // pred_region
      %s2757 = ssub.s32 128, 128
      %2758 = vsyncadd [#allocation3], %s2757
      %s2760 = sshll.u32 [#allocation2], 4
      %s2761 = int_to_ptr.vmem [resolvable:$true] %s2760
      %2763 = dma.vmem_to_hbm [thread:$0]  %s2761, 128, %s13, [#allocation3]
    $region57: #{qwen2_forward.1} parent=1 // pred_fallthru
      _
    // Predicated region
    $region58: #{qwen2_forward.1} parent=1 // pred_check
      _
    $region59: #{qwen2_forward.1} parent=1 // pred_check_branch
      %2765 = sbr.rel (0) target = $region61
    $region60: #{qwen2_forward.1} parent=1 // pred_region
      %2766 = dma.done [#allocation3], 128
    $region61: #{qwen2_forward.1} parent=1 // pred_fallthru
      _
    %2767 = vsyncpa [#allocation3], 1

</llo_original>
